<compile_context>
chip_gen: v7x
topology: tpu7x:2x2x1
jax: 0.10.0
libtpu: 0.0.40
codegen_flags: <defaults>
</compile_context>

<pallas_src>
import functools

import jax
import jax.numpy as jnp
from jax import lax
from jax.experimental import pallas as pl
from jax.experimental.pallas import tpu as pltpu


def dense_layer_kernel(x_ref, s1_ref, b1_ref, w1_ref, s2_ref, b2_ref, w2_ref,
                       masks_ref, out_ref, *, W, HW, Cmid, Cout, B):
    # Per-grid-step block shapes:
    #   x_ref    : (B, Cin, HW)   bf16  batch-tile of images, channel-major, spatial in lanes
    #   s*/b*    : (C, 1)         f32   folded eval-mode BN scale / shift
    #   w1_ref   : (Cmid, Cin)    bf16  1x1-conv weight
    #   w2_ref   : (9*Cout, Cmid) bf16  3x3-conv weight, rows grouped per tap k = di*3 + dj
    #   masks_ref: (4, HW)        f32   [not-last-col, not-first-col, not-top-row, not-bot-row]
    #   out_ref  : (B, Cout, HW)  f32

    # Hoist all weight / scale / mask loads out of the per-image loop (resident in vregs).
    s1 = s1_ref[...]
    b1 = b1_ref[...]
    s2 = s2_ref[...]
    b2 = b2_ref[...]
    w1 = w1_ref[...]
    w2_taps = [w2_ref[k * Cout:(k + 1) * Cout, :] for k in range(9)]   # 9 x (Cout, Cmid)
    m_not_lastcol = masks_ref[0:1, :]    # 0 where in-image column == W-1  (dj == 0 taps)
    m_not_firstcol = masks_ref[1:2, :]   # 0 where in-image column == 0    (dj == 2 taps)
    m_not_toprow = masks_ref[2:3, :]     # 0 where in-image row    == 0    (di == 0 group)
    m_not_botrow = masks_ref[3:4, :]     # 0 where in-image row    == H-1  (di == 2 group)

    # Unrolled per-image loop (B is small & static); equivalent to
    # lax.fori_loop(0, B, ..., unroll=True), with the MXU weights held across iterations.
    for b in range(B):
        # --- BN1 (folded) + ReLU, f32 on the VPU -------------------------------------
        h = jnp.maximum(x_ref[b].astype(jnp.float32) * s1 + b1, 0.0)        # (Cin, HW)

        # --- Conv1x1 == one MXU matmul (bf16 operands, f32 accumulation) -------------
        h1 = jnp.dot(w1, h.astype(jnp.bfloat16),
                     preferred_element_type=jnp.float32)                    # (Cmid, HW)

        # --- BN2 (folded) + ReLU ------------------------------------------------------
        h2 = jnp.maximum(h1 * s2 + b2, 0.0)                                 # (Cmid, HW) f32

        # Horizontal-boundary pre-masking (2 f32 multiplies), then cast to bf16.
        # dj=0 taps read column j-1: wrapped reads source in-image column W-1 -> zeroed.
        # dj=2 taps read column j+1: wrapped reads source in-image column 0   -> zeroed.
        h2_c = h2.astype(jnp.bfloat16)
        h2_l = (h2 * m_not_lastcol).astype(jnp.bfloat16)
        h2_r = (h2 * m_not_firstcol).astype(jnp.bfloat16)
        h2_by_dj = (h2_l, h2_c, h2_r)

        # --- Conv3x3 (padding=1): 9 accumulating MXU matmuls, no im2col matrix -------
        # out[o, col] = sum_{di,dj,c} w2[o,c,di,dj] * h2[c, col + (di-1)*W + (dj-1)]
        # The lane shift commutes with the channel contraction, so the shift is applied
        # with pltpu.roll to the small (Cout, HW) partial product, not the (Cmid, HW) tap.
        acc = None
        for di in range(3):
            part = None
            for dj in range(3):
                k = di * 3 + dj
                p = jnp.dot(w2_taps[k], h2_by_dj[dj],
                            preferred_element_type=jnp.float32)             # (Cout, HW) f32
                off = (di - 1) * W + (dj - 1)
                if off != 0:
                    # want p'[col] = p[(col + off) mod HW]  ->  jnp.roll shift = -off
                    p = pltpu.roll(p, (-off) % HW, axis=1)
                part = p if part is None else part + p
            # Vertical-boundary masks on the per-di partial sum (small Cout-wide multiply).
            if di == 0:
                part = part * m_not_toprow
            elif di == 2:
                part = part * m_not_botrow
            acc = part if acc is None else acc + part

        out_ref[b] = acc                                                    # (Cout, HW) f32


def _pick_batch_tile(n, max_b=8):
    """Largest divisor of n that keeps >= 2 grid steps (v7x has 2 TensorCores) and <= max_b."""
    if n <= 1:
        return 1
    best = 1
    for b in range(1, min(n // 2, max_b) + 1):
        if n % b == 0:
            best = b
    return best


def dense_layer_forward_nchw(x_nchw, kernel_params):
    """NCHW in, NCHW out -- matches the PyTorch module's forward (eval-mode BN)."""
    scale1, shift1, w1, scale2, shift2, w2 = kernel_params
    N, Cin, H, W = x_nchw.shape
    Cmid = w1.shape[0]
    Cout = w2.shape[0] // 9
    HW = H * W

    B = _pick_batch_tile(N)

    # Channel-major with flattened spatial lanes: trailing-dim reshape only (free, no
    # transposes), and bf16 at the pallas_call boundary to halve the dominant HBM read.
    x = x_nchw.reshape(N, Cin, HW).astype(jnp.bfloat16)

    # Boundary masks (f32), one row per case; constant across the whole grid.
    col = jnp.arange(HW, dtype=jnp.int32) % W
    row = jnp.arange(HW, dtype=jnp.int32) // W
    masks = jnp.stack([
        (col != W - 1).astype(jnp.float32),   # not-last-col   (dj = 0 taps)
        (col != 0).astype(jnp.float32),       # not-first-col  (dj = 2 taps)
        (row != 0).astype(jnp.float32),       # not-top-row    (di = 0 group)
        (row != H - 1).astype(jnp.float32),   # not-bottom-row (di = 2 group)
    ], axis=0)                                # (4, HW)

    kernel = functools.partial(dense_layer_kernel, W=W, HW=HW, Cmid=Cmid, Cout=Cout, B=B)

    out = pl.pallas_call(
        kernel,
        out_shape=jax.ShapeDtypeStruct((N, Cout, HW), jnp.float32),
        grid_spec=pltpu.PrefetchScalarGridSpec(
            num_scalar_prefetch=0,
            grid=(N // B,),
            in_specs=[
                pl.BlockSpec((B, Cin, HW), lambda n: (n, 0, 0)),     # x (batch tile, bf16)
                pl.BlockSpec((Cin, 1), lambda n: (0, 0)),            # bn1 scale
                pl.BlockSpec((Cin, 1), lambda n: (0, 0)),            # bn1 shift
                pl.BlockSpec((Cmid, Cin), lambda n: (0, 0)),         # conv1 weight (bf16)
                pl.BlockSpec((Cmid, 1), lambda n: (0, 0)),           # bn2 scale
                pl.BlockSpec((Cmid, 1), lambda n: (0, 0)),           # bn2 shift
                pl.BlockSpec((9 * Cout, Cmid), lambda n: (0, 0)),    # conv2 weight (bf16)
                pl.BlockSpec((4, HW), lambda n: (0, 0)),             # boundary masks
            ],
            out_specs=pl.BlockSpec((B, Cout, HW), lambda n: (n, 0, 0)),
        ),
        compiler_params=pltpu.CompilerParams(
            dimension_semantics=("parallel",)),
    )(x, scale1, shift1, w1, scale2, shift2, w2, masks)

    return out.reshape(N, Cout, H, W)       # free trailing-dim split -> NCHW


def make_torch_params(key, in_channels, growth_rate):
    """Deterministic PyTorch-shaped parameters (BN running stats + OIHW conv weights)."""
    cmid = 4 * growth_rate
    cout = growth_rate
    ks = jax.random.split(key, 10)
    return dict(
        gamma1=1.0 + 0.1 * jax.random.normal(ks[0], (in_channels,), jnp.float32),
        beta1=0.1 * jax.random.normal(ks[1], (in_channels,), jnp.float32),
        mean1=0.1 * jax.random.normal(ks[2], (in_channels,), jnp.float32),
        var1=jax.random.uniform(ks[3], (in_channels,), jnp.float32, 0.5, 1.5),
        gamma2=1.0 + 0.1 * jax.random.normal(ks[4], (cmid,), jnp.float32),
        beta2=0.1 * jax.random.normal(ks[5], (cmid,), jnp.float32),
        mean2=0.1 * jax.random.normal(ks[6], (cmid,), jnp.float32),
        var2=jax.random.uniform(ks[7], (cmid,), jnp.float32, 0.5, 1.5),
        w1_oihw=0.1 * jax.random.normal(ks[8], (cmid, in_channels, 1, 1), jnp.float32),
        w2_oihw=0.1 * jax.random.normal(ks[9], (cout, cmid, 3, 3), jnp.float32),
    )


def fold_params_for_kernel(p, eps=1e-5):
    """Fold eval-mode BN into per-channel scale/shift; reshape conv weights for the kernel."""
    cin = p["gamma1"].shape[0]
    cmid = p["gamma2"].shape[0]
    cout = p["w2_oihw"].shape[0]

    inv1 = p["gamma1"] / jnp.sqrt(p["var1"] + eps)
    inv2 = p["gamma2"] / jnp.sqrt(p["var2"] + eps)
    scale1 = inv1.reshape(cin, 1)
    shift1 = (p["beta1"] - p["mean1"] * inv1).reshape(cin, 1)
    scale2 = inv2.reshape(cmid, 1)
    shift2 = (p["beta2"] - p["mean2"] * inv2).reshape(cmid, 1)

    # Conv1x1: OIHW (Cmid, Cin, 1, 1) -> (Cmid, Cin), bf16 MXU operand.
    w1 = p["w1_oihw"][:, :, 0, 0].astype(jnp.bfloat16)
    # Conv3x3: OIHW (Cout, Cmid, 3, 3) -> (3, 3, Cout, Cmid) -> (9*Cout, Cmid) so that
    # rows [k*Cout:(k+1)*Cout] hold the tap k = di*3 + dj (sublane-aligned slices in-kernel).
    w2 = jnp.transpose(p["w2_oihw"], (2, 3, 0, 1)).reshape(9 * cout, cmid)
    w2 = w2.astype(jnp.bfloat16)
    return (scale1, shift1, w1, scale2, shift2, w2)


def reference_nchw(x, p, eps=1e-5):
    """Pure-JAX f32 eval-mode forward of the PyTorch module (spec reference)."""
    def bn(v, gamma, beta, mean, var):
        c = v.shape[1]
        return ((v - mean.reshape(1, c, 1, 1))
                / jnp.sqrt(var.reshape(1, c, 1, 1) + eps)
                * gamma.reshape(1, c, 1, 1) + beta.reshape(1, c, 1, 1))

    h = jnp.maximum(bn(x, p["gamma1"], p["beta1"], p["mean1"], p["var1"]), 0.0)
    y1 = lax.conv_general_dilated(h, p["w1_oihw"], (1, 1), "VALID",
                                  dimension_numbers=("NCHW", "OIHW", "NCHW"))
    h2 = jnp.maximum(bn(y1, p["gamma2"], p["beta2"], p["mean2"], p["var2"]), 0.0)
    y2 = lax.conv_general_dilated(h2, p["w2_oihw"], (1, 1), ((1, 1), (1, 1)),
                                  dimension_numbers=("NCHW", "OIHW", "NCHW"))
    return y2


if __name__ == "__main__":
    # N = 8 so the batch-tiling kicks in: B = 4 images per grid step, grid = (2,)
    # (>= 2 steps keeps both v7x TensorCores busy).
    N, Cin, H, W = 8, 16, 16, 16
    growth_rate = 8

    key = jax.random.PRNGKey(0)
    kx, kp = jax.random.split(key)

    x = jax.random.normal(kx, (N, Cin, H, W), jnp.float32)
    torch_params = make_torch_params(kp, Cin, growth_rate)
    kernel_params = fold_params_for_kernel(torch_params)

    out = dense_layer_forward_nchw(x, kernel_params)
    out = jax.block_until_ready(out)
    assert out.shape == (N, growth_rate, H, W)

    # Cross-check against the pure-JAX f32 reference of the same eval-mode forward.
    # (Kernel matmul operands and the kernel's x input are bf16 with f32 accumulation,
    #  hence the loose tolerance.)
    ref = reference_nchw(x, torch_params)
    max_err = float(jnp.max(jnp.abs(out - ref)))
    assert jnp.allclose(out, ref, atol=1e-1, rtol=1e-1), max_err

    print("KERNEL_OK")
</pallas_src>

<mosaic_0001>
module attributes {stable_mosaic.version = 11 : i64} {
  func.func @dense_layer_kernel(%arg0: i32, %arg1: memref<4x16x256xbf16, #tpu.memory_space<vmem>>, %arg2: memref<16x1xf32, #tpu.memory_space<vmem>>, %arg3: memref<16x1xf32, #tpu.memory_space<vmem>>, %arg4: memref<32x16xbf16, #tpu.memory_space<vmem>>, %arg5: memref<32x1xf32, #tpu.memory_space<vmem>>, %arg6: memref<32x1xf32, #tpu.memory_space<vmem>>, %arg7: memref<72x32xbf16, #tpu.memory_space<vmem>>, %arg8: memref<4x256xf32, #tpu.memory_space<vmem>>, %arg9: memref<4x8x256xf32, #tpu.memory_space<vmem>>) attributes {dimension_semantics = [#tpu.dimension_semantics<parallel>], iteration_bounds = array<i64: 2>, scalar_prefetch = 0 : i64, scratch_operands = 0 : i64, tpu.core_type = #tpu.core_type<tc>, window_params = [{transform_indices = @transform_0, window_bounds = array<i64: 4, 16, 256>}, {pipeline_mode = #tpu.pipeline_mode<synchronous>, transform_indices = @transform_1, window_bounds = array<i64: 16, 1>}, {pipeline_mode = #tpu.pipeline_mode<synchronous>, transform_indices = @transform_2, window_bounds = array<i64: 16, 1>}, {pipeline_mode = #tpu.pipeline_mode<synchronous>, transform_indices = @transform_3, window_bounds = array<i64: 32, 16>}, {pipeline_mode = #tpu.pipeline_mode<synchronous>, transform_indices = @transform_4, window_bounds = array<i64: 32, 1>}, {pipeline_mode = #tpu.pipeline_mode<synchronous>, transform_indices = @transform_5, window_bounds = array<i64: 32, 1>}, {pipeline_mode = #tpu.pipeline_mode<synchronous>, transform_indices = @transform_6, window_bounds = array<i64: 72, 32>}, {pipeline_mode = #tpu.pipeline_mode<synchronous>, transform_indices = @transform_7, window_bounds = array<i64: 4, 256>}, {transform_indices = @transform_8, window_bounds = array<i64: 4, 8, 256>}]} {
    %c0 = arith.constant 0 : index
    %c0_0 = arith.constant 0 : index
    %0 = vector.load %arg2[%c0, %c0_0] : memref<16x1xf32, #tpu.memory_space<vmem>>, vector<16x1xf32>
    %c0_1 = arith.constant 0 : index
    %c0_2 = arith.constant 0 : index
    %1 = vector.load %arg3[%c0_1, %c0_2] : memref<16x1xf32, #tpu.memory_space<vmem>>, vector<16x1xf32>
    %c0_3 = arith.constant 0 : index
    %c0_4 = arith.constant 0 : index
    %2 = vector.load %arg5[%c0_3, %c0_4] : memref<32x1xf32, #tpu.memory_space<vmem>>, vector<32x1xf32>
    %c0_5 = arith.constant 0 : index
    %c0_6 = arith.constant 0 : index
    %3 = vector.load %arg6[%c0_5, %c0_6] : memref<32x1xf32, #tpu.memory_space<vmem>>, vector<32x1xf32>
    %c0_7 = arith.constant 0 : index
    %c0_8 = arith.constant 0 : index
    %4 = vector.load %arg4[%c0_7, %c0_8] : memref<32x16xbf16, #tpu.memory_space<vmem>>, vector<32x16xbf16>
    %c0_9 = arith.constant 0 : index
    %c0_10 = arith.constant 0 : index
    %5 = vector.load %arg7[%c0_9, %c0_10] : memref<72x32xbf16, #tpu.memory_space<vmem>>, vector<8x32xbf16>
    %c8 = arith.constant 8 : index
    %c0_11 = arith.constant 0 : index
    %6 = vector.load %arg7[%c8, %c0_11] : memref<72x32xbf16, #tpu.memory_space<vmem>>, vector<8x32xbf16>
    %c16 = arith.constant 16 : index
    %c0_12 = arith.constant 0 : index
    %7 = vector.load %arg7[%c16, %c0_12] : memref<72x32xbf16, #tpu.memory_space<vmem>>, vector<8x32xbf16>
    %c24 = arith.constant 24 : index
    %c0_13 = arith.constant 0 : index
    %8 = vector.load %arg7[%c24, %c0_13] : memref<72x32xbf16, #tpu.memory_space<vmem>>, vector<8x32xbf16>
    %c32 = arith.constant 32 : index
    %c0_14 = arith.constant 0 : index
    %9 = vector.load %arg7[%c32, %c0_14] : memref<72x32xbf16, #tpu.memory_space<vmem>>, vector<8x32xbf16>
    %c40 = arith.constant 40 : index
    %c0_15 = arith.constant 0 : index
    %10 = vector.load %arg7[%c40, %c0_15] : memref<72x32xbf16, #tpu.memory_space<vmem>>, vector<8x32xbf16>
    %c48 = arith.constant 48 : index
    %c0_16 = arith.constant 0 : index
    %11 = vector.load %arg7[%c48, %c0_16] : memref<72x32xbf16, #tpu.memory_space<vmem>>, vector<8x32xbf16>
    %c56 = arith.constant 56 : index
    %c0_17 = arith.constant 0 : index
    %12 = vector.load %arg7[%c56, %c0_17] : memref<72x32xbf16, #tpu.memory_space<vmem>>, vector<8x32xbf16>
    %c64 = arith.constant 64 : index
    %c0_18 = arith.constant 0 : index
    %13 = vector.load %arg7[%c64, %c0_18] : memref<72x32xbf16, #tpu.memory_space<vmem>>, vector<8x32xbf16>
    %c0_19 = arith.constant 0 : index
    %c0_20 = arith.constant 0 : index
    %14 = vector.load %arg8[%c0_19, %c0_20] : memref<4x256xf32, #tpu.memory_space<vmem>>, vector<1x256xf32>
    %c1 = arith.constant 1 : index
    %c0_21 = arith.constant 0 : index
    %15 = vector.load %arg8[%c1, %c0_21] : memref<4x256xf32, #tpu.memory_space<vmem>>, vector<1x256xf32>
    %c2 = arith.constant 2 : index
    %c0_22 = arith.constant 0 : index
    %16 = vector.load %arg8[%c2, %c0_22] : memref<4x256xf32, #tpu.memory_space<vmem>>, vector<1x256xf32>
    %c3 = arith.constant 3 : index
    %c0_23 = arith.constant 0 : index
    %17 = vector.load %arg8[%c3, %c0_23] : memref<4x256xf32, #tpu.memory_space<vmem>>, vector<1x256xf32>
    %c0_24 = arith.constant 0 : index
    %c0_25 = arith.constant 0 : index
    %c0_26 = arith.constant 0 : index
    %18 = vector.load %arg1[%c0_24, %c0_25, %c0_26] : memref<4x16x256xbf16, #tpu.memory_space<vmem>>, vector<1x16x256xbf16>
    %19 = vector.shape_cast %18 : vector<1x16x256xbf16> to vector<16x256xbf16>
    %20 = arith.extf %19 : vector<16x256xbf16> to vector<16x256xf32>
    %21 = vector.broadcast %0 : vector<16x1xf32> to vector<16x256xf32>
    %22 = arith.mulf %20, %21 : vector<16x256xf32>
    %23 = vector.broadcast %1 : vector<16x1xf32> to vector<16x256xf32>
    %24 = arith.addf %22, %23 : vector<16x256xf32>
    %cst = arith.constant 0.000000e+00 : f32
    %25 = vector.broadcast %cst : f32 to vector<16x256xf32>
    %26 = arith.maximumf %24, %25 : vector<16x256xf32>
    %27 = arith.truncf %26 : vector<16x256xf32> to vector<16x256xbf16>
    %cst_27 = arith.constant dense<0.000000e+00> : vector<32x256xf32>
    %28 = tpu.matmul %4, %27, %cst_27 {dimension_numbers = #tpu.dot_dimension_numbers<[1], [0], [0], [1], [0, 0, 1, 1], [], []>} : vector<32x16xbf16>, vector<16x256xbf16>, vector<32x256xf32> -> vector<32x256xf32>
    %29 = vector.broadcast %2 : vector<32x1xf32> to vector<32x256xf32>
    %30 = arith.mulf %28, %29 : vector<32x256xf32>
    %31 = vector.broadcast %3 : vector<32x1xf32> to vector<32x256xf32>
    %32 = arith.addf %30, %31 : vector<32x256xf32>
    %cst_28 = arith.constant 0.000000e+00 : f32
    %33 = vector.broadcast %cst_28 : f32 to vector<32x256xf32>
    %34 = arith.maximumf %32, %33 : vector<32x256xf32>
    %35 = arith.truncf %34 : vector<32x256xf32> to vector<32x256xbf16>
    %36 = vector.broadcast %14 : vector<1x256xf32> to vector<32x256xf32>
    %37 = arith.mulf %34, %36 : vector<32x256xf32>
    %38 = arith.truncf %37 : vector<32x256xf32> to vector<32x256xbf16>
    %39 = vector.broadcast %15 : vector<1x256xf32> to vector<32x256xf32>
    %40 = arith.mulf %34, %39 : vector<32x256xf32>
    %41 = arith.truncf %40 : vector<32x256xf32> to vector<32x256xbf16>
    %cst_29 = arith.constant dense<0.000000e+00> : vector<8x256xf32>
    %42 = tpu.matmul %5, %38, %cst_29 {dimension_numbers = #tpu.dot_dimension_numbers<[1], [0], [0], [1], [0, 0, 1, 1], [], []>} : vector<8x32xbf16>, vector<32x256xbf16>, vector<8x256xf32> -> vector<8x256xf32>
    %c17_i32 = arith.constant 17 : i32
    %43 = tpu.dynamic_rotate %42 by %c17_i32 dim 1 : vector<8x256xf32>, i32 -> vector<8x256xf32>
    %cst_30 = arith.constant dense<0.000000e+00> : vector<8x256xf32>
    %44 = tpu.matmul %6, %35, %cst_30 {dimension_numbers = #tpu.dot_dimension_numbers<[1], [0], [0], [1], [0, 0, 1, 1], [], []>} : vector<8x32xbf16>, vector<32x256xbf16>, vector<8x256xf32> -> vector<8x256xf32>
    %c16_i32 = arith.constant 16 : i32
    %45 = tpu.dynamic_rotate %44 by %c16_i32 dim 1 : vector<8x256xf32>, i32 -> vector<8x256xf32>
    %46 = arith.addf %43, %45 : vector<8x256xf32>
    %cst_31 = arith.constant dense<0.000000e+00> : vector<8x256xf32>
    %47 = tpu.matmul %7, %41, %cst_31 {dimension_numbers = #tpu.dot_dimension_numbers<[1], [0], [0], [1], [0, 0, 1, 1], [], []>} : vector<8x32xbf16>, vector<32x256xbf16>, vector<8x256xf32> -> vector<8x256xf32>
    %c15_i32 = arith.constant 15 : i32
    %48 = tpu.dynamic_rotate %47 by %c15_i32 dim 1 : vector<8x256xf32>, i32 -> vector<8x256xf32>
    %49 = arith.addf %46, %48 : vector<8x256xf32>
    %50 = vector.broadcast %16 : vector<1x256xf32> to vector<8x256xf32>
    %51 = arith.mulf %49, %50 : vector<8x256xf32>
    %cst_32 = arith.constant dense<0.000000e+00> : vector<8x256xf32>
    %52 = tpu.matmul %8, %38, %cst_32 {dimension_numbers = #tpu.dot_dimension_numbers<[1], [0], [0], [1], [0, 0, 1, 1], [], []>} : vector<8x32xbf16>, vector<32x256xbf16>, vector<8x256xf32> -> vector<8x256xf32>
    %c1_i32 = arith.constant 1 : i32
    %53 = tpu.dynamic_rotate %52 by %c1_i32 dim 1 : vector<8x256xf32>, i32 -> vector<8x256xf32>
    %cst_33 = arith.constant dense<0.000000e+00> : vector<8x256xf32>
    %54 = tpu.matmul %9, %35, %cst_33 {dimension_numbers = #tpu.dot_dimension_numbers<[1], [0], [0], [1], [0, 0, 1, 1], [], []>} : vector<8x32xbf16>, vector<32x256xbf16>, vector<8x256xf32> -> vector<8x256xf32>
    %55 = arith.addf %53, %54 : vector<8x256xf32>
    %cst_34 = arith.constant dense<0.000000e+00> : vector<8x256xf32>
    %56 = tpu.matmul %10, %41, %cst_34 {dimension_numbers = #tpu.dot_dimension_numbers<[1], [0], [0], [1], [0, 0, 1, 1], [], []>} : vector<8x32xbf16>, vector<32x256xbf16>, vector<8x256xf32> -> vector<8x256xf32>
    %c255_i32 = arith.constant 255 : i32
    %57 = tpu.dynamic_rotate %56 by %c255_i32 dim 1 : vector<8x256xf32>, i32 -> vector<8x256xf32>
    %58 = arith.addf %55, %57 : vector<8x256xf32>
    %59 = arith.addf %51, %58 : vector<8x256xf32>
    %cst_35 = arith.constant dense<0.000000e+00> : vector<8x256xf32>
    %60 = tpu.matmul %11, %38, %cst_35 {dimension_numbers = #tpu.dot_dimension_numbers<[1], [0], [0], [1], [0, 0, 1, 1], [], []>} : vector<8x32xbf16>, vector<32x256xbf16>, vector<8x256xf32> -> vector<8x256xf32>
    %c241_i32 = arith.constant 241 : i32
    %61 = tpu.dynamic_rotate %60 by %c241_i32 dim 1 : vector<8x256xf32>, i32 -> vector<8x256xf32>
    %cst_36 = arith.constant dense<0.000000e+00> : vector<8x256xf32>
    %62 = tpu.matmul %12, %35, %cst_36 {dimension_numbers = #tpu.dot_dimension_numbers<[1], [0], [0], [1], [0, 0, 1, 1], [], []>} : vector<8x32xbf16>, vector<32x256xbf16>, vector<8x256xf32> -> vector<8x256xf32>
    %c240_i32 = arith.constant 240 : i32
    %63 = tpu.dynamic_rotate %62 by %c240_i32 dim 1 : vector<8x256xf32>, i32 -> vector<8x256xf32>
    %64 = arith.addf %61, %63 : vector<8x256xf32>
    %cst_37 = arith.constant dense<0.000000e+00> : vector<8x256xf32>
    %65 = tpu.matmul %13, %41, %cst_37 {dimension_numbers = #tpu.dot_dimension_numbers<[1], [0], [0], [1], [0, 0, 1, 1], [], []>} : vector<8x32xbf16>, vector<32x256xbf16>, vector<8x256xf32> -> vector<8x256xf32>
    %c239_i32 = arith.constant 239 : i32
    %66 = tpu.dynamic_rotate %65 by %c239_i32 dim 1 : vector<8x256xf32>, i32 -> vector<8x256xf32>
    %67 = arith.addf %64, %66 : vector<8x256xf32>
    %68 = vector.broadcast %17 : vector<1x256xf32> to vector<8x256xf32>
    %69 = arith.mulf %67, %68 : vector<8x256xf32>
    %70 = arith.addf %59, %69 : vector<8x256xf32>
    %c0_38 = arith.constant 0 : index
    %c0_39 = arith.constant 0 : index
    %c0_40 = arith.constant 0 : index
    %71 = vector.load %arg9[%c0_38, %c0_39, %c0_40] : memref<4x8x256xf32, #tpu.memory_space<vmem>>, vector<1x8x256xf32>
    %72 = vector.shape_cast %71 : vector<1x8x256xf32> to vector<8x256xf32>
    %73 = vector.shape_cast %70 : vector<8x256xf32> to vector<1x8x256xf32>
    tpu.vector_store %arg9[%c0_38, %c0_39, %c0_40], %73 {strides = array<i32>} : memref<4x8x256xf32, #tpu.memory_space<vmem>>, vector<1x8x256xf32>,
    %c1_41 = arith.constant 1 : index
    %c0_42 = arith.constant 0 : index
    %c0_43 = arith.constant 0 : index
    %74 = vector.load %arg1[%c1_41, %c0_42, %c0_43] : memref<4x16x256xbf16, #tpu.memory_space<vmem>>, vector<1x16x256xbf16>
    %75 = vector.shape_cast %74 : vector<1x16x256xbf16> to vector<16x256xbf16>
    %76 = arith.extf %75 : vector<16x256xbf16> to vector<16x256xf32>
    %77 = vector.broadcast %0 : vector<16x1xf32> to vector<16x256xf32>
    %78 = arith.mulf %76, %77 : vector<16x256xf32>
    %79 = vector.broadcast %1 : vector<16x1xf32> to vector<16x256xf32>
    %80 = arith.addf %78, %79 : vector<16x256xf32>
    %cst_44 = arith.constant 0.000000e+00 : f32
    %81 = vector.broadcast %cst_44 : f32 to vector<16x256xf32>
    %82 = arith.maximumf %80, %81 : vector<16x256xf32>
    %83 = arith.truncf %82 : vector<16x256xf32> to vector<16x256xbf16>
    %cst_45 = arith.constant dense<0.000000e+00> : vector<32x256xf32>
    %84 = tpu.matmul %4, %83, %cst_45 {dimension_numbers = #tpu.dot_dimension_numbers<[1], [0], [0], [1], [0, 0, 1, 1], [], []>} : vector<32x16xbf16>, vector<16x256xbf16>, vector<32x256xf32> -> vector<32x256xf32>
    %85 = vector.broadcast %2 : vector<32x1xf32> to vector<32x256xf32>
    %86 = arith.mulf %84, %85 : vector<32x256xf32>
    %87 = vector.broadcast %3 : vector<32x1xf32> to vector<32x256xf32>
    %88 = arith.addf %86, %87 : vector<32x256xf32>
    %cst_46 = arith.constant 0.000000e+00 : f32
    %89 = vector.broadcast %cst_46 : f32 to vector<32x256xf32>
    %90 = arith.maximumf %88, %89 : vector<32x256xf32>
    %91 = arith.truncf %90 : vector<32x256xf32> to vector<32x256xbf16>
    %92 = vector.broadcast %14 : vector<1x256xf32> to vector<32x256xf32>
    %93 = arith.mulf %90, %92 : vector<32x256xf32>
    %94 = arith.truncf %93 : vector<32x256xf32> to vector<32x256xbf16>
    %95 = vector.broadcast %15 : vector<1x256xf32> to vector<32x256xf32>
    %96 = arith.mulf %90, %95 : vector<32x256xf32>
    %97 = arith.truncf %96 : vector<32x256xf32> to vector<32x256xbf16>
    %cst_47 = arith.constant dense<0.000000e+00> : vector<8x256xf32>
    %98 = tpu.matmul %5, %94, %cst_47 {dimension_numbers = #tpu.dot_dimension_numbers<[1], [0], [0], [1], [0, 0, 1, 1], [], []>} : vector<8x32xbf16>, vector<32x256xbf16>, vector<8x256xf32> -> vector<8x256xf32>
    %c17_i32_48 = arith.constant 17 : i32
    %99 = tpu.dynamic_rotate %98 by %c17_i32_48 dim 1 : vector<8x256xf32>, i32 -> vector<8x256xf32>
    %cst_49 = arith.constant dense<0.000000e+00> : vector<8x256xf32>
    %100 = tpu.matmul %6, %91, %cst_49 {dimension_numbers = #tpu.dot_dimension_numbers<[1], [0], [0], [1], [0, 0, 1, 1], [], []>} : vector<8x32xbf16>, vector<32x256xbf16>, vector<8x256xf32> -> vector<8x256xf32>
    %c16_i32_50 = arith.constant 16 : i32
    %101 = tpu.dynamic_rotate %100 by %c16_i32_50 dim 1 : vector<8x256xf32>, i32 -> vector<8x256xf32>
    %102 = arith.addf %99, %101 : vector<8x256xf32>
    %cst_51 = arith.constant dense<0.000000e+00> : vector<8x256xf32>
    %103 = tpu.matmul %7, %97, %cst_51 {dimension_numbers = #tpu.dot_dimension_numbers<[1], [0], [0], [1], [0, 0, 1, 1], [], []>} : vector<8x32xbf16>, vector<32x256xbf16>, vector<8x256xf32> -> vector<8x256xf32>
    %c15_i32_52 = arith.constant 15 : i32
    %104 = tpu.dynamic_rotate %103 by %c15_i32_52 dim 1 : vector<8x256xf32>, i32 -> vector<8x256xf32>
    %105 = arith.addf %102, %104 : vector<8x256xf32>
    %106 = vector.broadcast %16 : vector<1x256xf32> to vector<8x256xf32>
    %107 = arith.mulf %105, %106 : vector<8x256xf32>
    %cst_53 = arith.constant dense<0.000000e+00> : vector<8x256xf32>
    %108 = tpu.matmul %8, %94, %cst_53 {dimension_numbers = #tpu.dot_dimension_numbers<[1], [0], [0], [1], [0, 0, 1, 1], [], []>} : vector<8x32xbf16>, vector<32x256xbf16>, vector<8x256xf32> -> vector<8x256xf32>
    %c1_i32_54 = arith.constant 1 : i32
    %109 = tpu.dynamic_rotate %108 by %c1_i32_54 dim 1 : vector<8x256xf32>, i32 -> vector<8x256xf32>
    %cst_55 = arith.constant dense<0.000000e+00> : vector<8x256xf32>
    %110 = tpu.matmul %9, %91, %cst_55 {dimension_numbers = #tpu.dot_dimension_numbers<[1], [0], [0], [1], [0, 0, 1, 1], [], []>} : vector<8x32xbf16>, vector<32x256xbf16>, vector<8x256xf32> -> vector<8x256xf32>
    %111 = arith.addf %109, %110 : vector<8x256xf32>
    %cst_56 = arith.constant dense<0.000000e+00> : vector<8x256xf32>
    %112 = tpu.matmul %10, %97, %cst_56 {dimension_numbers = #tpu.dot_dimension_numbers<[1], [0], [0], [1], [0, 0, 1, 1], [], []>} : vector<8x32xbf16>, vector<32x256xbf16>, vector<8x256xf32> -> vector<8x256xf32>
    %c255_i32_57 = arith.constant 255 : i32
    %113 = tpu.dynamic_rotate %112 by %c255_i32_57 dim 1 : vector<8x256xf32>, i32 -> vector<8x256xf32>
    %114 = arith.addf %111, %113 : vector<8x256xf32>
    %115 = arith.addf %107, %114 : vector<8x256xf32>
    %cst_58 = arith.constant dense<0.000000e+00> : vector<8x256xf32>
    %116 = tpu.matmul %11, %94, %cst_58 {dimension_numbers = #tpu.dot_dimension_numbers<[1], [0], [0], [1], [0, 0, 1, 1], [], []>} : vector<8x32xbf16>, vector<32x256xbf16>, vector<8x256xf32> -> vector<8x256xf32>
    %c241_i32_59 = arith.constant 241 : i32
    %117 = tpu.dynamic_rotate %116 by %c241_i32_59 dim 1 : vector<8x256xf32>, i32 -> vector<8x256xf32>
    %cst_60 = arith.constant dense<0.000000e+00> : vector<8x256xf32>
    %118 = tpu.matmul %12, %91, %cst_60 {dimension_numbers = #tpu.dot_dimension_numbers<[1], [0], [0], [1], [0, 0, 1, 1], [], []>} : vector<8x32xbf16>, vector<32x256xbf16>, vector<8x256xf32> -> vector<8x256xf32>
    %c240_i32_61 = arith.constant 240 : i32
    %119 = tpu.dynamic_rotate %118 by %c240_i32_61 dim 1 : vector<8x256xf32>, i32 -> vector<8x256xf32>
    %120 = arith.addf %117, %119 : vector<8x256xf32>
    %cst_62 = arith.constant dense<0.000000e+00> : vector<8x256xf32>
    %121 = tpu.matmul %13, %97, %cst_62 {dimension_numbers = #tpu.dot_dimension_numbers<[1], [0], [0], [1], [0, 0, 1, 1], [], []>} : vector<8x32xbf16>, vector<32x256xbf16>, vector<8x256xf32> -> vector<8x256xf32>
    %c239_i32_63 = arith.constant 239 : i32
    %122 = tpu.dynamic_rotate %121 by %c239_i32_63 dim 1 : vector<8x256xf32>, i32 -> vector<8x256xf32>
    %123 = arith.addf %120, %122 : vector<8x256xf32>
    %124 = vector.broadcast %17 : vector<1x256xf32> to vector<8x256xf32>
    %125 = arith.mulf %123, %124 : vector<8x256xf32>
    %126 = arith.addf %115, %125 : vector<8x256xf32>
    %c1_64 = arith.constant 1 : index
    %c0_65 = arith.constant 0 : index
    %c0_66 = arith.constant 0 : index
    %127 = vector.load %arg9[%c1_64, %c0_65, %c0_66] : memref<4x8x256xf32, #tpu.memory_space<vmem>>, vector<1x8x256xf32>
    %128 = vector.shape_cast %127 : vector<1x8x256xf32> to vector<8x256xf32>
    %129 = vector.shape_cast %126 : vector<8x256xf32> to vector<1x8x256xf32>
    tpu.vector_store %arg9[%c1_64, %c0_65, %c0_66], %129 {strides = array<i32>} : memref<4x8x256xf32, #tpu.memory_space<vmem>>, vector<1x8x256xf32>,
    %c2_67 = arith.constant 2 : index
    %c0_68 = arith.constant 0 : index
    %c0_69 = arith.constant 0 : index
    %130 = vector.load %arg1[%c2_67, %c0_68, %c0_69] : memref<4x16x256xbf16, #tpu.memory_space<vmem>>, vector<1x16x256xbf16>
    %131 = vector.shape_cast %130 : vector<1x16x256xbf16> to vector<16x256xbf16>
    %132 = arith.extf %131 : vector<16x256xbf16> to vector<16x256xf32>
    %133 = vector.broadcast %0 : vector<16x1xf32> to vector<16x256xf32>
    %134 = arith.mulf %132, %133 : vector<16x256xf32>
    %135 = vector.broadcast %1 : vector<16x1xf32> to vector<16x256xf32>
    %136 = arith.addf %134, %135 : vector<16x256xf32>
    %cst_70 = arith.constant 0.000000e+00 : f32
    %137 = vector.broadcast %cst_70 : f32 to vector<16x256xf32>
    %138 = arith.maximumf %136, %137 : vector<16x256xf32>
    %139 = arith.truncf %138 : vector<16x256xf32> to vector<16x256xbf16>
    %cst_71 = arith.constant dense<0.000000e+00> : vector<32x256xf32>
    %140 = tpu.matmul %4, %139, %cst_71 {dimension_numbers = #tpu.dot_dimension_numbers<[1], [0], [0], [1], [0, 0, 1, 1], [], []>} : vector<32x16xbf16>, vector<16x256xbf16>, vector<32x256xf32> -> vector<32x256xf32>
    %141 = vector.broadcast %2 : vector<32x1xf32> to vector<32x256xf32>
    %142 = arith.mulf %140, %141 : vector<32x256xf32>
    %143 = vector.broadcast %3 : vector<32x1xf32> to vector<32x256xf32>
    %144 = arith.addf %142, %143 : vector<32x256xf32>
    %cst_72 = arith.constant 0.000000e+00 : f32
    %145 = vector.broadcast %cst_72 : f32 to vector<32x256xf32>
    %146 = arith.maximumf %144, %145 : vector<32x256xf32>
    %147 = arith.truncf %146 : vector<32x256xf32> to vector<32x256xbf16>
    %148 = vector.broadcast %14 : vector<1x256xf32> to vector<32x256xf32>
    %149 = arith.mulf %146, %148 : vector<32x256xf32>
    %150 = arith.truncf %149 : vector<32x256xf32> to vector<32x256xbf16>
    %151 = vector.broadcast %15 : vector<1x256xf32> to vector<32x256xf32>
    %152 = arith.mulf %146, %151 : vector<32x256xf32>
    %153 = arith.truncf %152 : vector<32x256xf32> to vector<32x256xbf16>
    %cst_73 = arith.constant dense<0.000000e+00> : vector<8x256xf32>
    %154 = tpu.matmul %5, %150, %cst_73 {dimension_numbers = #tpu.dot_dimension_numbers<[1], [0], [0], [1], [0, 0, 1, 1], [], []>} : vector<8x32xbf16>, vector<32x256xbf16>, vector<8x256xf32> -> vector<8x256xf32>
    %c17_i32_74 = arith.constant 17 : i32
    %155 = tpu.dynamic_rotate %154 by %c17_i32_74 dim 1 : vector<8x256xf32>, i32 -> vector<8x256xf32>
    %cst_75 = arith.constant dense<0.000000e+00> : vector<8x256xf32>
    %156 = tpu.matmul %6, %147, %cst_75 {dimension_numbers = #tpu.dot_dimension_numbers<[1], [0], [0], [1], [0, 0, 1, 1], [], []>} : vector<8x32xbf16>, vector<32x256xbf16>, vector<8x256xf32> -> vector<8x256xf32>
    %c16_i32_76 = arith.constant 16 : i32
    %157 = tpu.dynamic_rotate %156 by %c16_i32_76 dim 1 : vector<8x256xf32>, i32 -> vector<8x256xf32>
    %158 = arith.addf %155, %157 : vector<8x256xf32>
    %cst_77 = arith.constant dense<0.000000e+00> : vector<8x256xf32>
    %159 = tpu.matmul %7, %153, %cst_77 {dimension_numbers = #tpu.dot_dimension_numbers<[1], [0], [0], [1], [0, 0, 1, 1], [], []>} : vector<8x32xbf16>, vector<32x256xbf16>, vector<8x256xf32> -> vector<8x256xf32>
    %c15_i32_78 = arith.constant 15 : i32
    %160 = tpu.dynamic_rotate %159 by %c15_i32_78 dim 1 : vector<8x256xf32>, i32 -> vector<8x256xf32>
    %161 = arith.addf %158, %160 : vector<8x256xf32>
    %162 = vector.broadcast %16 : vector<1x256xf32> to vector<8x256xf32>
    %163 = arith.mulf %161, %162 : vector<8x256xf32>
    %cst_79 = arith.constant dense<0.000000e+00> : vector<8x256xf32>
    %164 = tpu.matmul %8, %150, %cst_79 {dimension_numbers = #tpu.dot_dimension_numbers<[1], [0], [0], [1], [0, 0, 1, 1], [], []>} : vector<8x32xbf16>, vector<32x256xbf16>, vector<8x256xf32> -> vector<8x256xf32>
    %c1_i32_80 = arith.constant 1 : i32
    %165 = tpu.dynamic_rotate %164 by %c1_i32_80 dim 1 : vector<8x256xf32>, i32 -> vector<8x256xf32>
    %cst_81 = arith.constant dense<0.000000e+00> : vector<8x256xf32>
    %166 = tpu.matmul %9, %147, %cst_81 {dimension_numbers = #tpu.dot_dimension_numbers<[1], [0], [0], [1], [0, 0, 1, 1], [], []>} : vector<8x32xbf16>, vector<32x256xbf16>, vector<8x256xf32> -> vector<8x256xf32>
    %167 = arith.addf %165, %166 : vector<8x256xf32>
    %cst_82 = arith.constant dense<0.000000e+00> : vector<8x256xf32>
    %168 = tpu.matmul %10, %153, %cst_82 {dimension_numbers = #tpu.dot_dimension_numbers<[1], [0], [0], [1], [0, 0, 1, 1], [], []>} : vector<8x32xbf16>, vector<32x256xbf16>, vector<8x256xf32> -> vector<8x256xf32>
    %c255_i32_83 = arith.constant 255 : i32
    %169 = tpu.dynamic_rotate %168 by %c255_i32_83 dim 1 : vector<8x256xf32>, i32 -> vector<8x256xf32>
    %170 = arith.addf %167, %169 : vector<8x256xf32>
    %171 = arith.addf %163, %170 : vector<8x256xf32>
    %cst_84 = arith.constant dense<0.000000e+00> : vector<8x256xf32>
    %172 = tpu.matmul %11, %150, %cst_84 {dimension_numbers = #tpu.dot_dimension_numbers<[1], [0], [0], [1], [0, 0, 1, 1], [], []>} : vector<8x32xbf16>, vector<32x256xbf16>, vector<8x256xf32> -> vector<8x256xf32>
    %c241_i32_85 = arith.constant 241 : i32
    %173 = tpu.dynamic_rotate %172 by %c241_i32_85 dim 1 : vector<8x256xf32>, i32 -> vector<8x256xf32>
    %cst_86 = arith.constant dense<0.000000e+00> : vector<8x256xf32>
    %174 = tpu.matmul %12, %147, %cst_86 {dimension_numbers = #tpu.dot_dimension_numbers<[1], [0], [0], [1], [0, 0, 1, 1], [], []>} : vector<8x32xbf16>, vector<32x256xbf16>, vector<8x256xf32> -> vector<8x256xf32>
    %c240_i32_87 = arith.constant 240 : i32
    %175 = tpu.dynamic_rotate %174 by %c240_i32_87 dim 1 : vector<8x256xf32>, i32 -> vector<8x256xf32>
    %176 = arith.addf %173, %175 : vector<8x256xf32>
    %cst_88 = arith.constant dense<0.000000e+00> : vector<8x256xf32>
    %177 = tpu.matmul %13, %153, %cst_88 {dimension_numbers = #tpu.dot_dimension_numbers<[1], [0], [0], [1], [0, 0, 1, 1], [], []>} : vector<8x32xbf16>, vector<32x256xbf16>, vector<8x256xf32> -> vector<8x256xf32>
    %c239_i32_89 = arith.constant 239 : i32
    %178 = tpu.dynamic_rotate %177 by %c239_i32_89 dim 1 : vector<8x256xf32>, i32 -> vector<8x256xf32>
    %179 = arith.addf %176, %178 : vector<8x256xf32>
    %180 = vector.broadcast %17 : vector<1x256xf32> to vector<8x256xf32>
    %181 = arith.mulf %179, %180 : vector<8x256xf32>
    %182 = arith.addf %171, %181 : vector<8x256xf32>
    %c2_90 = arith.constant 2 : index
    %c0_91 = arith.constant 0 : index
    %c0_92 = arith.constant 0 : index
    %183 = vector.load %arg9[%c2_90, %c0_91, %c0_92] : memref<4x8x256xf32, #tpu.memory_space<vmem>>, vector<1x8x256xf32>
    %184 = vector.shape_cast %183 : vector<1x8x256xf32> to vector<8x256xf32>
    %185 = vector.shape_cast %182 : vector<8x256xf32> to vector<1x8x256xf32>
    tpu.vector_store %arg9[%c2_90, %c0_91, %c0_92], %185 {strides = array<i32>} : memref<4x8x256xf32, #tpu.memory_space<vmem>>, vector<1x8x256xf32>,
    %c3_93 = arith.constant 3 : index
    %c0_94 = arith.constant 0 : index
    %c0_95 = arith.constant 0 : index
    %186 = vector.load %arg1[%c3_93, %c0_94, %c0_95] : memref<4x16x256xbf16, #tpu.memory_space<vmem>>, vector<1x16x256xbf16>
    %187 = vector.shape_cast %186 : vector<1x16x256xbf16> to vector<16x256xbf16>
    %188 = arith.extf %187 : vector<16x256xbf16> to vector<16x256xf32>
    %189 = vector.broadcast %0 : vector<16x1xf32> to vector<16x256xf32>
    %190 = arith.mulf %188, %189 : vector<16x256xf32>
    %191 = vector.broadcast %1 : vector<16x1xf32> to vector<16x256xf32>
    %192 = arith.addf %190, %191 : vector<16x256xf32>
    %cst_96 = arith.constant 0.000000e+00 : f32
    %193 = vector.broadcast %cst_96 : f32 to vector<16x256xf32>
    %194 = arith.maximumf %192, %193 : vector<16x256xf32>
    %195 = arith.truncf %194 : vector<16x256xf32> to vector<16x256xbf16>
    %cst_97 = arith.constant dense<0.000000e+00> : vector<32x256xf32>
    %196 = tpu.matmul %4, %195, %cst_97 {dimension_numbers = #tpu.dot_dimension_numbers<[1], [0], [0], [1], [0, 0, 1, 1], [], []>} : vector<32x16xbf16>, vector<16x256xbf16>, vector<32x256xf32> -> vector<32x256xf32>
    %197 = vector.broadcast %2 : vector<32x1xf32> to vector<32x256xf32>
    %198 = arith.mulf %196, %197 : vector<32x256xf32>
    %199 = vector.broadcast %3 : vector<32x1xf32> to vector<32x256xf32>
    %200 = arith.addf %198, %199 : vector<32x256xf32>
    %cst_98 = arith.constant 0.000000e+00 : f32
    %201 = vector.broadcast %cst_98 : f32 to vector<32x256xf32>
    %202 = arith.maximumf %200, %201 : vector<32x256xf32>
    %203 = arith.truncf %202 : vector<32x256xf32> to vector<32x256xbf16>
    %204 = vector.broadcast %14 : vector<1x256xf32> to vector<32x256xf32>
    %205 = arith.mulf %202, %204 : vector<32x256xf32>
    %206 = arith.truncf %205 : vector<32x256xf32> to vector<32x256xbf16>
    %207 = vector.broadcast %15 : vector<1x256xf32> to vector<32x256xf32>
    %208 = arith.mulf %202, %207 : vector<32x256xf32>
    %209 = arith.truncf %208 : vector<32x256xf32> to vector<32x256xbf16>
    %cst_99 = arith.constant dense<0.000000e+00> : vector<8x256xf32>
    %210 = tpu.matmul %5, %206, %cst_99 {dimension_numbers = #tpu.dot_dimension_numbers<[1], [0], [0], [1], [0, 0, 1, 1], [], []>} : vector<8x32xbf16>, vector<32x256xbf16>, vector<8x256xf32> -> vector<8x256xf32>
    %c17_i32_100 = arith.constant 17 : i32
    %211 = tpu.dynamic_rotate %210 by %c17_i32_100 dim 1 : vector<8x256xf32>, i32 -> vector<8x256xf32>
    %cst_101 = arith.constant dense<0.000000e+00> : vector<8x256xf32>
    %212 = tpu.matmul %6, %203, %cst_101 {dimension_numbers = #tpu.dot_dimension_numbers<[1], [0], [0], [1], [0, 0, 1, 1], [], []>} : vector<8x32xbf16>, vector<32x256xbf16>, vector<8x256xf32> -> vector<8x256xf32>
    %c16_i32_102 = arith.constant 16 : i32
    %213 = tpu.dynamic_rotate %212 by %c16_i32_102 dim 1 : vector<8x256xf32>, i32 -> vector<8x256xf32>
    %214 = arith.addf %211, %213 : vector<8x256xf32>
    %cst_103 = arith.constant dense<0.000000e+00> : vector<8x256xf32>
    %215 = tpu.matmul %7, %209, %cst_103 {dimension_numbers = #tpu.dot_dimension_numbers<[1], [0], [0], [1], [0, 0, 1, 1], [], []>} : vector<8x32xbf16>, vector<32x256xbf16>, vector<8x256xf32> -> vector<8x256xf32>
    %c15_i32_104 = arith.constant 15 : i32
    %216 = tpu.dynamic_rotate %215 by %c15_i32_104 dim 1 : vector<8x256xf32>, i32 -> vector<8x256xf32>
    %217 = arith.addf %214, %216 : vector<8x256xf32>
    %218 = vector.broadcast %16 : vector<1x256xf32> to vector<8x256xf32>
    %219 = arith.mulf %217, %218 : vector<8x256xf32>
    %cst_105 = arith.constant dense<0.000000e+00> : vector<8x256xf32>
    %220 = tpu.matmul %8, %206, %cst_105 {dimension_numbers = #tpu.dot_dimension_numbers<[1], [0], [0], [1], [0, 0, 1, 1], [], []>} : vector<8x32xbf16>, vector<32x256xbf16>, vector<8x256xf32> -> vector<8x256xf32>
    %c1_i32_106 = arith.constant 1 : i32
    %221 = tpu.dynamic_rotate %220 by %c1_i32_106 dim 1 : vector<8x256xf32>, i32 -> vector<8x256xf32>
    %cst_107 = arith.constant dense<0.000000e+00> : vector<8x256xf32>
    %222 = tpu.matmul %9, %203, %cst_107 {dimension_numbers = #tpu.dot_dimension_numbers<[1], [0], [0], [1], [0, 0, 1, 1], [], []>} : vector<8x32xbf16>, vector<32x256xbf16>, vector<8x256xf32> -> vector<8x256xf32>
    %223 = arith.addf %221, %222 : vector<8x256xf32>
    %cst_108 = arith.constant dense<0.000000e+00> : vector<8x256xf32>
    %224 = tpu.matmul %10, %209, %cst_108 {dimension_numbers = #tpu.dot_dimension_numbers<[1], [0], [0], [1], [0, 0, 1, 1], [], []>} : vector<8x32xbf16>, vector<32x256xbf16>, vector<8x256xf32> -> vector<8x256xf32>
    %c255_i32_109 = arith.constant 255 : i32
    %225 = tpu.dynamic_rotate %224 by %c255_i32_109 dim 1 : vector<8x256xf32>, i32 -> vector<8x256xf32>
    %226 = arith.addf %223, %225 : vector<8x256xf32>
    %227 = arith.addf %219, %226 : vector<8x256xf32>
    %cst_110 = arith.constant dense<0.000000e+00> : vector<8x256xf32>
    %228 = tpu.matmul %11, %206, %cst_110 {dimension_numbers = #tpu.dot_dimension_numbers<[1], [0], [0], [1], [0, 0, 1, 1], [], []>} : vector<8x32xbf16>, vector<32x256xbf16>, vector<8x256xf32> -> vector<8x256xf32>
    %c241_i32_111 = arith.constant 241 : i32
    %229 = tpu.dynamic_rotate %228 by %c241_i32_111 dim 1 : vector<8x256xf32>, i32 -> vector<8x256xf32>
    %cst_112 = arith.constant dense<0.000000e+00> : vector<8x256xf32>
    %230 = tpu.matmul %12, %203, %cst_112 {dimension_numbers = #tpu.dot_dimension_numbers<[1], [0], [0], [1], [0, 0, 1, 1], [], []>} : vector<8x32xbf16>, vector<32x256xbf16>, vector<8x256xf32> -> vector<8x256xf32>
    %c240_i32_113 = arith.constant 240 : i32
    %231 = tpu.dynamic_rotate %230 by %c240_i32_113 dim 1 : vector<8x256xf32>, i32 -> vector<8x256xf32>
    %232 = arith.addf %229, %231 : vector<8x256xf32>
    %cst_114 = arith.constant dense<0.000000e+00> : vector<8x256xf32>
    %233 = tpu.matmul %13, %209, %cst_114 {dimension_numbers = #tpu.dot_dimension_numbers<[1], [0], [0], [1], [0, 0, 1, 1], [], []>} : vector<8x32xbf16>, vector<32x256xbf16>, vector<8x256xf32> -> vector<8x256xf32>
    %c239_i32_115 = arith.constant 239 : i32
    %234 = tpu.dynamic_rotate %233 by %c239_i32_115 dim 1 : vector<8x256xf32>, i32 -> vector<8x256xf32>
    %235 = arith.addf %232, %234 : vector<8x256xf32>
    %236 = vector.broadcast %17 : vector<1x256xf32> to vector<8x256xf32>
    %237 = arith.mulf %235, %236 : vector<8x256xf32>
    %238 = arith.addf %227, %237 : vector<8x256xf32>
    %c3_116 = arith.constant 3 : index
    %c0_117 = arith.constant 0 : index
    %c0_118 = arith.constant 0 : index
    %239 = vector.load %arg9[%c3_116, %c0_117, %c0_118] : memref<4x8x256xf32, #tpu.memory_space<vmem>>, vector<1x8x256xf32>
    %240 = vector.shape_cast %239 : vector<1x8x256xf32> to vector<8x256xf32>
    %241 = vector.shape_cast %238 : vector<8x256xf32> to vector<1x8x256xf32>
    tpu.vector_store %arg9[%c3_116, %c0_117, %c0_118], %241 {strides = array<i32>} : memref<4x8x256xf32, #tpu.memory_space<vmem>>, vector<1x8x256xf32>,
    return
  }
  func.func @transform_0(%arg0: i32) -> (i32, i32, i32) {
    %c0_i32 = arith.constant 0 : i32
    %c0_i32_0 = arith.constant 0 : i32
    %c0_i32_1 = arith.constant 0 : i32
    return %arg0, %c0_i32, %c0_i32_0 : i32, i32, i32
  }
  func.func @transform_1(%arg0: i32) -> (i32, i32) {
    %c0_i32 = arith.constant 0 : i32
    %c0_i32_0 = arith.constant 0 : i32
    %c0_i32_1 = arith.constant 0 : i32
    return %c0_i32, %c0_i32_0 : i32, i32
  }
  func.func @transform_2(%arg0: i32) -> (i32, i32) {
    %c0_i32 = arith.constant 0 : i32
    %c0_i32_0 = arith.constant 0 : i32
    %c0_i32_1 = arith.constant 0 : i32
    return %c0_i32, %c0_i32_0 : i32, i32
  }
  func.func @transform_3(%arg0: i32) -> (i32, i32) {
    %c0_i32 = arith.constant 0 : i32
    %c0_i32_0 = arith.constant 0 : i32
    %c0_i32_1 = arith.constant 0 : i32
    return %c0_i32, %c0_i32_0 : i32, i32
  }
  func.func @transform_4(%arg0: i32) -> (i32, i32) {
    %c0_i32 = arith.constant 0 : i32
    %c0_i32_0 = arith.constant 0 : i32
    %c0_i32_1 = arith.constant 0 : i32
    return %c0_i32, %c0_i32_0 : i32, i32
  }
  func.func @transform_5(%arg0: i32) -> (i32, i32) {
    %c0_i32 = arith.constant 0 : i32
    %c0_i32_0 = arith.constant 0 : i32
    %c0_i32_1 = arith.constant 0 : i32
    return %c0_i32, %c0_i32_0 : i32, i32
  }
  func.func @transform_6(%arg0: i32) -> (i32, i32) {
    %c0_i32 = arith.constant 0 : i32
    %c0_i32_0 = arith.constant 0 : i32
    %c0_i32_1 = arith.constant 0 : i32
    return %c0_i32, %c0_i32_0 : i32, i32
  }
  func.func @transform_7(%arg0: i32) -> (i32, i32) {
    %c0_i32 = arith.constant 0 : i32
    %c0_i32_0 = arith.constant 0 : i32
    %c0_i32_1 = arith.constant 0 : i32
    return %c0_i32, %c0_i32_0 : i32, i32
  }
  func.func @transform_8(%arg0: i32) -> (i32, i32, i32) {
    %c0_i32 = arith.constant 0 : i32
    %c0_i32_0 = arith.constant 0 : i32
    %c0_i32_1 = arith.constant 0 : i32
    return %arg0, %c0_i32, %c0_i32_0 : i32, i32, i32
  }
}

</mosaic_0001>

<llo_original>
// kernel: tpu_custom_call.1
$region0: #{tpu_custom_call.1}
  #allocation0 [shape = 'u32[]', space=smem, size = 0x4, offset = 0x4, fixed_abs, tag = 'smem constant byte address 0x4 - core index']
  #allocation1 [shape = 'u32[144,128]{1,0:T(1,128)}', space=vmem, size = 0x12000, scoped, tag = 'internal scratch']
  %s0 = inlined_call_operand.vmem [shape: bf16[8,16,256], index: 0, kind: input, shape index: {}]
  %s1 = inlined_call_operand.vmem [shape: f32[16,1], index: 1, kind: input, shape index: {}]
  %s2 = inlined_call_operand.vmem [shape: f32[16,1], index: 2, kind: input, shape index: {}]
  %s3 = inlined_call_operand.vmem [shape: bf16[32,16], index: 3, kind: input, shape index: {}]
  %s4 = inlined_call_operand.vmem [shape: f32[32,1], index: 4, kind: input, shape index: {}]
  %s5 = inlined_call_operand.vmem [shape: f32[32,1], index: 5, kind: input, shape index: {}]
  %s6 = inlined_call_operand.vmem [shape: bf16[72,32], index: 6, kind: input, shape index: {}]
  %s7 = inlined_call_operand.vmem [shape: f32[4,256], index: 7, kind: input, shape index: {}]
  %s8 = inlined_call_operand.hbm [shape: f32[8,8,256], index: 8, kind: output, shape index: {}]
  %s9 = sld [smem:[#allocation0]]
  $region65: #{tpu_custom_call.1} parent=0
    _
  %s11 = ssub.s32 1, %s9
  %s12 = scalar_select 0, %s11, %s9
  $region1: #{tpu_custom_call.1} parent=0
    #allocation2 [shape = 'u8[65536]{0}', space=vmem, size = 0x10000, scoped, tag = 'output window, operand 0']
    #allocation3 [shape = 's32[2]{0}', space=sflag, size = 0x8, scoped, tag = 'scoped memory for tpu_custom_call.1']
    %13 = vsyncpa [#allocation3], 0
    %s14 = scalar_lea.sflag [#allocation3], 1
    %15 = vsyncpa %s14, 0
    loop: start=0, step=1, limit=4
    $region2: #{tpu_custom_call.1} parent=1 // loop_pre_header
      _
    $region3: #{tpu_custom_call.1} parent=1 // loop_header
      %s17 = sphi 0, %s21
      %p18 = scmp.ge.s32.totalorder %s17, 4
      %s27 = sphi 0, %s29
      %s30 = sphi 0, %s27
      %s31 = sphi 0, %s30
      %s47 = sphi 0, %s31
      %s51 = sphi 0, %s51
      %s53 = sphi 0, %s51
      %s54 = sphi 0, %s53
      %s68 = sphi 0, %s54
      %s72 = sphi 0, %s72
      %s74 = sphi 0, %s72
      %s75 = sphi 0, %s74
      %s89 = sphi 0, %s75
      %s93 = sphi 0, %s93
      %s95 = sphi 0, %s93
      %s96 = sphi 0, %s95
      %s110 = sphi 0, %s96
      %s114 = sphi 0, %s114
      %s116 = sphi 0, %s114
      %s117 = sphi 0, %s116
      %s131 = sphi 0, %s117
      %s135 = sphi 0, %s135
      %s137 = sphi 0, %s135
      %s138 = sphi 0, %s137
      %s152 = sphi 0, %s138
      %s156 = sphi 0, %s156
      %s158 = sphi 0, %s156
      %s159 = sphi 0, %s158
      %s173 = sphi 0, %s159
      %s177 = sphi 0, %s177
      %s179 = sphi 0, %s177
      %s180 = sphi 0, %s179
      %s194 = sphi 0, %s180
      %s200 = sphi 0, %s202
      %s203 = sphi 0, %s200
      %s204 = sphi 0, %s203
      %s220 = sphi 0, %s204
    $region4: #{tpu_custom_call.1} parent=1 // loop_header_branch
      %20 = sbr.rel (%p18) target = $region8
    $region5: #{tpu_custom_call.1} parent=1 // loop_body
      %s22 = ssub.s32 %s17, 1
      %s23 = ssub.s32 %s17, 2
      %s24 = sadd.s32 %s17, 1
      %s25 = ssub.s32 %s17, %s24
      %p26 = scmp.eq.s32.totalorder %s25, 0
      %s28 = sadd.s32 %s27, 1
      %s29 = scalar_select %p26, %s27, %s28
      %p32 = pneg %p26
      %p33 = scmp.eq.s32.totalorder %s17, 1
      %p34 = por %p32, %p33
      %p35 = scmp.ne.s32.totalorder %s27, %s30
      %p36 = scmp.eq.s32.totalorder %s17, 0
      %p37 = por %p35, %p36
      %p38 = scmp.ne.s32.totalorder %s27, %s30
      %p39 = scmp.eq.s32.totalorder %s22, 1
      %p40 = por %p38, %p39
      %p41 = scmp.ne.s32.totalorder %s30, %s31
      %p42 = scmp.eq.s32.totalorder %s22, 0
      %p43 = por %p41, %p42
      %p44 = scmp.ne.s32.totalorder %s30, %s31
      %p45 = scmp.eq.s32.totalorder %s23, 1
      %p46 = por %p44, %p45
      %p48 = scmp.ne.s32.totalorder %s31, %s47
      %p49 = scmp.eq.s32.totalorder %s23, 0
      %p50 = por %p48, %p49
      %s52 = sadd.s32 %s51, 1
      %p55 = scmp.eq.s32.totalorder %s17, 1
      %p56 = scmp.ne.s32.totalorder %s51, %s53
      %p57 = scmp.eq.s32.totalorder %s17, 0
      %p58 = por %p56, %p57
      %p59 = scmp.ne.s32.totalorder %s51, %s53
      %p60 = scmp.eq.s32.totalorder %s22, 1
      %p61 = por %p59, %p60
      %p62 = scmp.ne.s32.totalorder %s53, %s54
      %p63 = scmp.eq.s32.totalorder %s22, 0
      %p64 = por %p62, %p63
      %p65 = scmp.ne.s32.totalorder %s53, %s54
      %p66 = scmp.eq.s32.totalorder %s23, 1
      %p67 = por %p65, %p66
      %p69 = scmp.ne.s32.totalorder %s54, %s68
      %p70 = scmp.eq.s32.totalorder %s23, 0
      %p71 = por %p69, %p70
      %s73 = sadd.s32 %s72, 1
      %p76 = scmp.eq.s32.totalorder %s17, 1
      %p77 = scmp.ne.s32.totalorder %s72, %s74
      %p78 = scmp.eq.s32.totalorder %s17, 0
      %p79 = por %p77, %p78
      %p80 = scmp.ne.s32.totalorder %s72, %s74
      %p81 = scmp.eq.s32.totalorder %s22, 1
      %p82 = por %p80, %p81
      %p83 = scmp.ne.s32.totalorder %s74, %s75
      %p84 = scmp.eq.s32.totalorder %s22, 0
      %p85 = por %p83, %p84
      %p86 = scmp.ne.s32.totalorder %s74, %s75
      %p87 = scmp.eq.s32.totalorder %s23, 1
      %p88 = por %p86, %p87
      %p90 = scmp.ne.s32.totalorder %s75, %s89
      %p91 = scmp.eq.s32.totalorder %s23, 0
      %p92 = por %p90, %p91
      %s94 = sadd.s32 %s93, 1
      %p97 = scmp.eq.s32.totalorder %s17, 1
      %p98 = scmp.ne.s32.totalorder %s93, %s95
      %p99 = scmp.eq.s32.totalorder %s17, 0
      %p100 = por %p98, %p99
      %p101 = scmp.ne.s32.totalorder %s93, %s95
      %p102 = scmp.eq.s32.totalorder %s22, 1
      %p103 = por %p101, %p102
      %p104 = scmp.ne.s32.totalorder %s95, %s96
      %p105 = scmp.eq.s32.totalorder %s22, 0
      %p106 = por %p104, %p105
      %p107 = scmp.ne.s32.totalorder %s95, %s96
      %p108 = scmp.eq.s32.totalorder %s23, 1
      %p109 = por %p107, %p108
      %p111 = scmp.ne.s32.totalorder %s96, %s110
      %p112 = scmp.eq.s32.totalorder %s23, 0
      %p113 = por %p111, %p112
      %s115 = sadd.s32 %s114, 1
      %p118 = scmp.eq.s32.totalorder %s17, 1
      %p119 = scmp.ne.s32.totalorder %s114, %s116
      %p120 = scmp.eq.s32.totalorder %s17, 0
      %p121 = por %p119, %p120
      %p122 = scmp.ne.s32.totalorder %s114, %s116
      %p123 = scmp.eq.s32.totalorder %s22, 1
      %p124 = por %p122, %p123
      %p125 = scmp.ne.s32.totalorder %s116, %s117
      %p126 = scmp.eq.s32.totalorder %s22, 0
      %p127 = por %p125, %p126
      %p128 = scmp.ne.s32.totalorder %s116, %s117
      %p129 = scmp.eq.s32.totalorder %s23, 1
      %p130 = por %p128, %p129
      %p132 = scmp.ne.s32.totalorder %s117, %s131
      %p133 = scmp.eq.s32.totalorder %s23, 0
      %p134 = por %p132, %p133
      %s136 = sadd.s32 %s135, 1
      %p139 = scmp.eq.s32.totalorder %s17, 1
      %p140 = scmp.ne.s32.totalorder %s135, %s137
      %p141 = scmp.eq.s32.totalorder %s17, 0
      %p142 = por %p140, %p141
      %p143 = scmp.ne.s32.totalorder %s135, %s137
      %p144 = scmp.eq.s32.totalorder %s22, 1
      %p145 = por %p143, %p144
      %p146 = scmp.ne.s32.totalorder %s137, %s138
      %p147 = scmp.eq.s32.totalorder %s22, 0
      %p148 = por %p146, %p147
      %p149 = scmp.ne.s32.totalorder %s137, %s138
      %p150 = scmp.eq.s32.totalorder %s23, 1
      %p151 = por %p149, %p150
      %p153 = scmp.ne.s32.totalorder %s138, %s152
      %p154 = scmp.eq.s32.totalorder %s23, 0
      %p155 = por %p153, %p154
      %s157 = sadd.s32 %s156, 1
      %p160 = scmp.eq.s32.totalorder %s17, 1
      %p161 = scmp.ne.s32.totalorder %s156, %s158
      %p162 = scmp.eq.s32.totalorder %s17, 0
      %p163 = por %p161, %p162
      %p164 = scmp.ne.s32.totalorder %s156, %s158
      %p165 = scmp.eq.s32.totalorder %s22, 1
      %p166 = por %p164, %p165
      %p167 = scmp.ne.s32.totalorder %s158, %s159
      %p168 = scmp.eq.s32.totalorder %s22, 0
      %p169 = por %p167, %p168
      %p170 = scmp.ne.s32.totalorder %s158, %s159
      %p171 = scmp.eq.s32.totalorder %s23, 1
      %p172 = por %p170, %p171
      %p174 = scmp.ne.s32.totalorder %s159, %s173
      %p175 = scmp.eq.s32.totalorder %s23, 0
      %p176 = por %p174, %p175
      %s178 = sadd.s32 %s177, 1
      %p181 = scmp.eq.s32.totalorder %s17, 1
      %p182 = scmp.ne.s32.totalorder %s177, %s179
      %p183 = scmp.eq.s32.totalorder %s17, 0
      %p184 = por %p182, %p183
      %p185 = scmp.ne.s32.totalorder %s177, %s179
      %p186 = scmp.eq.s32.totalorder %s22, 1
      %p187 = por %p185, %p186
      %p188 = scmp.ne.s32.totalorder %s179, %s180
      %p189 = scmp.eq.s32.totalorder %s22, 0
      %p190 = por %p188, %p189
      %p191 = scmp.ne.s32.totalorder %s179, %s180
      %p192 = scmp.eq.s32.totalorder %s23, 1
      %p193 = por %p191, %p192
      %p195 = scmp.ne.s32.totalorder %s180, %s194
      %p196 = scmp.eq.s32.totalorder %s23, 0
      %p197 = por %p195, %p196
      %s198 = ssub.s32 %s17, %s24
      %p199 = scmp.eq.s32.totalorder %s198, 0
      %s201 = sadd.s32 %s200, 1
      %s202 = scalar_select %p199, %s200, %s201
      %p205 = pneg %p199
      %p206 = scmp.eq.s32.totalorder %s17, 1
      %p207 = por %p205, %p206
      %p208 = scmp.ne.s32.totalorder %s200, %s203
      %p209 = scmp.eq.s32.totalorder %s17, 0
      %p210 = por %p208, %p209
      %p211 = scmp.ne.s32.totalorder %s200, %s203
      %p212 = scmp.eq.s32.totalorder %s22, 1
      %p213 = por %p211, %p212
      %p214 = scmp.ne.s32.totalorder %s203, %s204
      %p215 = scmp.eq.s32.totalorder %s22, 0
      %p216 = por %p214, %p215
      %p217 = scmp.ne.s32.totalorder %s203, %s204
      %p218 = scmp.eq.s32.totalorder %s23, 1
      %p219 = por %p217, %p218
      %p221 = scmp.ne.s32.totalorder %s204, %s220
      %p222 = scmp.eq.s32.totalorder %s23, 0
      %p223 = por %p221, %p222
      %p224 = scmp.le.s32.totalorder 1, %s17
      %p225 = scmp.lt.s32.totalorder %s17, 3
      %p226 = pnand %p224, %p225
      %p227 = pneg %p226
      // Predicated region
      $region9: #{tpu_custom_call.1} parent=5 // pred_check
        _
      $region10: #{tpu_custom_call.1} parent=5 // pred_check_branch
        %229 = sbr.rel (%p226) target = $region12
      $region11: #{tpu_custom_call.1} parent=5 // pred_region
        %s230 = ssub.s32 %s17, 1
        // Predicated region
        $region13: #{tpu_custom_call.1} parent=11 // pred_check
          %p231 = pneg %p64
        $region14: #{tpu_custom_call.1} parent=11 // pred_check_branch
          %233 = sbr.rel (%p231) target = $region16
        $region15: #{tpu_custom_call.1} parent=11 // pred_region
          _
        $region16: #{tpu_custom_call.1} parent=11 // pred_fallthru
          _
        // Predicated region
        $region17: #{tpu_custom_call.1} parent=11 // pred_check
          %p234 = pneg %p85
        $region18: #{tpu_custom_call.1} parent=11 // pred_check_branch
          %236 = sbr.rel (%p234) target = $region20
        $region19: #{tpu_custom_call.1} parent=11 // pred_region
          _
        $region20: #{tpu_custom_call.1} parent=11 // pred_fallthru
          _
        // Predicated region
        $region21: #{tpu_custom_call.1} parent=11 // pred_check
          %p237 = pneg %p106
        $region22: #{tpu_custom_call.1} parent=11 // pred_check_branch
          %239 = sbr.rel (%p237) target = $region24
        $region23: #{tpu_custom_call.1} parent=11 // pred_region
          _
        $region24: #{tpu_custom_call.1} parent=11 // pred_fallthru
          _
        // Predicated region
        $region25: #{tpu_custom_call.1} parent=11 // pred_check
          %p240 = pneg %p127
        $region26: #{tpu_custom_call.1} parent=11 // pred_check_branch
          %242 = sbr.rel (%p240) target = $region28
        $region27: #{tpu_custom_call.1} parent=11 // pred_region
          _
        $region28: #{tpu_custom_call.1} parent=11 // pred_fallthru
          _
        // Predicated region
        $region29: #{tpu_custom_call.1} parent=11 // pred_check
          %p243 = pneg %p148
        $region30: #{tpu_custom_call.1} parent=11 // pred_check_branch
          %245 = sbr.rel (%p243) target = $region32
        $region31: #{tpu_custom_call.1} parent=11 // pred_region
          _
        $region32: #{tpu_custom_call.1} parent=11 // pred_fallthru
          _
        // Predicated region
        $region33: #{tpu_custom_call.1} parent=11 // pred_check
          %p246 = pneg %p169
        $region34: #{tpu_custom_call.1} parent=11 // pred_check_branch
          %248 = sbr.rel (%p246) target = $region36
        $region35: #{tpu_custom_call.1} parent=11 // pred_region
          _
        $region36: #{tpu_custom_call.1} parent=11 // pred_fallthru
          _
        // Predicated region
        $region37: #{tpu_custom_call.1} parent=11 // pred_check
          %p249 = pneg %p190
        $region38: #{tpu_custom_call.1} parent=11 // pred_check_branch
          %251 = sbr.rel (%p249) target = $region40
        $region39: #{tpu_custom_call.1} parent=11 // pred_region
          _
        $region40: #{tpu_custom_call.1} parent=11 // pred_fallthru
          _
      $region12: #{tpu_custom_call.1} parent=5 // pred_fallthru
        _
      %p252 = scmp.lt.s32.totalorder %s17, 2
      // Predicated region
      $region41: #{tpu_custom_call.1} parent=5 // pred_check
        %p253 = pneg %p252
      $region42: #{tpu_custom_call.1} parent=5 // pred_check_branch
        %255 = sbr.rel (%p253) target = $region44
      $region43: #{tpu_custom_call.1} parent=5 // pred_region
        // Predicated region
        $region45: #{tpu_custom_call.1} parent=43 // pred_check
          %p256 = pneg %p37
        $region46: #{tpu_custom_call.1} parent=43 // pred_check_branch
          %258 = sbr.rel (%p256) target = $region48
        $region47: #{tpu_custom_call.1} parent=43 // pred_region
          %s259 = smul.u32 4, %s17
          %p260 = scmp.lt.s32.totalorder %s259, 7
          %s261 = scalar_select %p260, %s259, 7
          %s262 = smul.addr %s261, 4
          %s263 = smul.addr %s262, 4
          %s264 = scalar_lea.vmem %s0, %s263
          %s265 = smul.u32 4, %s17
        $region48: #{tpu_custom_call.1} parent=43 // pred_fallthru
          _
      $region44: #{tpu_custom_call.1} parent=5 // pred_fallthru
        _
      %p266 = scmp.le.s32.totalorder 1, %s17
      %p267 = scmp.lt.s32.totalorder %s17, 3
      %p268 = pnand %p266, %p267
      %p269 = pneg %p268
      // Predicated region
      $region49: #{tpu_custom_call.1} parent=5 // pred_check
        _
      $region50: #{tpu_custom_call.1} parent=5 // pred_check_branch
        %271 = sbr.rel (%p268) target = $region52
      $region51: #{tpu_custom_call.1} parent=5 // pred_region
        %s272 = ssub.s32 %s17, 1
        %s273 = smul.u32 4, %s22
        %p274 = scmp.lt.s32.totalorder %s273, 7
        %s275 = scalar_select %p274, %s273, 7
        %s276 = smul.addr %s275, 4
        %s277 = smul.addr %s276, 4
        %s278 = scalar_lea.vmem %s0, %s277
        %p279 = pneg %p43
        %p280 = pneg %p40
        %p281 = pneg %p64
        %p282 = pneg %p61
        %p283 = pneg %p85
        %p284 = pneg %p82
        %p285 = pneg %p106
        %p286 = pneg %p103
        %p287 = pneg %p127
        %p288 = pneg %p124
        %p289 = pneg %p148
        %p290 = pneg %p145
        %p291 = pneg %p169
        %p292 = pneg %p166
        %p293 = pneg %p190
        %p294 = pneg %p187
        %p295 = pneg %p216
        %p296 = pneg %p213
        %s297 = sand.u32 %s203, 1
        %s298 = scalar_lea.sflag [#allocation3], %s297
        %s299 = sand.u32 %s203, 1
        %s300 = smul.addr %s299, 64
        %s301 = scalar_lea.vmem [#allocation2], %s300
        %s302 = smul.u32 4, %s22
        %p303 = scmp.lt.s32.totalorder %s302, 7
        %s304 = scalar_select %p303, %s302, 7
        %s305 = smul.addr %s304, 4
        %s306 = smul.addr %s305, 4
        %s307 = scalar_lea.vmem %s0, %s306
        %s308 = smul.u32 4, %s22
        %s309 = smul.u32 4, %s22
        %v311 = vld [vmem:[%s1] sm:$0xff]
        %v312 = vld [vmem:[%s1 + $0x8] sm:$0xff]
        %v313 = vld [vmem:[%s2] sm:$0xff]
        %v314 = vld [vmem:[%s2 + $0x8] sm:$0xff]
        %v315 = vld [vmem:[%s4] sm:$0xff]
        %v316 = vld [vmem:[%s4 + $0x8] sm:$0xff]
        %v317 = vld [vmem:[%s4 + $0x10] sm:$0xff]
        %v318 = vld [vmem:[%s4 + $0x18] sm:$0xff]
        %v319 = vld [vmem:[%s5] sm:$0xff]
        %v320 = vld [vmem:[%s5 + $0x8] sm:$0xff]
        %v321 = vld [vmem:[%s5 + $0x10] sm:$0xff]
        %v322 = vld [vmem:[%s5 + $0x18] sm:$0xff]
        %v323 = vld [vmem:[%s3] sm:$0xf]
        %v324 = vld [vmem:[%s3 + $0x4] sm:$0xf]
        %v325 = vld [vmem:[%s3 + $0x8] sm:$0xf]
        %v326 = vld [vmem:[%s3 + $0xc] sm:$0xf]
        %v327 = vld [vmem:[%s6] sm:$0xf]
        %v328 = vld [vmem:[%s6 + $0x4] sm:$0xf]
        %v329 = vld [vmem:[%s6 + $0x8] sm:$0xf]
        %v330 = vld [vmem:[%s6 + $0xc] sm:$0xf]
        %v331 = vld [vmem:[%s6 + $0x10] sm:$0xf]
        %v332 = vld [vmem:[%s6 + $0x14] sm:$0xf]
        %v333 = vld [vmem:[%s6 + $0x18] sm:$0xf]
        %v334 = vld [vmem:[%s6 + $0x1c] sm:$0xf]
        %v335 = vld [vmem:[%s6 + $0x20] sm:$0xf]
        %v336 = vld [vmem:[%s7] ss:$4 sm:$0x3]
        %s337 = scalar_lea.vmem %s7, 1
        %v338 = vld [vmem:[%s337] ss:$4 sm:$0x3]
        %s339 = scalar_lea.vmem %s7, 2
        %v340 = vld [vmem:[%s339] ss:$4 sm:$0x3]
        %s341 = scalar_lea.vmem %s7, 3
        %v342 = vld [vmem:[%s341] ss:$4 sm:$0x3]
        %v343 = vld [vmem:[%s307] sm:$0xff]
        %v344 = vld [vmem:[%s307 + $0x8] sm:$0xff]
        %v345 = vunpack.c.l.bf16 %v343
        %v346 = vunpack.c.h.bf16 %v343
        %v347 = vunpack.c.l.bf16 %v344
        %v348 = vunpack.c.h.bf16 %v344
        %350 = vset.pattern.permute.xlu0 0
        %351 = vperm.xlu0 %350, %v311
        %v352 = vpop.permute.xlu0 %351
        %355 = vset.pattern.permute.xlu0 0
        %356 = vperm.xlu0 %355, %v312
        %v357 = vpop.permute.xlu0 %356
        %v359 = vmul.f32 %v345, %v352
        %v360 = vmul.f32 %v346, %v352
        %v361 = vmul.f32 %v347, %v357
        %v362 = vmul.f32 %v348, %v357
        %364 = vset.pattern.permute.xlu0 0
        %365 = vperm.xlu0 %364, %v313
        %v366 = vpop.permute.xlu0 %365
        %369 = vset.pattern.permute.xlu0 0
        %370 = vperm.xlu0 %369, %v314
        %v371 = vpop.permute.xlu0 %370
        %v373 = vadd.f32 %v359, %v366
        %v374 = vadd.f32 %v360, %v366
        %v375 = vadd.f32 %v361, %v371
        %v376 = vadd.f32 %v362, %v371
        %v377 = vmax.f32 %v373, 0.0
        %v378 = vmax.f32 %v374, 0.0
        %v379 = vmax.f32 %v375, 0.0
        %v380 = vmax.f32 %v376, 0.0
        %v381 = vpack.c.bf16 %v379, %v377
        %v382 = vpack.c.bf16 %v380, %v378
        %v387 = vunpack.c.l.b16 %v323
        %v388 = vunpack.c.l.b16 %v324
        %v389 = vunpack.c.l.b16 %v325
        %v390 = vunpack.c.l.b16 %v326
        %v391 = vpack.c.b16 %v388, %v387
        %v392 = vpack.c.b16 %v390, %v389
        %vm393 = vcmask 130048
        %v395 = vsel %vm393, %v391, 0
        %v398 = vsel %vm393, %v392, 0
        %400 = vmatprep.subr.bf16.mxu0 %v382
        %401 = vmatpush1.bf16.msra.mxu0 %v381
        %402 = vmatprep.subr.bf16.mxu0 0
        %403 = vmatpush1.bf16.msra.mxu0 0
        %404 = vmatprep.subr.bf16.mxu0 0
        %405 = vmatpush1.bf16.msra.mxu0 0
        %406 = vmatprep.subr.bf16.mxu0 0
        %407 = vmatpush1.bf16.msra.mxu0 0
        %408 = vmatprep.subr.bf16.mxu0 0
        %409 = vmatpush1.bf16.msra.mxu0 0
        %410 = vmatprep.subr.bf16.mxu0 0
        %411 = vmatpush1.bf16.msra.mxu0 0
        %412 = vmatprep.subr.bf16.mxu0 0
        %413 = vmatpush1.bf16.msra.mxu0 0
        %414 = vmatprep.subr.bf16.mxu0 0
        %415 = vmatpush1.bf16.msra.mxu0 0
        %416 = vmatprep.subr.bf16.mxu0 0
        %417 = vmatpush1.bf16.msra.mxu0 0
        %418 = vmatprep.subr.bf16.mxu0 0
        %419 = vmatpush1.bf16.msra.mxu0 0
        %420 = vmatprep.subr.bf16.mxu0 0
        %421 = vmatpush1.bf16.msra.mxu0 0
        %422 = vmatprep.subr.bf16.mxu0 0
        %423 = vmatpush1.bf16.msra.mxu0 0
        %424 = vmatprep.subr.bf16.mxu0 0
        %425 = vmatpush1.bf16.msra.mxu0 0
        %426 = vmatprep.subr.bf16.mxu0 0
        %427 = vmatpush1.bf16.msra.mxu0 0
        %428 = vmatprep.subr.bf16.mxu0 0
        %429 = vmatpush1.bf16.msra.mxu0 0
        %430 = vmatprep.subr.bf16.mxu0 0
        %431 = vmatpush1.bf16.msra.mxu0 0
        %432 = vmatprep.mubr.bf16.mxu0 0
        %433 = vmatmul.mubr.bf16.gmra.mrb[0].mxu0 %v395
        %v434 = vpop.f32.mrb[0].mxu0
        %v435 = vadd.f32 0.0, %v434
        %v436 = vpop.f32.mrb[0].mxu0
        %v437 = vadd.f32 0.0, %v436
        %v438 = vpop.f32.mrb[0].mxu0
        %v439 = vadd.f32 0.0, %v438
        %v440 = vpop.f32.mrb[0].mxu0
        %v441 = vadd.f32 0.0, %v440
        %442 = vmatprep.mubr.bf16.mxu0 0
        %443 = vmatmul.mubr.bf16.gmra.mrb[0].mxu0 %v398
        %v444 = vpop.f32.mrb[0].mxu0
        %v445 = vadd.f32 0.0, %v444
        %v446 = vpop.f32.mrb[0].mxu0
        %v447 = vadd.f32 0.0, %v446
        %v448 = vpop.f32.mrb[0].mxu0
        %v449 = vadd.f32 0.0, %v448
        %v450 = vpop.f32.mrb[0].mxu0
        %v451 = vadd.f32 0.0, %v450
        %452 = vdwg.mxu0
        %454 = vset.pattern.permute.xlu0 0
        %455 = vperm.xlu0 %454, %v315
        %v456 = vpop.permute.xlu0 %455
        %459 = vset.pattern.permute.xlu0 0
        %460 = vperm.xlu0 %459, %v316
        %v461 = vpop.permute.xlu0 %460
        %464 = vset.pattern.permute.xlu0 0
        %465 = vperm.xlu0 %464, %v317
        %v466 = vpop.permute.xlu0 %465
        %469 = vset.pattern.permute.xlu0 0
        %470 = vperm.xlu0 %469, %v318
        %v471 = vpop.permute.xlu0 %470
        %v473 = vmul.f32 %v435, %v456
        %v474 = vmul.f32 %v437, %v456
        %v475 = vmul.f32 %v439, %v461
        %v476 = vmul.f32 %v441, %v461
        %v477 = vmul.f32 %v445, %v466
        %v478 = vmul.f32 %v447, %v466
        %v479 = vmul.f32 %v449, %v471
        %v480 = vmul.f32 %v451, %v471
        %482 = vset.pattern.permute.xlu0 0
        %483 = vperm.xlu0 %482, %v319
        %v484 = vpop.permute.xlu0 %483
        %487 = vset.pattern.permute.xlu0 0
        %488 = vperm.xlu0 %487, %v320
        %v489 = vpop.permute.xlu0 %488
        %492 = vset.pattern.permute.xlu0 0
        %493 = vperm.xlu0 %492, %v321
        %v494 = vpop.permute.xlu0 %493
        %497 = vset.pattern.permute.xlu0 0
        %498 = vperm.xlu0 %497, %v322
        %v499 = vpop.permute.xlu0 %498
        %v501 = vadd.f32 %v473, %v484
        %v502 = vadd.f32 %v474, %v484
        %v503 = vadd.f32 %v475, %v489
        %v504 = vadd.f32 %v476, %v489
        %v505 = vadd.f32 %v477, %v494
        %v506 = vadd.f32 %v478, %v494
        %v507 = vadd.f32 %v479, %v499
        %v508 = vadd.f32 %v480, %v499
        %v509 = vmax.f32 %v501, 0.0
        %v510 = vmax.f32 %v502, 0.0
        %v511 = vmax.f32 %v503, 0.0
        %v512 = vmax.f32 %v504, 0.0
        %v513 = vmax.f32 %v505, 0.0
        %v514 = vmax.f32 %v506, 0.0
        %v515 = vmax.f32 %v507, 0.0
        %v516 = vmax.f32 %v508, 0.0
        %v517 = vpack.c.bf16 %v511, %v509
        %v518 = vpack.c.bf16 %v512, %v510
        %v519 = vpack.c.bf16 %v515, %v513
        %v520 = vpack.c.bf16 %v516, %v514
        %v522 = vlaneseq
        %v523 = vshrl.u32 %v522, 7
        %v524 = vsub.s32 0, %v523
        %v525 = vrot.slane %v336, %v524
        %v526 = vlaneseq
        %v527 = vshrl.u32 %v526, 7
        %v528 = vsub.s32 1, %v527
        %v529 = vrot.slane %v336, %v528
        %v532 = vmul.f32 %v509, %v525
        %v533 = vmul.f32 %v510, %v529
        %v534 = vmul.f32 %v511, %v525
        %v535 = vmul.f32 %v512, %v529
        %v536 = vmul.f32 %v513, %v525
        %v537 = vmul.f32 %v514, %v529
        %v538 = vmul.f32 %v515, %v525
        %v539 = vmul.f32 %v516, %v529
        %v540 = vpack.c.bf16 %v534, %v532
        %v541 = vpack.c.bf16 %v535, %v533
        %v542 = vpack.c.bf16 %v538, %v536
        %v543 = vpack.c.bf16 %v539, %v537
        %v545 = vlaneseq
        %v546 = vshrl.u32 %v545, 7
        %v547 = vsub.s32 0, %v546
        %v548 = vrot.slane %v338, %v547
        %v549 = vlaneseq
        %v550 = vshrl.u32 %v549, 7
        %v551 = vsub.s32 1, %v550
        %v552 = vrot.slane %v338, %v551
        %v555 = vmul.f32 %v509, %v548
        %v556 = vmul.f32 %v510, %v552
        %v557 = vmul.f32 %v511, %v548
        %v558 = vmul.f32 %v512, %v552
        %v559 = vmul.f32 %v513, %v548
        %v560 = vmul.f32 %v514, %v552
        %v561 = vmul.f32 %v515, %v548
        %v562 = vmul.f32 %v516, %v552
        %v563 = vpack.c.bf16 %v557, %v555
        %v564 = vpack.c.bf16 %v558, %v556
        %v565 = vpack.c.bf16 %v561, %v559
        %v566 = vpack.c.bf16 %v562, %v560
        %vm567 = vcmask 261120
        %v569 = vsel %vm567, %v327, 0
        %571 = vmatprep.subr.bf16.mxu0 %v541
        %572 = vmatpush1.bf16.msra.mxu0 %v540
        %573 = vmatprep.subr.bf16.mxu0 %v543
        %574 = vmatpush1.bf16.msra.mxu0 %v542
        %575 = vmatprep.subr.bf16.mxu0 0
        %576 = vmatpush1.bf16.msra.mxu0 0
        %577 = vmatprep.subr.bf16.mxu0 0
        %578 = vmatpush1.bf16.msra.mxu0 0
        %579 = vmatprep.subr.bf16.mxu0 0
        %580 = vmatpush1.bf16.msra.mxu0 0
        %581 = vmatprep.subr.bf16.mxu0 0
        %582 = vmatpush1.bf16.msra.mxu0 0
        %583 = vmatprep.subr.bf16.mxu0 0
        %584 = vmatpush1.bf16.msra.mxu0 0
        %585 = vmatprep.subr.bf16.mxu0 0
        %586 = vmatpush1.bf16.msra.mxu0 0
        %587 = vmatprep.subr.bf16.mxu0 0
        %588 = vmatpush1.bf16.msra.mxu0 0
        %589 = vmatprep.subr.bf16.mxu0 0
        %590 = vmatpush1.bf16.msra.mxu0 0
        %591 = vmatprep.subr.bf16.mxu0 0
        %592 = vmatpush1.bf16.msra.mxu0 0
        %593 = vmatprep.subr.bf16.mxu0 0
        %594 = vmatpush1.bf16.msra.mxu0 0
        %595 = vmatprep.subr.bf16.mxu0 0
        %596 = vmatpush1.bf16.msra.mxu0 0
        %597 = vmatprep.subr.bf16.mxu0 0
        %598 = vmatpush1.bf16.msra.mxu0 0
        %599 = vmatprep.subr.bf16.mxu0 0
        %600 = vmatpush1.bf16.msra.mxu0 0
        %601 = vmatprep.subr.bf16.mxu0 0
        %602 = vmatpush1.bf16.msra.mxu0 0
        %603 = vmatprep.mubr.bf16.mxu0 0
        %604 = vmatmul.mubr.bf16.gmra.mrb[0].mxu0 %v569
        %v605 = vpop.f32.mrb[0].mxu0
        %v606 = vadd.f32 0.0, %v605
        %v607 = vpop.f32.mrb[0].mxu0
        %v608 = vadd.f32 0.0, %v607
        %v609 = vpop.f32.mrb[0].mxu0
        %v610 = vpop.f32.mrb[0].mxu0
        %611 = vdwg.mxu0
        %612 = vrot.lane.b32.xlu0 %v606, 17
        %v613 = vpop.permute.xlu0 %612
        %614 = vrot.lane.b32.xlu0 %v608, 17
        %v615 = vpop.permute.xlu0 %614
        %v616 = vlaneseq
        %v617 = vand.u32 %v616, 127
        %vm618 = vcmp.lt.s32.totalorder %v617, 17
        %v619 = vsel %vm618, %v613, %v615
        %v620 = vsel %vm618, %v615, %v613
        %v622 = vsel %vm567, %v328, 0
        %624 = vmatprep.subr.bf16.mxu0 %v518
        %625 = vmatpush1.bf16.msra.mxu0 %v517
        %626 = vmatprep.subr.bf16.mxu0 %v520
        %627 = vmatpush1.bf16.msra.mxu0 %v519
        %628 = vmatprep.subr.bf16.mxu0 0
        %629 = vmatpush1.bf16.msra.mxu0 0
        %630 = vmatprep.subr.bf16.mxu0 0
        %631 = vmatpush1.bf16.msra.mxu0 0
        %632 = vmatprep.subr.bf16.mxu0 0
        %633 = vmatpush1.bf16.msra.mxu0 0
        %634 = vmatprep.subr.bf16.mxu0 0
        %635 = vmatpush1.bf16.msra.mxu0 0
        %636 = vmatprep.subr.bf16.mxu0 0
        %637 = vmatpush1.bf16.msra.mxu0 0
        %638 = vmatprep.subr.bf16.mxu0 0
        %639 = vmatpush1.bf16.msra.mxu0 0
        %640 = vmatprep.subr.bf16.mxu0 0
        %641 = vmatpush1.bf16.msra.mxu0 0
        %642 = vmatprep.subr.bf16.mxu0 0
        %643 = vmatpush1.bf16.msra.mxu0 0
        %644 = vmatprep.subr.bf16.mxu0 0
        %645 = vmatpush1.bf16.msra.mxu0 0
        %646 = vmatprep.subr.bf16.mxu0 0
        %647 = vmatpush1.bf16.msra.mxu0 0
        %648 = vmatprep.subr.bf16.mxu0 0
        %649 = vmatpush1.bf16.msra.mxu0 0
        %650 = vmatprep.subr.bf16.mxu0 0
        %651 = vmatpush1.bf16.msra.mxu0 0
        %652 = vmatprep.subr.bf16.mxu0 0
        %653 = vmatpush1.bf16.msra.mxu0 0
        %654 = vmatprep.subr.bf16.mxu0 0
        %655 = vmatpush1.bf16.msra.mxu0 0
        %656 = vmatprep.mubr.bf16.mxu0 0
        %657 = vmatmul.mubr.bf16.gmra.mrb[0].mxu0 %v622
        %v658 = vpop.f32.mrb[0].mxu0
        %v659 = vadd.f32 0.0, %v658
        %v660 = vpop.f32.mrb[0].mxu0
        %v661 = vadd.f32 0.0, %v660
        %v662 = vpop.f32.mrb[0].mxu0
        %v663 = vpop.f32.mrb[0].mxu0
        %664 = vdwg.mxu0
        %665 = vrot.lane.b32.xlu0 %v659, 16
        %v666 = vpop.permute.xlu0 %665
        %667 = vrot.lane.b32.xlu0 %v661, 16
        %v668 = vpop.permute.xlu0 %667
        %vm669 = vcmp.lt.s32.totalorder %v617, 16
        %v670 = vsel %vm669, %v666, %v668
        %v671 = vsel %vm669, %v668, %v666
        %v672 = vadd.f32 %v620, %v671
        %v673 = vadd.f32 %v619, %v670
        %v675 = vsel %vm567, %v329, 0
        %677 = vmatprep.subr.bf16.mxu0 %v564
        %678 = vmatpush1.bf16.msra.mxu0 %v563
        %679 = vmatprep.subr.bf16.mxu0 %v566
        %680 = vmatpush1.bf16.msra.mxu0 %v565
        %681 = vmatprep.subr.bf16.mxu0 0
        %682 = vmatpush1.bf16.msra.mxu0 0
        %683 = vmatprep.subr.bf16.mxu0 0
        %684 = vmatpush1.bf16.msra.mxu0 0
        %685 = vmatprep.subr.bf16.mxu0 0
        %686 = vmatpush1.bf16.msra.mxu0 0
        %687 = vmatprep.subr.bf16.mxu0 0
        %688 = vmatpush1.bf16.msra.mxu0 0
        %689 = vmatprep.subr.bf16.mxu0 0
        %690 = vmatpush1.bf16.msra.mxu0 0
        %691 = vmatprep.subr.bf16.mxu0 0
        %692 = vmatpush1.bf16.msra.mxu0 0
        %693 = vmatprep.subr.bf16.mxu0 0
        %694 = vmatpush1.bf16.msra.mxu0 0
        %695 = vmatprep.subr.bf16.mxu0 0
        %696 = vmatpush1.bf16.msra.mxu0 0
        %697 = vmatprep.subr.bf16.mxu0 0
        %698 = vmatpush1.bf16.msra.mxu0 0
        %699 = vmatprep.subr.bf16.mxu0 0
        %700 = vmatpush1.bf16.msra.mxu0 0
        %701 = vmatprep.subr.bf16.mxu0 0
        %702 = vmatpush1.bf16.msra.mxu0 0
        %703 = vmatprep.subr.bf16.mxu0 0
        %704 = vmatpush1.bf16.msra.mxu0 0
        %705 = vmatprep.subr.bf16.mxu0 0
        %706 = vmatpush1.bf16.msra.mxu0 0
        %707 = vmatprep.subr.bf16.mxu0 0
        %708 = vmatpush1.bf16.msra.mxu0 0
        %709 = vmatprep.mubr.bf16.mxu0 0
        %710 = vmatmul.mubr.bf16.gmra.mrb[0].mxu0 %v675
        %v711 = vpop.f32.mrb[0].mxu0
        %v712 = vadd.f32 0.0, %v711
        %v713 = vpop.f32.mrb[0].mxu0
        %v714 = vadd.f32 0.0, %v713
        %v715 = vpop.f32.mrb[0].mxu0
        %v716 = vpop.f32.mrb[0].mxu0
        %717 = vdwg.mxu0
        %718 = vrot.lane.b32.xlu0 %v712, 15
        %v719 = vpop.permute.xlu0 %718
        %720 = vrot.lane.b32.xlu0 %v714, 15
        %v721 = vpop.permute.xlu0 %720
        %vm722 = vcmp.lt.s32.totalorder %v617, 15
        %v723 = vsel %vm722, %v719, %v721
        %v724 = vsel %vm722, %v721, %v719
        %v725 = vadd.f32 %v672, %v724
        %v726 = vadd.f32 %v673, %v723
        %v728 = vlaneseq
        %v729 = vshrl.u32 %v728, 7
        %v730 = vsub.s32 0, %v729
        %v731 = vrot.slane %v340, %v730
        %v732 = vlaneseq
        %v733 = vshrl.u32 %v732, 7
        %v734 = vsub.s32 1, %v733
        %v735 = vrot.slane %v340, %v734
        %v738 = vmul.f32 %v725, %v731
        %v739 = vmul.f32 %v726, %v735
        %v741 = vsel %vm567, %v330, 0
        %743 = vmatprep.subr.bf16.mxu0 %v541
        %744 = vmatpush1.bf16.msra.mxu0 %v540
        %745 = vmatprep.subr.bf16.mxu0 %v543
        %746 = vmatpush1.bf16.msra.mxu0 %v542
        %747 = vmatprep.subr.bf16.mxu0 0
        %748 = vmatpush1.bf16.msra.mxu0 0
        %749 = vmatprep.subr.bf16.mxu0 0
        %750 = vmatpush1.bf16.msra.mxu0 0
        %751 = vmatprep.subr.bf16.mxu0 0
        %752 = vmatpush1.bf16.msra.mxu0 0
        %753 = vmatprep.subr.bf16.mxu0 0
        %754 = vmatpush1.bf16.msra.mxu0 0
        %755 = vmatprep.subr.bf16.mxu0 0
        %756 = vmatpush1.bf16.msra.mxu0 0
        %757 = vmatprep.subr.bf16.mxu0 0
        %758 = vmatpush1.bf16.msra.mxu0 0
        %759 = vmatprep.subr.bf16.mxu0 0
        %760 = vmatpush1.bf16.msra.mxu0 0
        %761 = vmatprep.subr.bf16.mxu0 0
        %762 = vmatpush1.bf16.msra.mxu0 0
        %763 = vmatprep.subr.bf16.mxu0 0
        %764 = vmatpush1.bf16.msra.mxu0 0
        %765 = vmatprep.subr.bf16.mxu0 0
        %766 = vmatpush1.bf16.msra.mxu0 0
        %767 = vmatprep.subr.bf16.mxu0 0
        %768 = vmatpush1.bf16.msra.mxu0 0
        %769 = vmatprep.subr.bf16.mxu0 0
        %770 = vmatpush1.bf16.msra.mxu0 0
        %771 = vmatprep.subr.bf16.mxu0 0
        %772 = vmatpush1.bf16.msra.mxu0 0
        %773 = vmatprep.subr.bf16.mxu0 0
        %774 = vmatpush1.bf16.msra.mxu0 0
        %775 = vmatprep.mubr.bf16.mxu0 0
        %776 = vmatmul.mubr.bf16.gmra.mrb[0].mxu0 %v741
        %v777 = vpop.f32.mrb[0].mxu0
        %v778 = vadd.f32 0.0, %v777
        %v779 = vpop.f32.mrb[0].mxu0
        %v780 = vadd.f32 0.0, %v779
        %v781 = vpop.f32.mrb[0].mxu0
        %v782 = vpop.f32.mrb[0].mxu0
        %783 = vdwg.mxu0
        %784 = vrot.lane.b32.xlu0 %v778, 1
        %v785 = vpop.permute.xlu0 %784
        %786 = vrot.lane.b32.xlu0 %v780, 1
        %v787 = vpop.permute.xlu0 %786
        %vm788 = vcmp.lt.s32.totalorder %v617, 1
        %v789 = vsel %vm788, %v785, %v787
        %v790 = vsel %vm788, %v787, %v785
        %v792 = vsel %vm567, %v331, 0
        %794 = vmatprep.subr.bf16.mxu0 %v518
        %795 = vmatpush1.bf16.msra.mxu0 %v517
        %796 = vmatprep.subr.bf16.mxu0 %v520
        %797 = vmatpush1.bf16.msra.mxu0 %v519
        %798 = vmatprep.subr.bf16.mxu0 0
        %799 = vmatpush1.bf16.msra.mxu0 0
        %800 = vmatprep.subr.bf16.mxu0 0
        %801 = vmatpush1.bf16.msra.mxu0 0
        %802 = vmatprep.subr.bf16.mxu0 0
        %803 = vmatpush1.bf16.msra.mxu0 0
        %804 = vmatprep.subr.bf16.mxu0 0
        %805 = vmatpush1.bf16.msra.mxu0 0
        %806 = vmatprep.subr.bf16.mxu0 0
        %807 = vmatpush1.bf16.msra.mxu0 0
        %808 = vmatprep.subr.bf16.mxu0 0
        %809 = vmatpush1.bf16.msra.mxu0 0
        %810 = vmatprep.subr.bf16.mxu0 0
        %811 = vmatpush1.bf16.msra.mxu0 0
        %812 = vmatprep.subr.bf16.mxu0 0
        %813 = vmatpush1.bf16.msra.mxu0 0
        %814 = vmatprep.subr.bf16.mxu0 0
        %815 = vmatpush1.bf16.msra.mxu0 0
        %816 = vmatprep.subr.bf16.mxu0 0
        %817 = vmatpush1.bf16.msra.mxu0 0
        %818 = vmatprep.subr.bf16.mxu0 0
        %819 = vmatpush1.bf16.msra.mxu0 0
        %820 = vmatprep.subr.bf16.mxu0 0
        %821 = vmatpush1.bf16.msra.mxu0 0
        %822 = vmatprep.subr.bf16.mxu0 0
        %823 = vmatpush1.bf16.msra.mxu0 0
        %824 = vmatprep.subr.bf16.mxu0 0
        %825 = vmatpush1.bf16.msra.mxu0 0
        %826 = vmatprep.mubr.bf16.mxu0 0
        %827 = vmatmul.mubr.bf16.gmra.mrb[0].mxu0 %v792
        %v828 = vpop.f32.mrb[0].mxu0
        %v829 = vadd.f32 0.0, %v828
        %v830 = vpop.f32.mrb[0].mxu0
        %v831 = vadd.f32 0.0, %v830
        %v832 = vpop.f32.mrb[0].mxu0
        %v833 = vpop.f32.mrb[0].mxu0
        %834 = vdwg.mxu0
        %v835 = vadd.f32 %v790, %v829
        %v836 = vadd.f32 %v789, %v831
        %v838 = vsel %vm567, %v332, 0
        %840 = vmatprep.subr.bf16.mxu0 %v564
        %841 = vmatpush1.bf16.msra.mxu0 %v563
        %842 = vmatprep.subr.bf16.mxu0 %v566
        %843 = vmatpush1.bf16.msra.mxu0 %v565
        %844 = vmatprep.subr.bf16.mxu0 0
        %845 = vmatpush1.bf16.msra.mxu0 0
        %846 = vmatprep.subr.bf16.mxu0 0
        %847 = vmatpush1.bf16.msra.mxu0 0
        %848 = vmatprep.subr.bf16.mxu0 0
        %849 = vmatpush1.bf16.msra.mxu0 0
        %850 = vmatprep.subr.bf16.mxu0 0
        %851 = vmatpush1.bf16.msra.mxu0 0
        %852 = vmatprep.subr.bf16.mxu0 0
        %853 = vmatpush1.bf16.msra.mxu0 0
        %854 = vmatprep.subr.bf16.mxu0 0
        %855 = vmatpush1.bf16.msra.mxu0 0
        %856 = vmatprep.subr.bf16.mxu0 0
        %857 = vmatpush1.bf16.msra.mxu0 0
        %858 = vmatprep.subr.bf16.mxu0 0
        %859 = vmatpush1.bf16.msra.mxu0 0
        %860 = vmatprep.subr.bf16.mxu0 0
        %861 = vmatpush1.bf16.msra.mxu0 0
        %862 = vmatprep.subr.bf16.mxu0 0
        %863 = vmatpush1.bf16.msra.mxu0 0
        %864 = vmatprep.subr.bf16.mxu0 0
        %865 = vmatpush1.bf16.msra.mxu0 0
        %866 = vmatprep.subr.bf16.mxu0 0
        %867 = vmatpush1.bf16.msra.mxu0 0
        %868 = vmatprep.subr.bf16.mxu0 0
        %869 = vmatpush1.bf16.msra.mxu0 0
        %870 = vmatprep.subr.bf16.mxu0 0
        %871 = vmatpush1.bf16.msra.mxu0 0
        %872 = vmatprep.mubr.bf16.mxu0 0
        %873 = vmatmul.mubr.bf16.gmra.mrb[0].mxu0 %v838
        %v874 = vpop.f32.mrb[0].mxu0
        %v875 = vadd.f32 0.0, %v874
        %v876 = vpop.f32.mrb[0].mxu0
        %v877 = vadd.f32 0.0, %v876
        %v878 = vpop.f32.mrb[0].mxu0
        %v879 = vpop.f32.mrb[0].mxu0
        %880 = vdwg.mxu0
        %881 = vrot.lane.b32.xlu0 %v875, 127
        %v882 = vpop.permute.xlu0 %881
        %883 = vrot.lane.b32.xlu0 %v877, 127
        %v884 = vpop.permute.xlu0 %883
        %vm885 = vcmp.lt.s32.totalorder %v617, 127
        %v886 = vsel %vm885, %v882, %v884
        %v887 = vsel %vm885, %v884, %v882
        %v888 = vadd.f32 %v835, %v886
        %v889 = vadd.f32 %v836, %v887
        %v890 = vadd.f32 %v738, %v888
        %v891 = vadd.f32 %v739, %v889
        %v893 = vsel %vm567, %v333, 0
        %895 = vmatprep.subr.bf16.mxu0 %v541
        %896 = vmatpush1.bf16.msra.mxu0 %v540
        %897 = vmatprep.subr.bf16.mxu0 %v543
        %898 = vmatpush1.bf16.msra.mxu0 %v542
        %899 = vmatprep.subr.bf16.mxu0 0
        %900 = vmatpush1.bf16.msra.mxu0 0
        %901 = vmatprep.subr.bf16.mxu0 0
        %902 = vmatpush1.bf16.msra.mxu0 0
        %903 = vmatprep.subr.bf16.mxu0 0
        %904 = vmatpush1.bf16.msra.mxu0 0
        %905 = vmatprep.subr.bf16.mxu0 0
        %906 = vmatpush1.bf16.msra.mxu0 0
        %907 = vmatprep.subr.bf16.mxu0 0
        %908 = vmatpush1.bf16.msra.mxu0 0
        %909 = vmatprep.subr.bf16.mxu0 0
        %910 = vmatpush1.bf16.msra.mxu0 0
        %911 = vmatprep.subr.bf16.mxu0 0
        %912 = vmatpush1.bf16.msra.mxu0 0
        %913 = vmatprep.subr.bf16.mxu0 0
        %914 = vmatpush1.bf16.msra.mxu0 0
        %915 = vmatprep.subr.bf16.mxu0 0
        %916 = vmatpush1.bf16.msra.mxu0 0
        %917 = vmatprep.subr.bf16.mxu0 0
        %918 = vmatpush1.bf16.msra.mxu0 0
        %919 = vmatprep.subr.bf16.mxu0 0
        %920 = vmatpush1.bf16.msra.mxu0 0
        %921 = vmatprep.subr.bf16.mxu0 0
        %922 = vmatpush1.bf16.msra.mxu0 0
        %923 = vmatprep.subr.bf16.mxu0 0
        %924 = vmatpush1.bf16.msra.mxu0 0
        %925 = vmatprep.subr.bf16.mxu0 0
        %926 = vmatpush1.bf16.msra.mxu0 0
        %927 = vmatprep.mubr.bf16.mxu0 0
        %928 = vmatmul.mubr.bf16.gmra.mrb[0].mxu0 %v893
        %v929 = vpop.f32.mrb[0].mxu0
        %v930 = vadd.f32 0.0, %v929
        %v931 = vpop.f32.mrb[0].mxu0
        %v932 = vadd.f32 0.0, %v931
        %v933 = vpop.f32.mrb[0].mxu0
        %v934 = vpop.f32.mrb[0].mxu0
        %935 = vdwg.mxu0
        %936 = vrot.lane.b32.xlu0 %v930, 113
        %v937 = vpop.permute.xlu0 %936
        %938 = vrot.lane.b32.xlu0 %v932, 113
        %v939 = vpop.permute.xlu0 %938
        %vm940 = vcmp.lt.s32.totalorder %v617, 113
        %v941 = vsel %vm940, %v937, %v939
        %v942 = vsel %vm940, %v939, %v937
        %v944 = vsel %vm567, %v334, 0
        %946 = vmatprep.subr.bf16.mxu0 %v518
        %947 = vmatpush1.bf16.msra.mxu0 %v517
        %948 = vmatprep.subr.bf16.mxu0 %v520
        %949 = vmatpush1.bf16.msra.mxu0 %v519
        %950 = vmatprep.subr.bf16.mxu0 0
        %951 = vmatpush1.bf16.msra.mxu0 0
        %952 = vmatprep.subr.bf16.mxu0 0
        %953 = vmatpush1.bf16.msra.mxu0 0
        %954 = vmatprep.subr.bf16.mxu0 0
        %955 = vmatpush1.bf16.msra.mxu0 0
        %956 = vmatprep.subr.bf16.mxu0 0
        %957 = vmatpush1.bf16.msra.mxu0 0
        %958 = vmatprep.subr.bf16.mxu0 0
        %959 = vmatpush1.bf16.msra.mxu0 0
        %960 = vmatprep.subr.bf16.mxu0 0
        %961 = vmatpush1.bf16.msra.mxu0 0
        %962 = vmatprep.subr.bf16.mxu0 0
        %963 = vmatpush1.bf16.msra.mxu0 0
        %964 = vmatprep.subr.bf16.mxu0 0
        %965 = vmatpush1.bf16.msra.mxu0 0
        %966 = vmatprep.subr.bf16.mxu0 0
        %967 = vmatpush1.bf16.msra.mxu0 0
        %968 = vmatprep.subr.bf16.mxu0 0
        %969 = vmatpush1.bf16.msra.mxu0 0
        %970 = vmatprep.subr.bf16.mxu0 0
        %971 = vmatpush1.bf16.msra.mxu0 0
        %972 = vmatprep.subr.bf16.mxu0 0
        %973 = vmatpush1.bf16.msra.mxu0 0
        %974 = vmatprep.subr.bf16.mxu0 0
        %975 = vmatpush1.bf16.msra.mxu0 0
        %976 = vmatprep.subr.bf16.mxu0 0
        %977 = vmatpush1.bf16.msra.mxu0 0
        %978 = vmatprep.mubr.bf16.mxu0 0
        %979 = vmatmul.mubr.bf16.gmra.mrb[0].mxu0 %v944
        %v980 = vpop.f32.mrb[0].mxu0
        %v981 = vadd.f32 0.0, %v980
        %v982 = vpop.f32.mrb[0].mxu0
        %v983 = vadd.f32 0.0, %v982
        %v984 = vpop.f32.mrb[0].mxu0
        %v985 = vpop.f32.mrb[0].mxu0
        %986 = vdwg.mxu0
        %987 = vrot.lane.b32.xlu0 %v981, 112
        %v988 = vpop.permute.xlu0 %987
        %989 = vrot.lane.b32.xlu0 %v983, 112
        %v990 = vpop.permute.xlu0 %989
        %vm991 = vcmp.lt.s32.totalorder %v617, 112
        %v992 = vsel %vm991, %v988, %v990
        %v993 = vsel %vm991, %v990, %v988
        %v994 = vadd.f32 %v941, %v992
        %v995 = vadd.f32 %v942, %v993
        %v997 = vsel %vm567, %v335, 0
        %999 = vmatprep.subr.bf16.mxu0 %v564
        %1000 = vmatpush1.bf16.msra.mxu0 %v563
        %1001 = vmatprep.subr.bf16.mxu0 %v566
        %1002 = vmatpush1.bf16.msra.mxu0 %v565
        %1003 = vmatprep.subr.bf16.mxu0 0
        %1004 = vmatpush1.bf16.msra.mxu0 0
        %1005 = vmatprep.subr.bf16.mxu0 0
        %1006 = vmatpush1.bf16.msra.mxu0 0
        %1007 = vmatprep.subr.bf16.mxu0 0
        %1008 = vmatpush1.bf16.msra.mxu0 0
        %1009 = vmatprep.subr.bf16.mxu0 0
        %1010 = vmatpush1.bf16.msra.mxu0 0
        %1011 = vmatprep.subr.bf16.mxu0 0
        %1012 = vmatpush1.bf16.msra.mxu0 0
        %1013 = vmatprep.subr.bf16.mxu0 0
        %1014 = vmatpush1.bf16.msra.mxu0 0
        %1015 = vmatprep.subr.bf16.mxu0 0
        %1016 = vmatpush1.bf16.msra.mxu0 0
        %1017 = vmatprep.subr.bf16.mxu0 0
        %1018 = vmatpush1.bf16.msra.mxu0 0
        %1019 = vmatprep.subr.bf16.mxu0 0
        %1020 = vmatpush1.bf16.msra.mxu0 0
        %1021 = vmatprep.subr.bf16.mxu0 0
        %1022 = vmatpush1.bf16.msra.mxu0 0
        %1023 = vmatprep.subr.bf16.mxu0 0
        %1024 = vmatpush1.bf16.msra.mxu0 0
        %1025 = vmatprep.subr.bf16.mxu0 0
        %1026 = vmatpush1.bf16.msra.mxu0 0
        %1027 = vmatprep.subr.bf16.mxu0 0
        %1028 = vmatpush1.bf16.msra.mxu0 0
        %1029 = vmatprep.subr.bf16.mxu0 0
        %1030 = vmatpush1.bf16.msra.mxu0 0
        %1031 = vmatprep.mubr.bf16.mxu0 0
        %1032 = vmatmul.mubr.bf16.gmra.mrb[0].mxu0 %v997
        %v1033 = vpop.f32.mrb[0].mxu0
        %v1034 = vadd.f32 0.0, %v1033
        %v1035 = vpop.f32.mrb[0].mxu0
        %v1036 = vadd.f32 0.0, %v1035
        %v1037 = vpop.f32.mrb[0].mxu0
        %v1038 = vpop.f32.mrb[0].mxu0
        %1039 = vdwg.mxu0
        %1040 = vrot.lane.b32.xlu0 %v1034, 111
        %v1041 = vpop.permute.xlu0 %1040
        %1042 = vrot.lane.b32.xlu0 %v1036, 111
        %v1043 = vpop.permute.xlu0 %1042
        %vm1044 = vcmp.lt.s32.totalorder %v617, 111
        %v1045 = vsel %vm1044, %v1041, %v1043
        %v1046 = vsel %vm1044, %v1043, %v1041
        %v1047 = vadd.f32 %v994, %v1045
        %v1048 = vadd.f32 %v995, %v1046
        %v1050 = vlaneseq
        %v1051 = vshrl.u32 %v1050, 7
        %v1052 = vsub.s32 0, %v1051
        %v1053 = vrot.slane %v342, %v1052
        %v1054 = vlaneseq
        %v1055 = vshrl.u32 %v1054, 7
        %v1056 = vsub.s32 1, %v1055
        %v1057 = vrot.slane %v342, %v1056
        %v1060 = vmul.f32 %v1047, %v1053
        %v1061 = vmul.f32 %v1048, %v1057
        %v1062 = vadd.f32 %v890, %v1060
        %v1063 = vadd.f32 %v891, %v1061
        %1064 = vst [vmem:[%s301] sm:$0xff] %v1062
        %1065 = vst [vmem:[%s301 + $0x8] sm:$0xff] %v1063
        %s1066 = scalar_lea.vmem %s307, 16
        %v1067 = vld [vmem:[%s1066] sm:$0xff]
        %v1068 = vld [vmem:[%s1066 + $0x8] sm:$0xff]
        %v1069 = vunpack.c.l.bf16 %v1067
        %v1070 = vunpack.c.h.bf16 %v1067
        %v1071 = vunpack.c.l.bf16 %v1068
        %v1072 = vunpack.c.h.bf16 %v1068
        %v1073 = vmul.f32 %v1069, %v352
        %v1074 = vmul.f32 %v1070, %v352
        %v1075 = vmul.f32 %v1071, %v357
        %v1076 = vmul.f32 %v1072, %v357
        %v1077 = vadd.f32 %v1073, %v366
        %v1078 = vadd.f32 %v1074, %v366
        %v1079 = vadd.f32 %v1075, %v371
        %v1080 = vadd.f32 %v1076, %v371
        %v1081 = vmax.f32 %v1077, 0.0
        %v1082 = vmax.f32 %v1078, 0.0
        %v1083 = vmax.f32 %v1079, 0.0
        %v1084 = vmax.f32 %v1080, 0.0
        %v1085 = vpack.c.bf16 %v1083, %v1081
        %v1086 = vpack.c.bf16 %v1084, %v1082
        %1087 = vmatprep.subr.bf16.mxu0 %v1086
        %1088 = vmatpush1.bf16.msra.mxu0 %v1085
        %1089 = vmatprep.subr.bf16.mxu0 0
        %1090 = vmatpush1.bf16.msra.mxu0 0
        %1091 = vmatprep.subr.bf16.mxu0 0
        %1092 = vmatpush1.bf16.msra.mxu0 0
        %1093 = vmatprep.subr.bf16.mxu0 0
        %1094 = vmatpush1.bf16.msra.mxu0 0
        %1095 = vmatprep.subr.bf16.mxu0 0
        %1096 = vmatpush1.bf16.msra.mxu0 0
        %1097 = vmatprep.subr.bf16.mxu0 0
        %1098 = vmatpush1.bf16.msra.mxu0 0
        %1099 = vmatprep.subr.bf16.mxu0 0
        %1100 = vmatpush1.bf16.msra.mxu0 0
        %1101 = vmatprep.subr.bf16.mxu0 0
        %1102 = vmatpush1.bf16.msra.mxu0 0
        %1103 = vmatprep.subr.bf16.mxu0 0
        %1104 = vmatpush1.bf16.msra.mxu0 0
        %1105 = vmatprep.subr.bf16.mxu0 0
        %1106 = vmatpush1.bf16.msra.mxu0 0
        %1107 = vmatprep.subr.bf16.mxu0 0
        %1108 = vmatpush1.bf16.msra.mxu0 0
        %1109 = vmatprep.subr.bf16.mxu0 0
        %1110 = vmatpush1.bf16.msra.mxu0 0
        %1111 = vmatprep.subr.bf16.mxu0 0
        %1112 = vmatpush1.bf16.msra.mxu0 0
        %1113 = vmatprep.subr.bf16.mxu0 0
        %1114 = vmatpush1.bf16.msra.mxu0 0
        %1115 = vmatprep.subr.bf16.mxu0 0
        %1116 = vmatpush1.bf16.msra.mxu0 0
        %1117 = vmatprep.subr.bf16.mxu0 0
        %1118 = vmatpush1.bf16.msra.mxu0 0
        %1119 = vmatprep.mubr.bf16.mxu0 0
        %1120 = vmatmul.mubr.bf16.gmra.mrb[0].mxu0 %v395
        %v1121 = vpop.f32.mrb[0].mxu0
        %v1122 = vadd.f32 0.0, %v1121
        %v1123 = vpop.f32.mrb[0].mxu0
        %v1124 = vadd.f32 0.0, %v1123
        %v1125 = vpop.f32.mrb[0].mxu0
        %v1126 = vadd.f32 0.0, %v1125
        %v1127 = vpop.f32.mrb[0].mxu0
        %v1128 = vadd.f32 0.0, %v1127
        %1129 = vmatprep.mubr.bf16.mxu0 0
        %1130 = vmatmul.mubr.bf16.gmra.mrb[0].mxu0 %v398
        %v1131 = vpop.f32.mrb[0].mxu0
        %v1132 = vadd.f32 0.0, %v1131
        %v1133 = vpop.f32.mrb[0].mxu0
        %v1134 = vadd.f32 0.0, %v1133
        %v1135 = vpop.f32.mrb[0].mxu0
        %v1136 = vadd.f32 0.0, %v1135
        %v1137 = vpop.f32.mrb[0].mxu0
        %v1138 = vadd.f32 0.0, %v1137
        %1139 = vdwg.mxu0
        %v1140 = vmul.f32 %v1122, %v456
        %v1141 = vmul.f32 %v1124, %v456
        %v1142 = vmul.f32 %v1126, %v461
        %v1143 = vmul.f32 %v1128, %v461
        %v1144 = vmul.f32 %v1132, %v466
        %v1145 = vmul.f32 %v1134, %v466
        %v1146 = vmul.f32 %v1136, %v471
        %v1147 = vmul.f32 %v1138, %v471
        %v1148 = vadd.f32 %v1140, %v484
        %v1149 = vadd.f32 %v1141, %v484
        %v1150 = vadd.f32 %v1142, %v489
        %v1151 = vadd.f32 %v1143, %v489
        %v1152 = vadd.f32 %v1144, %v494
        %v1153 = vadd.f32 %v1145, %v494
        %v1154 = vadd.f32 %v1146, %v499
        %v1155 = vadd.f32 %v1147, %v499
        %v1156 = vmax.f32 %v1148, 0.0
        %v1157 = vmax.f32 %v1149, 0.0
        %v1158 = vmax.f32 %v1150, 0.0
        %v1159 = vmax.f32 %v1151, 0.0
        %v1160 = vmax.f32 %v1152, 0.0
        %v1161 = vmax.f32 %v1153, 0.0
        %v1162 = vmax.f32 %v1154, 0.0
        %v1163 = vmax.f32 %v1155, 0.0
        %v1164 = vpack.c.bf16 %v1158, %v1156
        %v1165 = vpack.c.bf16 %v1159, %v1157
        %v1166 = vpack.c.bf16 %v1162, %v1160
        %v1167 = vpack.c.bf16 %v1163, %v1161
        %v1168 = vmul.f32 %v1156, %v525
        %v1169 = vmul.f32 %v1157, %v529
        %v1170 = vmul.f32 %v1158, %v525
        %v1171 = vmul.f32 %v1159, %v529
        %v1172 = vmul.f32 %v1160, %v525
        %v1173 = vmul.f32 %v1161, %v529
        %v1174 = vmul.f32 %v1162, %v525
        %v1175 = vmul.f32 %v1163, %v529
        %v1176 = vpack.c.bf16 %v1170, %v1168
        %v1177 = vpack.c.bf16 %v1171, %v1169
        %v1178 = vpack.c.bf16 %v1174, %v1172
        %v1179 = vpack.c.bf16 %v1175, %v1173
        %v1180 = vmul.f32 %v1156, %v548
        %v1181 = vmul.f32 %v1157, %v552
        %v1182 = vmul.f32 %v1158, %v548
        %v1183 = vmul.f32 %v1159, %v552
        %v1184 = vmul.f32 %v1160, %v548
        %v1185 = vmul.f32 %v1161, %v552
        %v1186 = vmul.f32 %v1162, %v548
        %v1187 = vmul.f32 %v1163, %v552
        %v1188 = vpack.c.bf16 %v1182, %v1180
        %v1189 = vpack.c.bf16 %v1183, %v1181
        %v1190 = vpack.c.bf16 %v1186, %v1184
        %v1191 = vpack.c.bf16 %v1187, %v1185
        %1192 = vmatprep.subr.bf16.mxu0 %v1177
        %1193 = vmatpush1.bf16.msra.mxu0 %v1176
        %1194 = vmatprep.subr.bf16.mxu0 %v1179
        %1195 = vmatpush1.bf16.msra.mxu0 %v1178
        %1196 = vmatprep.subr.bf16.mxu0 0
        %1197 = vmatpush1.bf16.msra.mxu0 0
        %1198 = vmatprep.subr.bf16.mxu0 0
        %1199 = vmatpush1.bf16.msra.mxu0 0
        %1200 = vmatprep.subr.bf16.mxu0 0
        %1201 = vmatpush1.bf16.msra.mxu0 0
        %1202 = vmatprep.subr.bf16.mxu0 0
        %1203 = vmatpush1.bf16.msra.mxu0 0
        %1204 = vmatprep.subr.bf16.mxu0 0
        %1205 = vmatpush1.bf16.msra.mxu0 0
        %1206 = vmatprep.subr.bf16.mxu0 0
        %1207 = vmatpush1.bf16.msra.mxu0 0
        %1208 = vmatprep.subr.bf16.mxu0 0
        %1209 = vmatpush1.bf16.msra.mxu0 0
        %1210 = vmatprep.subr.bf16.mxu0 0
        %1211 = vmatpush1.bf16.msra.mxu0 0
        %1212 = vmatprep.subr.bf16.mxu0 0
        %1213 = vmatpush1.bf16.msra.mxu0 0
        %1214 = vmatprep.subr.bf16.mxu0 0
        %1215 = vmatpush1.bf16.msra.mxu0 0
        %1216 = vmatprep.subr.bf16.mxu0 0
        %1217 = vmatpush1.bf16.msra.mxu0 0
        %1218 = vmatprep.subr.bf16.mxu0 0
        %1219 = vmatpush1.bf16.msra.mxu0 0
        %1220 = vmatprep.subr.bf16.mxu0 0
        %1221 = vmatpush1.bf16.msra.mxu0 0
        %1222 = vmatprep.subr.bf16.mxu0 0
        %1223 = vmatpush1.bf16.msra.mxu0 0
        %1224 = vmatprep.mubr.bf16.mxu0 0
        %1225 = vmatmul.mubr.bf16.gmra.mrb[0].mxu0 %v569
        %v1226 = vpop.f32.mrb[0].mxu0
        %v1227 = vadd.f32 0.0, %v1226
        %v1228 = vpop.f32.mrb[0].mxu0
        %v1229 = vadd.f32 0.0, %v1228
        %v1230 = vpop.f32.mrb[0].mxu0
        %v1231 = vpop.f32.mrb[0].mxu0
        %1232 = vdwg.mxu0
        %1233 = vrot.lane.b32.xlu0 %v1227, 17
        %v1234 = vpop.permute.xlu0 %1233
        %1235 = vrot.lane.b32.xlu0 %v1229, 17
        %v1236 = vpop.permute.xlu0 %1235
        %v1237 = vsel %vm618, %v1234, %v1236
        %v1238 = vsel %vm618, %v1236, %v1234
        %1239 = vmatprep.subr.bf16.mxu0 %v1165
        %1240 = vmatpush1.bf16.msra.mxu0 %v1164
        %1241 = vmatprep.subr.bf16.mxu0 %v1167
        %1242 = vmatpush1.bf16.msra.mxu0 %v1166
        %1243 = vmatprep.subr.bf16.mxu0 0
        %1244 = vmatpush1.bf16.msra.mxu0 0
        %1245 = vmatprep.subr.bf16.mxu0 0
        %1246 = vmatpush1.bf16.msra.mxu0 0
        %1247 = vmatprep.subr.bf16.mxu0 0
        %1248 = vmatpush1.bf16.msra.mxu0 0
        %1249 = vmatprep.subr.bf16.mxu0 0
        %1250 = vmatpush1.bf16.msra.mxu0 0
        %1251 = vmatprep.subr.bf16.mxu0 0
        %1252 = vmatpush1.bf16.msra.mxu0 0
        %1253 = vmatprep.subr.bf16.mxu0 0
        %1254 = vmatpush1.bf16.msra.mxu0 0
        %1255 = vmatprep.subr.bf16.mxu0 0
        %1256 = vmatpush1.bf16.msra.mxu0 0
        %1257 = vmatprep.subr.bf16.mxu0 0
        %1258 = vmatpush1.bf16.msra.mxu0 0
        %1259 = vmatprep.subr.bf16.mxu0 0
        %1260 = vmatpush1.bf16.msra.mxu0 0
        %1261 = vmatprep.subr.bf16.mxu0 0
        %1262 = vmatpush1.bf16.msra.mxu0 0
        %1263 = vmatprep.subr.bf16.mxu0 0
        %1264 = vmatpush1.bf16.msra.mxu0 0
        %1265 = vmatprep.subr.bf16.mxu0 0
        %1266 = vmatpush1.bf16.msra.mxu0 0
        %1267 = vmatprep.subr.bf16.mxu0 0
        %1268 = vmatpush1.bf16.msra.mxu0 0
        %1269 = vmatprep.subr.bf16.mxu0 0
        %1270 = vmatpush1.bf16.msra.mxu0 0
        %1271 = vmatprep.mubr.bf16.mxu0 0
        %1272 = vmatmul.mubr.bf16.gmra.mrb[0].mxu0 %v622
        %v1273 = vpop.f32.mrb[0].mxu0
        %v1274 = vadd.f32 0.0, %v1273
        %v1275 = vpop.f32.mrb[0].mxu0
        %v1276 = vadd.f32 0.0, %v1275
        %v1277 = vpop.f32.mrb[0].mxu0
        %v1278 = vpop.f32.mrb[0].mxu0
        %1279 = vdwg.mxu0
        %1280 = vrot.lane.b32.xlu0 %v1274, 16
        %v1281 = vpop.permute.xlu0 %1280
        %1282 = vrot.lane.b32.xlu0 %v1276, 16
        %v1283 = vpop.permute.xlu0 %1282
        %v1284 = vsel %vm669, %v1281, %v1283
        %v1285 = vsel %vm669, %v1283, %v1281
        %v1286 = vadd.f32 %v1238, %v1285
        %v1287 = vadd.f32 %v1237, %v1284
        %1288 = vmatprep.subr.bf16.mxu0 %v1189
        %1289 = vmatpush1.bf16.msra.mxu0 %v1188
        %1290 = vmatprep.subr.bf16.mxu0 %v1191
        %1291 = vmatpush1.bf16.msra.mxu0 %v1190
        %1292 = vmatprep.subr.bf16.mxu0 0
        %1293 = vmatpush1.bf16.msra.mxu0 0
        %1294 = vmatprep.subr.bf16.mxu0 0
        %1295 = vmatpush1.bf16.msra.mxu0 0
        %1296 = vmatprep.subr.bf16.mxu0 0
        %1297 = vmatpush1.bf16.msra.mxu0 0
        %1298 = vmatprep.subr.bf16.mxu0 0
        %1299 = vmatpush1.bf16.msra.mxu0 0
        %1300 = vmatprep.subr.bf16.mxu0 0
        %1301 = vmatpush1.bf16.msra.mxu0 0
        %1302 = vmatprep.subr.bf16.mxu0 0
        %1303 = vmatpush1.bf16.msra.mxu0 0
        %1304 = vmatprep.subr.bf16.mxu0 0
        %1305 = vmatpush1.bf16.msra.mxu0 0
        %1306 = vmatprep.subr.bf16.mxu0 0
        %1307 = vmatpush1.bf16.msra.mxu0 0
        %1308 = vmatprep.subr.bf16.mxu0 0
        %1309 = vmatpush1.bf16.msra.mxu0 0
        %1310 = vmatprep.subr.bf16.mxu0 0
        %1311 = vmatpush1.bf16.msra.mxu0 0
        %1312 = vmatprep.subr.bf16.mxu0 0
        %1313 = vmatpush1.bf16.msra.mxu0 0
        %1314 = vmatprep.subr.bf16.mxu0 0
        %1315 = vmatpush1.bf16.msra.mxu0 0
        %1316 = vmatprep.subr.bf16.mxu0 0
        %1317 = vmatpush1.bf16.msra.mxu0 0
        %1318 = vmatprep.subr.bf16.mxu0 0
        %1319 = vmatpush1.bf16.msra.mxu0 0
        %1320 = vmatprep.mubr.bf16.mxu0 0
        %1321 = vmatmul.mubr.bf16.gmra.mrb[0].mxu0 %v675
        %v1322 = vpop.f32.mrb[0].mxu0
        %v1323 = vadd.f32 0.0, %v1322
        %v1324 = vpop.f32.mrb[0].mxu0
        %v1325 = vadd.f32 0.0, %v1324
        %v1326 = vpop.f32.mrb[0].mxu0
        %v1327 = vpop.f32.mrb[0].mxu0
        %1328 = vdwg.mxu0
        %1329 = vrot.lane.b32.xlu0 %v1323, 15
        %v1330 = vpop.permute.xlu0 %1329
        %1331 = vrot.lane.b32.xlu0 %v1325, 15
        %v1332 = vpop.permute.xlu0 %1331
        %v1333 = vsel %vm722, %v1330, %v1332
        %v1334 = vsel %vm722, %v1332, %v1330
        %v1335 = vadd.f32 %v1286, %v1334
        %v1336 = vadd.f32 %v1287, %v1333
        %v1337 = vmul.f32 %v1335, %v731
        %v1338 = vmul.f32 %v1336, %v735
        %1339 = vmatprep.subr.bf16.mxu0 %v1177
        %1340 = vmatpush1.bf16.msra.mxu0 %v1176
        %1341 = vmatprep.subr.bf16.mxu0 %v1179
        %1342 = vmatpush1.bf16.msra.mxu0 %v1178
        %1343 = vmatprep.subr.bf16.mxu0 0
        %1344 = vmatpush1.bf16.msra.mxu0 0
        %1345 = vmatprep.subr.bf16.mxu0 0
        %1346 = vmatpush1.bf16.msra.mxu0 0
        %1347 = vmatprep.subr.bf16.mxu0 0
        %1348 = vmatpush1.bf16.msra.mxu0 0
        %1349 = vmatprep.subr.bf16.mxu0 0
        %1350 = vmatpush1.bf16.msra.mxu0 0
        %1351 = vmatprep.subr.bf16.mxu0 0
        %1352 = vmatpush1.bf16.msra.mxu0 0
        %1353 = vmatprep.subr.bf16.mxu0 0
        %1354 = vmatpush1.bf16.msra.mxu0 0
        %1355 = vmatprep.subr.bf16.mxu0 0
        %1356 = vmatpush1.bf16.msra.mxu0 0
        %1357 = vmatprep.subr.bf16.mxu0 0
        %1358 = vmatpush1.bf16.msra.mxu0 0
        %1359 = vmatprep.subr.bf16.mxu0 0
        %1360 = vmatpush1.bf16.msra.mxu0 0
        %1361 = vmatprep.subr.bf16.mxu0 0
        %1362 = vmatpush1.bf16.msra.mxu0 0
        %1363 = vmatprep.subr.bf16.mxu0 0
        %1364 = vmatpush1.bf16.msra.mxu0 0
        %1365 = vmatprep.subr.bf16.mxu0 0
        %1366 = vmatpush1.bf16.msra.mxu0 0
        %1367 = vmatprep.subr.bf16.mxu0 0
        %1368 = vmatpush1.bf16.msra.mxu0 0
        %1369 = vmatprep.subr.bf16.mxu0 0
        %1370 = vmatpush1.bf16.msra.mxu0 0
        %1371 = vmatprep.mubr.bf16.mxu0 0
        %1372 = vmatmul.mubr.bf16.gmra.mrb[0].mxu0 %v741
        %v1373 = vpop.f32.mrb[0].mxu0
        %v1374 = vadd.f32 0.0, %v1373
        %v1375 = vpop.f32.mrb[0].mxu0
        %v1376 = vadd.f32 0.0, %v1375
        %v1377 = vpop.f32.mrb[0].mxu0
        %v1378 = vpop.f32.mrb[0].mxu0
        %1379 = vdwg.mxu0
        %1380 = vrot.lane.b32.xlu0 %v1374, 1
        %v1381 = vpop.permute.xlu0 %1380
        %1382 = vrot.lane.b32.xlu0 %v1376, 1
        %v1383 = vpop.permute.xlu0 %1382
        %v1384 = vsel %vm788, %v1381, %v1383
        %v1385 = vsel %vm788, %v1383, %v1381
        %1386 = vmatprep.subr.bf16.mxu0 %v1165
        %1387 = vmatpush1.bf16.msra.mxu0 %v1164
        %1388 = vmatprep.subr.bf16.mxu0 %v1167
        %1389 = vmatpush1.bf16.msra.mxu0 %v1166
        %1390 = vmatprep.subr.bf16.mxu0 0
        %1391 = vmatpush1.bf16.msra.mxu0 0
        %1392 = vmatprep.subr.bf16.mxu0 0
        %1393 = vmatpush1.bf16.msra.mxu0 0
        %1394 = vmatprep.subr.bf16.mxu0 0
        %1395 = vmatpush1.bf16.msra.mxu0 0
        %1396 = vmatprep.subr.bf16.mxu0 0
        %1397 = vmatpush1.bf16.msra.mxu0 0
        %1398 = vmatprep.subr.bf16.mxu0 0
        %1399 = vmatpush1.bf16.msra.mxu0 0
        %1400 = vmatprep.subr.bf16.mxu0 0
        %1401 = vmatpush1.bf16.msra.mxu0 0
        %1402 = vmatprep.subr.bf16.mxu0 0
        %1403 = vmatpush1.bf16.msra.mxu0 0
        %1404 = vmatprep.subr.bf16.mxu0 0
        %1405 = vmatpush1.bf16.msra.mxu0 0
        %1406 = vmatprep.subr.bf16.mxu0 0
        %1407 = vmatpush1.bf16.msra.mxu0 0
        %1408 = vmatprep.subr.bf16.mxu0 0
        %1409 = vmatpush1.bf16.msra.mxu0 0
        %1410 = vmatprep.subr.bf16.mxu0 0
        %1411 = vmatpush1.bf16.msra.mxu0 0
        %1412 = vmatprep.subr.bf16.mxu0 0
        %1413 = vmatpush1.bf16.msra.mxu0 0
        %1414 = vmatprep.subr.bf16.mxu0 0
        %1415 = vmatpush1.bf16.msra.mxu0 0
        %1416 = vmatprep.subr.bf16.mxu0 0
        %1417 = vmatpush1.bf16.msra.mxu0 0
        %1418 = vmatprep.mubr.bf16.mxu0 0
        %1419 = vmatmul.mubr.bf16.gmra.mrb[0].mxu0 %v792
        %v1420 = vpop.f32.mrb[0].mxu0
        %v1421 = vadd.f32 0.0, %v1420
        %v1422 = vpop.f32.mrb[0].mxu0
        %v1423 = vadd.f32 0.0, %v1422
        %v1424 = vpop.f32.mrb[0].mxu0
        %v1425 = vpop.f32.mrb[0].mxu0
        %1426 = vdwg.mxu0
        %v1427 = vadd.f32 %v1385, %v1421
        %v1428 = vadd.f32 %v1384, %v1423
        %1429 = vmatprep.subr.bf16.mxu0 %v1189
        %1430 = vmatpush1.bf16.msra.mxu0 %v1188
        %1431 = vmatprep.subr.bf16.mxu0 %v1191
        %1432 = vmatpush1.bf16.msra.mxu0 %v1190
        %1433 = vmatprep.subr.bf16.mxu0 0
        %1434 = vmatpush1.bf16.msra.mxu0 0
        %1435 = vmatprep.subr.bf16.mxu0 0
        %1436 = vmatpush1.bf16.msra.mxu0 0
        %1437 = vmatprep.subr.bf16.mxu0 0
        %1438 = vmatpush1.bf16.msra.mxu0 0
        %1439 = vmatprep.subr.bf16.mxu0 0
        %1440 = vmatpush1.bf16.msra.mxu0 0
        %1441 = vmatprep.subr.bf16.mxu0 0
        %1442 = vmatpush1.bf16.msra.mxu0 0
        %1443 = vmatprep.subr.bf16.mxu0 0
        %1444 = vmatpush1.bf16.msra.mxu0 0
        %1445 = vmatprep.subr.bf16.mxu0 0
        %1446 = vmatpush1.bf16.msra.mxu0 0
        %1447 = vmatprep.subr.bf16.mxu0 0
        %1448 = vmatpush1.bf16.msra.mxu0 0
        %1449 = vmatprep.subr.bf16.mxu0 0
        %1450 = vmatpush1.bf16.msra.mxu0 0
        %1451 = vmatprep.subr.bf16.mxu0 0
        %1452 = vmatpush1.bf16.msra.mxu0 0
        %1453 = vmatprep.subr.bf16.mxu0 0
        %1454 = vmatpush1.bf16.msra.mxu0 0
        %1455 = vmatprep.subr.bf16.mxu0 0
        %1456 = vmatpush1.bf16.msra.mxu0 0
        %1457 = vmatprep.subr.bf16.mxu0 0
        %1458 = vmatpush1.bf16.msra.mxu0 0
        %1459 = vmatprep.subr.bf16.mxu0 0
        %1460 = vmatpush1.bf16.msra.mxu0 0
        %1461 = vmatprep.mubr.bf16.mxu0 0
        %1462 = vmatmul.mubr.bf16.gmra.mrb[0].mxu0 %v838
        %v1463 = vpop.f32.mrb[0].mxu0
        %v1464 = vadd.f32 0.0, %v1463
        %v1465 = vpop.f32.mrb[0].mxu0
        %v1466 = vadd.f32 0.0, %v1465
        %v1467 = vpop.f32.mrb[0].mxu0
        %v1468 = vpop.f32.mrb[0].mxu0
        %1469 = vdwg.mxu0
        %1470 = vrot.lane.b32.xlu0 %v1464, 127
        %v1471 = vpop.permute.xlu0 %1470
        %1472 = vrot.lane.b32.xlu0 %v1466, 127
        %v1473 = vpop.permute.xlu0 %1472
        %v1474 = vsel %vm885, %v1471, %v1473
        %v1475 = vsel %vm885, %v1473, %v1471
        %v1476 = vadd.f32 %v1427, %v1474
        %v1477 = vadd.f32 %v1428, %v1475
        %v1478 = vadd.f32 %v1337, %v1476
        %v1479 = vadd.f32 %v1338, %v1477
        %1480 = vmatprep.subr.bf16.mxu0 %v1177
        %1481 = vmatpush1.bf16.msra.mxu0 %v1176
        %1482 = vmatprep.subr.bf16.mxu0 %v1179
        %1483 = vmatpush1.bf16.msra.mxu0 %v1178
        %1484 = vmatprep.subr.bf16.mxu0 0
        %1485 = vmatpush1.bf16.msra.mxu0 0
        %1486 = vmatprep.subr.bf16.mxu0 0
        %1487 = vmatpush1.bf16.msra.mxu0 0
        %1488 = vmatprep.subr.bf16.mxu0 0
        %1489 = vmatpush1.bf16.msra.mxu0 0
        %1490 = vmatprep.subr.bf16.mxu0 0
        %1491 = vmatpush1.bf16.msra.mxu0 0
        %1492 = vmatprep.subr.bf16.mxu0 0
        %1493 = vmatpush1.bf16.msra.mxu0 0
        %1494 = vmatprep.subr.bf16.mxu0 0
        %1495 = vmatpush1.bf16.msra.mxu0 0
        %1496 = vmatprep.subr.bf16.mxu0 0
        %1497 = vmatpush1.bf16.msra.mxu0 0
        %1498 = vmatprep.subr.bf16.mxu0 0
        %1499 = vmatpush1.bf16.msra.mxu0 0
        %1500 = vmatprep.subr.bf16.mxu0 0
        %1501 = vmatpush1.bf16.msra.mxu0 0
        %1502 = vmatprep.subr.bf16.mxu0 0
        %1503 = vmatpush1.bf16.msra.mxu0 0
        %1504 = vmatprep.subr.bf16.mxu0 0
        %1505 = vmatpush1.bf16.msra.mxu0 0
        %1506 = vmatprep.subr.bf16.mxu0 0
        %1507 = vmatpush1.bf16.msra.mxu0 0
        %1508 = vmatprep.subr.bf16.mxu0 0
        %1509 = vmatpush1.bf16.msra.mxu0 0
        %1510 = vmatprep.subr.bf16.mxu0 0
        %1511 = vmatpush1.bf16.msra.mxu0 0
        %1512 = vmatprep.mubr.bf16.mxu0 0
        %1513 = vmatmul.mubr.bf16.gmra.mrb[0].mxu0 %v893
        %v1514 = vpop.f32.mrb[0].mxu0
        %v1515 = vadd.f32 0.0, %v1514
        %v1516 = vpop.f32.mrb[0].mxu0
        %v1517 = vadd.f32 0.0, %v1516
        %v1518 = vpop.f32.mrb[0].mxu0
        %v1519 = vpop.f32.mrb[0].mxu0
        %1520 = vdwg.mxu0
        %1521 = vrot.lane.b32.xlu0 %v1515, 113
        %v1522 = vpop.permute.xlu0 %1521
        %1523 = vrot.lane.b32.xlu0 %v1517, 113
        %v1524 = vpop.permute.xlu0 %1523
        %v1525 = vsel %vm940, %v1522, %v1524
        %v1526 = vsel %vm940, %v1524, %v1522
        %1527 = vmatprep.subr.bf16.mxu0 %v1165
        %1528 = vmatpush1.bf16.msra.mxu0 %v1164
        %1529 = vmatprep.subr.bf16.mxu0 %v1167
        %1530 = vmatpush1.bf16.msra.mxu0 %v1166
        %1531 = vmatprep.subr.bf16.mxu0 0
        %1532 = vmatpush1.bf16.msra.mxu0 0
        %1533 = vmatprep.subr.bf16.mxu0 0
        %1534 = vmatpush1.bf16.msra.mxu0 0
        %1535 = vmatprep.subr.bf16.mxu0 0
        %1536 = vmatpush1.bf16.msra.mxu0 0
        %1537 = vmatprep.subr.bf16.mxu0 0
        %1538 = vmatpush1.bf16.msra.mxu0 0
        %1539 = vmatprep.subr.bf16.mxu0 0
        %1540 = vmatpush1.bf16.msra.mxu0 0
        %1541 = vmatprep.subr.bf16.mxu0 0
        %1542 = vmatpush1.bf16.msra.mxu0 0
        %1543 = vmatprep.subr.bf16.mxu0 0
        %1544 = vmatpush1.bf16.msra.mxu0 0
        %1545 = vmatprep.subr.bf16.mxu0 0
        %1546 = vmatpush1.bf16.msra.mxu0 0
        %1547 = vmatprep.subr.bf16.mxu0 0
        %1548 = vmatpush1.bf16.msra.mxu0 0
        %1549 = vmatprep.subr.bf16.mxu0 0
        %1550 = vmatpush1.bf16.msra.mxu0 0
        %1551 = vmatprep.subr.bf16.mxu0 0
        %1552 = vmatpush1.bf16.msra.mxu0 0
        %1553 = vmatprep.subr.bf16.mxu0 0
        %1554 = vmatpush1.bf16.msra.mxu0 0
        %1555 = vmatprep.subr.bf16.mxu0 0
        %1556 = vmatpush1.bf16.msra.mxu0 0
        %1557 = vmatprep.subr.bf16.mxu0 0
        %1558 = vmatpush1.bf16.msra.mxu0 0
        %1559 = vmatprep.mubr.bf16.mxu0 0
        %1560 = vmatmul.mubr.bf16.gmra.mrb[0].mxu0 %v944
        %v1561 = vpop.f32.mrb[0].mxu0
        %v1562 = vadd.f32 0.0, %v1561
        %v1563 = vpop.f32.mrb[0].mxu0
        %v1564 = vadd.f32 0.0, %v1563
        %v1565 = vpop.f32.mrb[0].mxu0
        %v1566 = vpop.f32.mrb[0].mxu0
        %1567 = vdwg.mxu0
        %1568 = vrot.lane.b32.xlu0 %v1562, 112
        %v1569 = vpop.permute.xlu0 %1568
        %1570 = vrot.lane.b32.xlu0 %v1564, 112
        %v1571 = vpop.permute.xlu0 %1570
        %v1572 = vsel %vm991, %v1569, %v1571
        %v1573 = vsel %vm991, %v1571, %v1569
        %v1574 = vadd.f32 %v1525, %v1572
        %v1575 = vadd.f32 %v1526, %v1573
        %1576 = vmatprep.subr.bf16.mxu0 %v1189
        %1577 = vmatpush1.bf16.msra.mxu0 %v1188
        %1578 = vmatprep.subr.bf16.mxu0 %v1191
        %1579 = vmatpush1.bf16.msra.mxu0 %v1190
        %1580 = vmatprep.subr.bf16.mxu0 0
        %1581 = vmatpush1.bf16.msra.mxu0 0
        %1582 = vmatprep.subr.bf16.mxu0 0
        %1583 = vmatpush1.bf16.msra.mxu0 0
        %1584 = vmatprep.subr.bf16.mxu0 0
        %1585 = vmatpush1.bf16.msra.mxu0 0
        %1586 = vmatprep.subr.bf16.mxu0 0
        %1587 = vmatpush1.bf16.msra.mxu0 0
        %1588 = vmatprep.subr.bf16.mxu0 0
        %1589 = vmatpush1.bf16.msra.mxu0 0
        %1590 = vmatprep.subr.bf16.mxu0 0
        %1591 = vmatpush1.bf16.msra.mxu0 0
        %1592 = vmatprep.subr.bf16.mxu0 0
        %1593 = vmatpush1.bf16.msra.mxu0 0
        %1594 = vmatprep.subr.bf16.mxu0 0
        %1595 = vmatpush1.bf16.msra.mxu0 0
        %1596 = vmatprep.subr.bf16.mxu0 0
        %1597 = vmatpush1.bf16.msra.mxu0 0
        %1598 = vmatprep.subr.bf16.mxu0 0
        %1599 = vmatpush1.bf16.msra.mxu0 0
        %1600 = vmatprep.subr.bf16.mxu0 0
        %1601 = vmatpush1.bf16.msra.mxu0 0
        %1602 = vmatprep.subr.bf16.mxu0 0
        %1603 = vmatpush1.bf16.msra.mxu0 0
        %1604 = vmatprep.subr.bf16.mxu0 0
        %1605 = vmatpush1.bf16.msra.mxu0 0
        %1606 = vmatprep.subr.bf16.mxu0 0
        %1607 = vmatpush1.bf16.msra.mxu0 0
        %1608 = vmatprep.mubr.bf16.mxu0 0
        %1609 = vmatmul.mubr.bf16.gmra.mrb[0].mxu0 %v997
        %v1610 = vpop.f32.mrb[0].mxu0
        %v1611 = vadd.f32 0.0, %v1610
        %v1612 = vpop.f32.mrb[0].mxu0
        %v1613 = vadd.f32 0.0, %v1612
        %v1614 = vpop.f32.mrb[0].mxu0
        %v1615 = vpop.f32.mrb[0].mxu0
        %1616 = vdwg.mxu0
        %1617 = vrot.lane.b32.xlu0 %v1611, 111
        %v1618 = vpop.permute.xlu0 %1617
        %1619 = vrot.lane.b32.xlu0 %v1613, 111
        %v1620 = vpop.permute.xlu0 %1619
        %v1621 = vsel %vm1044, %v1618, %v1620
        %v1622 = vsel %vm1044, %v1620, %v1618
        %v1623 = vadd.f32 %v1574, %v1621
        %v1624 = vadd.f32 %v1575, %v1622
        %v1625 = vmul.f32 %v1623, %v1053
        %v1626 = vmul.f32 %v1624, %v1057
        %v1627 = vadd.f32 %v1478, %v1625
        %v1628 = vadd.f32 %v1479, %v1626
        %s1629 = scalar_lea.vmem %s301, 16 [#allocation2]
        %1630 = vst [vmem:[%s1629] sm:$0xff] %v1627
        %1631 = vst [vmem:[%s1629 + $0x8] sm:$0xff] %v1628
        %s1632 = scalar_lea.vmem %s307, 32
        %v1633 = vld [vmem:[%s1632] sm:$0xff]
        %v1634 = vld [vmem:[%s1632 + $0x8] sm:$0xff]
        %v1635 = vunpack.c.l.bf16 %v1633
        %v1636 = vunpack.c.h.bf16 %v1633
        %v1637 = vunpack.c.l.bf16 %v1634
        %v1638 = vunpack.c.h.bf16 %v1634
        %v1639 = vmul.f32 %v1635, %v352
        %v1640 = vmul.f32 %v1636, %v352
        %v1641 = vmul.f32 %v1637, %v357
        %v1642 = vmul.f32 %v1638, %v357
        %v1643 = vadd.f32 %v1639, %v366
        %v1644 = vadd.f32 %v1640, %v366
        %v1645 = vadd.f32 %v1641, %v371
        %v1646 = vadd.f32 %v1642, %v371
        %v1647 = vmax.f32 %v1643, 0.0
        %v1648 = vmax.f32 %v1644, 0.0
        %v1649 = vmax.f32 %v1645, 0.0
        %v1650 = vmax.f32 %v1646, 0.0
        %v1651 = vpack.c.bf16 %v1649, %v1647
        %v1652 = vpack.c.bf16 %v1650, %v1648
        %1653 = vmatprep.subr.bf16.mxu0 %v1652
        %1654 = vmatpush1.bf16.msra.mxu0 %v1651
        %1655 = vmatprep.subr.bf16.mxu0 0
        %1656 = vmatpush1.bf16.msra.mxu0 0
        %1657 = vmatprep.subr.bf16.mxu0 0
        %1658 = vmatpush1.bf16.msra.mxu0 0
        %1659 = vmatprep.subr.bf16.mxu0 0
        %1660 = vmatpush1.bf16.msra.mxu0 0
        %1661 = vmatprep.subr.bf16.mxu0 0
        %1662 = vmatpush1.bf16.msra.mxu0 0
        %1663 = vmatprep.subr.bf16.mxu0 0
        %1664 = vmatpush1.bf16.msra.mxu0 0
        %1665 = vmatprep.subr.bf16.mxu0 0
        %1666 = vmatpush1.bf16.msra.mxu0 0
        %1667 = vmatprep.subr.bf16.mxu0 0
        %1668 = vmatpush1.bf16.msra.mxu0 0
        %1669 = vmatprep.subr.bf16.mxu0 0
        %1670 = vmatpush1.bf16.msra.mxu0 0
        %1671 = vmatprep.subr.bf16.mxu0 0
        %1672 = vmatpush1.bf16.msra.mxu0 0
        %1673 = vmatprep.subr.bf16.mxu0 0
        %1674 = vmatpush1.bf16.msra.mxu0 0
        %1675 = vmatprep.subr.bf16.mxu0 0
        %1676 = vmatpush1.bf16.msra.mxu0 0
        %1677 = vmatprep.subr.bf16.mxu0 0
        %1678 = vmatpush1.bf16.msra.mxu0 0
        %1679 = vmatprep.subr.bf16.mxu0 0
        %1680 = vmatpush1.bf16.msra.mxu0 0
        %1681 = vmatprep.subr.bf16.mxu0 0
        %1682 = vmatpush1.bf16.msra.mxu0 0
        %1683 = vmatprep.subr.bf16.mxu0 0
        %1684 = vmatpush1.bf16.msra.mxu0 0
        %1685 = vmatprep.mubr.bf16.mxu0 0
        %1686 = vmatmul.mubr.bf16.gmra.mrb[0].mxu0 %v395
        %v1687 = vpop.f32.mrb[0].mxu0
        %v1688 = vadd.f32 0.0, %v1687
        %v1689 = vpop.f32.mrb[0].mxu0
        %v1690 = vadd.f32 0.0, %v1689
        %v1691 = vpop.f32.mrb[0].mxu0
        %v1692 = vadd.f32 0.0, %v1691
        %v1693 = vpop.f32.mrb[0].mxu0
        %v1694 = vadd.f32 0.0, %v1693
        %1695 = vmatprep.mubr.bf16.mxu0 0
        %1696 = vmatmul.mubr.bf16.gmra.mrb[0].mxu0 %v398
        %v1697 = vpop.f32.mrb[0].mxu0
        %v1698 = vadd.f32 0.0, %v1697
        %v1699 = vpop.f32.mrb[0].mxu0
        %v1700 = vadd.f32 0.0, %v1699
        %v1701 = vpop.f32.mrb[0].mxu0
        %v1702 = vadd.f32 0.0, %v1701
        %v1703 = vpop.f32.mrb[0].mxu0
        %v1704 = vadd.f32 0.0, %v1703
        %1705 = vdwg.mxu0
        %v1706 = vmul.f32 %v1688, %v456
        %v1707 = vmul.f32 %v1690, %v456
        %v1708 = vmul.f32 %v1692, %v461
        %v1709 = vmul.f32 %v1694, %v461
        %v1710 = vmul.f32 %v1698, %v466
        %v1711 = vmul.f32 %v1700, %v466
        %v1712 = vmul.f32 %v1702, %v471
        %v1713 = vmul.f32 %v1704, %v471
        %v1714 = vadd.f32 %v1706, %v484
        %v1715 = vadd.f32 %v1707, %v484
        %v1716 = vadd.f32 %v1708, %v489
        %v1717 = vadd.f32 %v1709, %v489
        %v1718 = vadd.f32 %v1710, %v494
        %v1719 = vadd.f32 %v1711, %v494
        %v1720 = vadd.f32 %v1712, %v499
        %v1721 = vadd.f32 %v1713, %v499
        %v1722 = vmax.f32 %v1714, 0.0
        %v1723 = vmax.f32 %v1715, 0.0
        %v1724 = vmax.f32 %v1716, 0.0
        %v1725 = vmax.f32 %v1717, 0.0
        %v1726 = vmax.f32 %v1718, 0.0
        %v1727 = vmax.f32 %v1719, 0.0
        %v1728 = vmax.f32 %v1720, 0.0
        %v1729 = vmax.f32 %v1721, 0.0
        %v1730 = vpack.c.bf16 %v1724, %v1722
        %v1731 = vpack.c.bf16 %v1725, %v1723
        %v1732 = vpack.c.bf16 %v1728, %v1726
        %v1733 = vpack.c.bf16 %v1729, %v1727
        %v1734 = vmul.f32 %v1722, %v525
        %v1735 = vmul.f32 %v1723, %v529
        %v1736 = vmul.f32 %v1724, %v525
        %v1737 = vmul.f32 %v1725, %v529
        %v1738 = vmul.f32 %v1726, %v525
        %v1739 = vmul.f32 %v1727, %v529
        %v1740 = vmul.f32 %v1728, %v525
        %v1741 = vmul.f32 %v1729, %v529
        %v1742 = vpack.c.bf16 %v1736, %v1734
        %v1743 = vpack.c.bf16 %v1737, %v1735
        %v1744 = vpack.c.bf16 %v1740, %v1738
        %v1745 = vpack.c.bf16 %v1741, %v1739
        %v1746 = vmul.f32 %v1722, %v548
        %v1747 = vmul.f32 %v1723, %v552
        %v1748 = vmul.f32 %v1724, %v548
        %v1749 = vmul.f32 %v1725, %v552
        %v1750 = vmul.f32 %v1726, %v548
        %v1751 = vmul.f32 %v1727, %v552
        %v1752 = vmul.f32 %v1728, %v548
        %v1753 = vmul.f32 %v1729, %v552
        %v1754 = vpack.c.bf16 %v1748, %v1746
        %v1755 = vpack.c.bf16 %v1749, %v1747
        %v1756 = vpack.c.bf16 %v1752, %v1750
        %v1757 = vpack.c.bf16 %v1753, %v1751
        %1758 = vmatprep.subr.bf16.mxu0 %v1743
        %1759 = vmatpush1.bf16.msra.mxu0 %v1742
        %1760 = vmatprep.subr.bf16.mxu0 %v1745
        %1761 = vmatpush1.bf16.msra.mxu0 %v1744
        %1762 = vmatprep.subr.bf16.mxu0 0
        %1763 = vmatpush1.bf16.msra.mxu0 0
        %1764 = vmatprep.subr.bf16.mxu0 0
        %1765 = vmatpush1.bf16.msra.mxu0 0
        %1766 = vmatprep.subr.bf16.mxu0 0
        %1767 = vmatpush1.bf16.msra.mxu0 0
        %1768 = vmatprep.subr.bf16.mxu0 0
        %1769 = vmatpush1.bf16.msra.mxu0 0
        %1770 = vmatprep.subr.bf16.mxu0 0
        %1771 = vmatpush1.bf16.msra.mxu0 0
        %1772 = vmatprep.subr.bf16.mxu0 0
        %1773 = vmatpush1.bf16.msra.mxu0 0
        %1774 = vmatprep.subr.bf16.mxu0 0
        %1775 = vmatpush1.bf16.msra.mxu0 0
        %1776 = vmatprep.subr.bf16.mxu0 0
        %1777 = vmatpush1.bf16.msra.mxu0 0
        %1778 = vmatprep.subr.bf16.mxu0 0
        %1779 = vmatpush1.bf16.msra.mxu0 0
        %1780 = vmatprep.subr.bf16.mxu0 0
        %1781 = vmatpush1.bf16.msra.mxu0 0
        %1782 = vmatprep.subr.bf16.mxu0 0
        %1783 = vmatpush1.bf16.msra.mxu0 0
        %1784 = vmatprep.subr.bf16.mxu0 0
        %1785 = vmatpush1.bf16.msra.mxu0 0
        %1786 = vmatprep.subr.bf16.mxu0 0
        %1787 = vmatpush1.bf16.msra.mxu0 0
        %1788 = vmatprep.subr.bf16.mxu0 0
        %1789 = vmatpush1.bf16.msra.mxu0 0
        %1790 = vmatprep.mubr.bf16.mxu0 0
        %1791 = vmatmul.mubr.bf16.gmra.mrb[0].mxu0 %v569
        %v1792 = vpop.f32.mrb[0].mxu0
        %v1793 = vadd.f32 0.0, %v1792
        %v1794 = vpop.f32.mrb[0].mxu0
        %v1795 = vadd.f32 0.0, %v1794
        %v1796 = vpop.f32.mrb[0].mxu0
        %v1797 = vpop.f32.mrb[0].mxu0
        %1798 = vdwg.mxu0
        %1799 = vrot.lane.b32.xlu0 %v1793, 17
        %v1800 = vpop.permute.xlu0 %1799
        %1801 = vrot.lane.b32.xlu0 %v1795, 17
        %v1802 = vpop.permute.xlu0 %1801
        %v1803 = vsel %vm618, %v1800, %v1802
        %v1804 = vsel %vm618, %v1802, %v1800
        %1805 = vmatprep.subr.bf16.mxu0 %v1731
        %1806 = vmatpush1.bf16.msra.mxu0 %v1730
        %1807 = vmatprep.subr.bf16.mxu0 %v1733
        %1808 = vmatpush1.bf16.msra.mxu0 %v1732
        %1809 = vmatprep.subr.bf16.mxu0 0
        %1810 = vmatpush1.bf16.msra.mxu0 0
        %1811 = vmatprep.subr.bf16.mxu0 0
        %1812 = vmatpush1.bf16.msra.mxu0 0
        %1813 = vmatprep.subr.bf16.mxu0 0
        %1814 = vmatpush1.bf16.msra.mxu0 0
        %1815 = vmatprep.subr.bf16.mxu0 0
        %1816 = vmatpush1.bf16.msra.mxu0 0
        %1817 = vmatprep.subr.bf16.mxu0 0
        %1818 = vmatpush1.bf16.msra.mxu0 0
        %1819 = vmatprep.subr.bf16.mxu0 0
        %1820 = vmatpush1.bf16.msra.mxu0 0
        %1821 = vmatprep.subr.bf16.mxu0 0
        %1822 = vmatpush1.bf16.msra.mxu0 0
        %1823 = vmatprep.subr.bf16.mxu0 0
        %1824 = vmatpush1.bf16.msra.mxu0 0
        %1825 = vmatprep.subr.bf16.mxu0 0
        %1826 = vmatpush1.bf16.msra.mxu0 0
        %1827 = vmatprep.subr.bf16.mxu0 0
        %1828 = vmatpush1.bf16.msra.mxu0 0
        %1829 = vmatprep.subr.bf16.mxu0 0
        %1830 = vmatpush1.bf16.msra.mxu0 0
        %1831 = vmatprep.subr.bf16.mxu0 0
        %1832 = vmatpush1.bf16.msra.mxu0 0
        %1833 = vmatprep.subr.bf16.mxu0 0
        %1834 = vmatpush1.bf16.msra.mxu0 0
        %1835 = vmatprep.subr.bf16.mxu0 0
        %1836 = vmatpush1.bf16.msra.mxu0 0
        %1837 = vmatprep.mubr.bf16.mxu0 0
        %1838 = vmatmul.mubr.bf16.gmra.mrb[0].mxu0 %v622
        %v1839 = vpop.f32.mrb[0].mxu0
        %v1840 = vadd.f32 0.0, %v1839
        %v1841 = vpop.f32.mrb[0].mxu0
        %v1842 = vadd.f32 0.0, %v1841
        %v1843 = vpop.f32.mrb[0].mxu0
        %v1844 = vpop.f32.mrb[0].mxu0
        %1845 = vdwg.mxu0
        %1846 = vrot.lane.b32.xlu0 %v1840, 16
        %v1847 = vpop.permute.xlu0 %1846
        %1848 = vrot.lane.b32.xlu0 %v1842, 16
        %v1849 = vpop.permute.xlu0 %1848
        %v1850 = vsel %vm669, %v1847, %v1849
        %v1851 = vsel %vm669, %v1849, %v1847
        %v1852 = vadd.f32 %v1804, %v1851
        %v1853 = vadd.f32 %v1803, %v1850
        %1854 = vmatprep.subr.bf16.mxu0 %v1755
        %1855 = vmatpush1.bf16.msra.mxu0 %v1754
        %1856 = vmatprep.subr.bf16.mxu0 %v1757
        %1857 = vmatpush1.bf16.msra.mxu0 %v1756
        %1858 = vmatprep.subr.bf16.mxu0 0
        %1859 = vmatpush1.bf16.msra.mxu0 0
        %1860 = vmatprep.subr.bf16.mxu0 0
        %1861 = vmatpush1.bf16.msra.mxu0 0
        %1862 = vmatprep.subr.bf16.mxu0 0
        %1863 = vmatpush1.bf16.msra.mxu0 0
        %1864 = vmatprep.subr.bf16.mxu0 0
        %1865 = vmatpush1.bf16.msra.mxu0 0
        %1866 = vmatprep.subr.bf16.mxu0 0
        %1867 = vmatpush1.bf16.msra.mxu0 0
        %1868 = vmatprep.subr.bf16.mxu0 0
        %1869 = vmatpush1.bf16.msra.mxu0 0
        %1870 = vmatprep.subr.bf16.mxu0 0
        %1871 = vmatpush1.bf16.msra.mxu0 0
        %1872 = vmatprep.subr.bf16.mxu0 0
        %1873 = vmatpush1.bf16.msra.mxu0 0
        %1874 = vmatprep.subr.bf16.mxu0 0
        %1875 = vmatpush1.bf16.msra.mxu0 0
        %1876 = vmatprep.subr.bf16.mxu0 0
        %1877 = vmatpush1.bf16.msra.mxu0 0
        %1878 = vmatprep.subr.bf16.mxu0 0
        %1879 = vmatpush1.bf16.msra.mxu0 0
        %1880 = vmatprep.subr.bf16.mxu0 0
        %1881 = vmatpush1.bf16.msra.mxu0 0
        %1882 = vmatprep.subr.bf16.mxu0 0
        %1883 = vmatpush1.bf16.msra.mxu0 0
        %1884 = vmatprep.subr.bf16.mxu0 0
        %1885 = vmatpush1.bf16.msra.mxu0 0
        %1886 = vmatprep.mubr.bf16.mxu0 0
        %1887 = vmatmul.mubr.bf16.gmra.mrb[0].mxu0 %v675
        %v1888 = vpop.f32.mrb[0].mxu0
        %v1889 = vadd.f32 0.0, %v1888
        %v1890 = vpop.f32.mrb[0].mxu0
        %v1891 = vadd.f32 0.0, %v1890
        %v1892 = vpop.f32.mrb[0].mxu0
        %v1893 = vpop.f32.mrb[0].mxu0
        %1894 = vdwg.mxu0
        %1895 = vrot.lane.b32.xlu0 %v1889, 15
        %v1896 = vpop.permute.xlu0 %1895
        %1897 = vrot.lane.b32.xlu0 %v1891, 15
        %v1898 = vpop.permute.xlu0 %1897
        %v1899 = vsel %vm722, %v1896, %v1898
        %v1900 = vsel %vm722, %v1898, %v1896
        %v1901 = vadd.f32 %v1852, %v1900
        %v1902 = vadd.f32 %v1853, %v1899
        %v1903 = vmul.f32 %v1901, %v731
        %v1904 = vmul.f32 %v1902, %v735
        %1905 = vmatprep.subr.bf16.mxu0 %v1743
        %1906 = vmatpush1.bf16.msra.mxu0 %v1742
        %1907 = vmatprep.subr.bf16.mxu0 %v1745
        %1908 = vmatpush1.bf16.msra.mxu0 %v1744
        %1909 = vmatprep.subr.bf16.mxu0 0
        %1910 = vmatpush1.bf16.msra.mxu0 0
        %1911 = vmatprep.subr.bf16.mxu0 0
        %1912 = vmatpush1.bf16.msra.mxu0 0
        %1913 = vmatprep.subr.bf16.mxu0 0
        %1914 = vmatpush1.bf16.msra.mxu0 0
        %1915 = vmatprep.subr.bf16.mxu0 0
        %1916 = vmatpush1.bf16.msra.mxu0 0
        %1917 = vmatprep.subr.bf16.mxu0 0
        %1918 = vmatpush1.bf16.msra.mxu0 0
        %1919 = vmatprep.subr.bf16.mxu0 0
        %1920 = vmatpush1.bf16.msra.mxu0 0
        %1921 = vmatprep.subr.bf16.mxu0 0
        %1922 = vmatpush1.bf16.msra.mxu0 0
        %1923 = vmatprep.subr.bf16.mxu0 0
        %1924 = vmatpush1.bf16.msra.mxu0 0
        %1925 = vmatprep.subr.bf16.mxu0 0
        %1926 = vmatpush1.bf16.msra.mxu0 0
        %1927 = vmatprep.subr.bf16.mxu0 0
        %1928 = vmatpush1.bf16.msra.mxu0 0
        %1929 = vmatprep.subr.bf16.mxu0 0
        %1930 = vmatpush1.bf16.msra.mxu0 0
        %1931 = vmatprep.subr.bf16.mxu0 0
        %1932 = vmatpush1.bf16.msra.mxu0 0
        %1933 = vmatprep.subr.bf16.mxu0 0
        %1934 = vmatpush1.bf16.msra.mxu0 0
        %1935 = vmatprep.subr.bf16.mxu0 0
        %1936 = vmatpush1.bf16.msra.mxu0 0
        %1937 = vmatprep.mubr.bf16.mxu0 0
        %1938 = vmatmul.mubr.bf16.gmra.mrb[0].mxu0 %v741
        %v1939 = vpop.f32.mrb[0].mxu0
        %v1940 = vadd.f32 0.0, %v1939
        %v1941 = vpop.f32.mrb[0].mxu0
        %v1942 = vadd.f32 0.0, %v1941
        %v1943 = vpop.f32.mrb[0].mxu0
        %v1944 = vpop.f32.mrb[0].mxu0
        %1945 = vdwg.mxu0
        %1946 = vrot.lane.b32.xlu0 %v1940, 1
        %v1947 = vpop.permute.xlu0 %1946
        %1948 = vrot.lane.b32.xlu0 %v1942, 1
        %v1949 = vpop.permute.xlu0 %1948
        %v1950 = vsel %vm788, %v1947, %v1949
        %v1951 = vsel %vm788, %v1949, %v1947
        %1952 = vmatprep.subr.bf16.mxu0 %v1731
        %1953 = vmatpush1.bf16.msra.mxu0 %v1730
        %1954 = vmatprep.subr.bf16.mxu0 %v1733
        %1955 = vmatpush1.bf16.msra.mxu0 %v1732
        %1956 = vmatprep.subr.bf16.mxu0 0
        %1957 = vmatpush1.bf16.msra.mxu0 0
        %1958 = vmatprep.subr.bf16.mxu0 0
        %1959 = vmatpush1.bf16.msra.mxu0 0
        %1960 = vmatprep.subr.bf16.mxu0 0
        %1961 = vmatpush1.bf16.msra.mxu0 0
        %1962 = vmatprep.subr.bf16.mxu0 0
        %1963 = vmatpush1.bf16.msra.mxu0 0
        %1964 = vmatprep.subr.bf16.mxu0 0
        %1965 = vmatpush1.bf16.msra.mxu0 0
        %1966 = vmatprep.subr.bf16.mxu0 0
        %1967 = vmatpush1.bf16.msra.mxu0 0
        %1968 = vmatprep.subr.bf16.mxu0 0
        %1969 = vmatpush1.bf16.msra.mxu0 0
        %1970 = vmatprep.subr.bf16.mxu0 0
        %1971 = vmatpush1.bf16.msra.mxu0 0
        %1972 = vmatprep.subr.bf16.mxu0 0
        %1973 = vmatpush1.bf16.msra.mxu0 0
        %1974 = vmatprep.subr.bf16.mxu0 0
        %1975 = vmatpush1.bf16.msra.mxu0 0
        %1976 = vmatprep.subr.bf16.mxu0 0
        %1977 = vmatpush1.bf16.msra.mxu0 0
        %1978 = vmatprep.subr.bf16.mxu0 0
        %1979 = vmatpush1.bf16.msra.mxu0 0
        %1980 = vmatprep.subr.bf16.mxu0 0
        %1981 = vmatpush1.bf16.msra.mxu0 0
        %1982 = vmatprep.subr.bf16.mxu0 0
        %1983 = vmatpush1.bf16.msra.mxu0 0
        %1984 = vmatprep.mubr.bf16.mxu0 0
        %1985 = vmatmul.mubr.bf16.gmra.mrb[0].mxu0 %v792
        %v1986 = vpop.f32.mrb[0].mxu0
        %v1987 = vadd.f32 0.0, %v1986
        %v1988 = vpop.f32.mrb[0].mxu0
        %v1989 = vadd.f32 0.0, %v1988
        %v1990 = vpop.f32.mrb[0].mxu0
        %v1991 = vpop.f32.mrb[0].mxu0
        %1992 = vdwg.mxu0
        %v1993 = vadd.f32 %v1951, %v1987
        %v1994 = vadd.f32 %v1950, %v1989
        %1995 = vmatprep.subr.bf16.mxu0 %v1755
        %1996 = vmatpush1.bf16.msra.mxu0 %v1754
        %1997 = vmatprep.subr.bf16.mxu0 %v1757
        %1998 = vmatpush1.bf16.msra.mxu0 %v1756
        %1999 = vmatprep.subr.bf16.mxu0 0
        %2000 = vmatpush1.bf16.msra.mxu0 0
        %2001 = vmatprep.subr.bf16.mxu0 0
        %2002 = vmatpush1.bf16.msra.mxu0 0
        %2003 = vmatprep.subr.bf16.mxu0 0
        %2004 = vmatpush1.bf16.msra.mxu0 0
        %2005 = vmatprep.subr.bf16.mxu0 0
        %2006 = vmatpush1.bf16.msra.mxu0 0
        %2007 = vmatprep.subr.bf16.mxu0 0
        %2008 = vmatpush1.bf16.msra.mxu0 0
        %2009 = vmatprep.subr.bf16.mxu0 0
        %2010 = vmatpush1.bf16.msra.mxu0 0
        %2011 = vmatprep.subr.bf16.mxu0 0
        %2012 = vmatpush1.bf16.msra.mxu0 0
        %2013 = vmatprep.subr.bf16.mxu0 0
        %2014 = vmatpush1.bf16.msra.mxu0 0
        %2015 = vmatprep.subr.bf16.mxu0 0
        %2016 = vmatpush1.bf16.msra.mxu0 0
        %2017 = vmatprep.subr.bf16.mxu0 0
        %2018 = vmatpush1.bf16.msra.mxu0 0
        %2019 = vmatprep.subr.bf16.mxu0 0
        %2020 = vmatpush1.bf16.msra.mxu0 0
        %2021 = vmatprep.subr.bf16.mxu0 0
        %2022 = vmatpush1.bf16.msra.mxu0 0
        %2023 = vmatprep.subr.bf16.mxu0 0
        %2024 = vmatpush1.bf16.msra.mxu0 0
        %2025 = vmatprep.subr.bf16.mxu0 0
        %2026 = vmatpush1.bf16.msra.mxu0 0
        %2027 = vmatprep.mubr.bf16.mxu0 0
        %2028 = vmatmul.mubr.bf16.gmra.mrb[0].mxu0 %v838
        %v2029 = vpop.f32.mrb[0].mxu0
        %v2030 = vadd.f32 0.0, %v2029
        %v2031 = vpop.f32.mrb[0].mxu0
        %v2032 = vadd.f32 0.0, %v2031
        %v2033 = vpop.f32.mrb[0].mxu0
        %v2034 = vpop.f32.mrb[0].mxu0
        %2035 = vdwg.mxu0
        %2036 = vrot.lane.b32.xlu0 %v2030, 127
        %v2037 = vpop.permute.xlu0 %2036
        %2038 = vrot.lane.b32.xlu0 %v2032, 127
        %v2039 = vpop.permute.xlu0 %2038
        %v2040 = vsel %vm885, %v2037, %v2039
        %v2041 = vsel %vm885, %v2039, %v2037
        %v2042 = vadd.f32 %v1993, %v2040
        %v2043 = vadd.f32 %v1994, %v2041
        %v2044 = vadd.f32 %v1903, %v2042
        %v2045 = vadd.f32 %v1904, %v2043
        %2046 = vmatprep.subr.bf16.mxu0 %v1743
        %2047 = vmatpush1.bf16.msra.mxu0 %v1742
        %2048 = vmatprep.subr.bf16.mxu0 %v1745
        %2049 = vmatpush1.bf16.msra.mxu0 %v1744
        %2050 = vmatprep.subr.bf16.mxu0 0
        %2051 = vmatpush1.bf16.msra.mxu0 0
        %2052 = vmatprep.subr.bf16.mxu0 0
        %2053 = vmatpush1.bf16.msra.mxu0 0
        %2054 = vmatprep.subr.bf16.mxu0 0
        %2055 = vmatpush1.bf16.msra.mxu0 0
        %2056 = vmatprep.subr.bf16.mxu0 0
        %2057 = vmatpush1.bf16.msra.mxu0 0
        %2058 = vmatprep.subr.bf16.mxu0 0
        %2059 = vmatpush1.bf16.msra.mxu0 0
        %2060 = vmatprep.subr.bf16.mxu0 0
        %2061 = vmatpush1.bf16.msra.mxu0 0
        %2062 = vmatprep.subr.bf16.mxu0 0
        %2063 = vmatpush1.bf16.msra.mxu0 0
        %2064 = vmatprep.subr.bf16.mxu0 0
        %2065 = vmatpush1.bf16.msra.mxu0 0
        %2066 = vmatprep.subr.bf16.mxu0 0
        %2067 = vmatpush1.bf16.msra.mxu0 0
        %2068 = vmatprep.subr.bf16.mxu0 0
        %2069 = vmatpush1.bf16.msra.mxu0 0
        %2070 = vmatprep.subr.bf16.mxu0 0
        %2071 = vmatpush1.bf16.msra.mxu0 0
        %2072 = vmatprep.subr.bf16.mxu0 0
        %2073 = vmatpush1.bf16.msra.mxu0 0
        %2074 = vmatprep.subr.bf16.mxu0 0
        %2075 = vmatpush1.bf16.msra.mxu0 0
        %2076 = vmatprep.subr.bf16.mxu0 0
        %2077 = vmatpush1.bf16.msra.mxu0 0
        %2078 = vmatprep.mubr.bf16.mxu0 0
        %2079 = vmatmul.mubr.bf16.gmra.mrb[0].mxu0 %v893
        %v2080 = vpop.f32.mrb[0].mxu0
        %v2081 = vadd.f32 0.0, %v2080
        %v2082 = vpop.f32.mrb[0].mxu0
        %v2083 = vadd.f32 0.0, %v2082
        %v2084 = vpop.f32.mrb[0].mxu0
        %v2085 = vpop.f32.mrb[0].mxu0
        %2086 = vdwg.mxu0
        %2087 = vrot.lane.b32.xlu0 %v2081, 113
        %v2088 = vpop.permute.xlu0 %2087
        %2089 = vrot.lane.b32.xlu0 %v2083, 113
        %v2090 = vpop.permute.xlu0 %2089
        %v2091 = vsel %vm940, %v2088, %v2090
        %v2092 = vsel %vm940, %v2090, %v2088
        %2093 = vmatprep.subr.bf16.mxu0 %v1731
        %2094 = vmatpush1.bf16.msra.mxu0 %v1730
        %2095 = vmatprep.subr.bf16.mxu0 %v1733
        %2096 = vmatpush1.bf16.msra.mxu0 %v1732
        %2097 = vmatprep.subr.bf16.mxu0 0
        %2098 = vmatpush1.bf16.msra.mxu0 0
        %2099 = vmatprep.subr.bf16.mxu0 0
        %2100 = vmatpush1.bf16.msra.mxu0 0
        %2101 = vmatprep.subr.bf16.mxu0 0
        %2102 = vmatpush1.bf16.msra.mxu0 0
        %2103 = vmatprep.subr.bf16.mxu0 0
        %2104 = vmatpush1.bf16.msra.mxu0 0
        %2105 = vmatprep.subr.bf16.mxu0 0
        %2106 = vmatpush1.bf16.msra.mxu0 0
        %2107 = vmatprep.subr.bf16.mxu0 0
        %2108 = vmatpush1.bf16.msra.mxu0 0
        %2109 = vmatprep.subr.bf16.mxu0 0
        %2110 = vmatpush1.bf16.msra.mxu0 0
        %2111 = vmatprep.subr.bf16.mxu0 0
        %2112 = vmatpush1.bf16.msra.mxu0 0
        %2113 = vmatprep.subr.bf16.mxu0 0
        %2114 = vmatpush1.bf16.msra.mxu0 0
        %2115 = vmatprep.subr.bf16.mxu0 0
        %2116 = vmatpush1.bf16.msra.mxu0 0
        %2117 = vmatprep.subr.bf16.mxu0 0
        %2118 = vmatpush1.bf16.msra.mxu0 0
        %2119 = vmatprep.subr.bf16.mxu0 0
        %2120 = vmatpush1.bf16.msra.mxu0 0
        %2121 = vmatprep.subr.bf16.mxu0 0
        %2122 = vmatpush1.bf16.msra.mxu0 0
        %2123 = vmatprep.subr.bf16.mxu0 0
        %2124 = vmatpush1.bf16.msra.mxu0 0
        %2125 = vmatprep.mubr.bf16.mxu0 0
        %2126 = vmatmul.mubr.bf16.gmra.mrb[0].mxu0 %v944
        %v2127 = vpop.f32.mrb[0].mxu0
        %v2128 = vadd.f32 0.0, %v2127
        %v2129 = vpop.f32.mrb[0].mxu0
        %v2130 = vadd.f32 0.0, %v2129
        %v2131 = vpop.f32.mrb[0].mxu0
        %v2132 = vpop.f32.mrb[0].mxu0
        %2133 = vdwg.mxu0
        %2134 = vrot.lane.b32.xlu0 %v2128, 112
        %v2135 = vpop.permute.xlu0 %2134
        %2136 = vrot.lane.b32.xlu0 %v2130, 112
        %v2137 = vpop.permute.xlu0 %2136
        %v2138 = vsel %vm991, %v2135, %v2137
        %v2139 = vsel %vm991, %v2137, %v2135
        %v2140 = vadd.f32 %v2091, %v2138
        %v2141 = vadd.f32 %v2092, %v2139
        %2142 = vmatprep.subr.bf16.mxu0 %v1755
        %2143 = vmatpush1.bf16.msra.mxu0 %v1754
        %2144 = vmatprep.subr.bf16.mxu0 %v1757
        %2145 = vmatpush1.bf16.msra.mxu0 %v1756
        %2146 = vmatprep.subr.bf16.mxu0 0
        %2147 = vmatpush1.bf16.msra.mxu0 0
        %2148 = vmatprep.subr.bf16.mxu0 0
        %2149 = vmatpush1.bf16.msra.mxu0 0
        %2150 = vmatprep.subr.bf16.mxu0 0
        %2151 = vmatpush1.bf16.msra.mxu0 0
        %2152 = vmatprep.subr.bf16.mxu0 0
        %2153 = vmatpush1.bf16.msra.mxu0 0
        %2154 = vmatprep.subr.bf16.mxu0 0
        %2155 = vmatpush1.bf16.msra.mxu0 0
        %2156 = vmatprep.subr.bf16.mxu0 0
        %2157 = vmatpush1.bf16.msra.mxu0 0
        %2158 = vmatprep.subr.bf16.mxu0 0
        %2159 = vmatpush1.bf16.msra.mxu0 0
        %2160 = vmatprep.subr.bf16.mxu0 0
        %2161 = vmatpush1.bf16.msra.mxu0 0
        %2162 = vmatprep.subr.bf16.mxu0 0
        %2163 = vmatpush1.bf16.msra.mxu0 0
        %2164 = vmatprep.subr.bf16.mxu0 0
        %2165 = vmatpush1.bf16.msra.mxu0 0
        %2166 = vmatprep.subr.bf16.mxu0 0
        %2167 = vmatpush1.bf16.msra.mxu0 0
        %2168 = vmatprep.subr.bf16.mxu0 0
        %2169 = vmatpush1.bf16.msra.mxu0 0
        %2170 = vmatprep.subr.bf16.mxu0 0
        %2171 = vmatpush1.bf16.msra.mxu0 0
        %2172 = vmatprep.subr.bf16.mxu0 0
        %2173 = vmatpush1.bf16.msra.mxu0 0
        %2174 = vmatprep.mubr.bf16.mxu0 0
        %2175 = vmatmul.mubr.bf16.gmra.mrb[0].mxu0 %v997
        %v2176 = vpop.f32.mrb[0].mxu0
        %v2177 = vadd.f32 0.0, %v2176
        %v2178 = vpop.f32.mrb[0].mxu0
        %v2179 = vadd.f32 0.0, %v2178
        %v2180 = vpop.f32.mrb[0].mxu0
        %v2181 = vpop.f32.mrb[0].mxu0
        %2182 = vdwg.mxu0
        %2183 = vrot.lane.b32.xlu0 %v2177, 111
        %v2184 = vpop.permute.xlu0 %2183
        %2185 = vrot.lane.b32.xlu0 %v2179, 111
        %v2186 = vpop.permute.xlu0 %2185
        %v2187 = vsel %vm1044, %v2184, %v2186
        %v2188 = vsel %vm1044, %v2186, %v2184
        %v2189 = vadd.f32 %v2140, %v2187
        %v2190 = vadd.f32 %v2141, %v2188
        %v2191 = vmul.f32 %v2189, %v1053
        %v2192 = vmul.f32 %v2190, %v1057
        %v2193 = vadd.f32 %v2044, %v2191
        %v2194 = vadd.f32 %v2045, %v2192
        %s2195 = scalar_lea.vmem %s301, 32 [#allocation2]
        %2196 = vst [vmem:[%s2195] sm:$0xff] %v2193
        %2197 = vst [vmem:[%s2195 + $0x8] sm:$0xff] %v2194
        %s2198 = scalar_lea.vmem %s307, 48
        %v2199 = vld [vmem:[%s2198] sm:$0xff]
        %v2200 = vld [vmem:[%s2198 + $0x8] sm:$0xff]
        %v2201 = vunpack.c.l.bf16 %v2199
        %v2202 = vunpack.c.h.bf16 %v2199
        %v2203 = vunpack.c.l.bf16 %v2200
        %v2204 = vunpack.c.h.bf16 %v2200
        %v2205 = vmul.f32 %v2201, %v352
        %v2206 = vmul.f32 %v2202, %v352
        %v2207 = vmul.f32 %v2203, %v357
        %v2208 = vmul.f32 %v2204, %v357
        %v2209 = vadd.f32 %v2205, %v366
        %v2210 = vadd.f32 %v2206, %v366
        %v2211 = vadd.f32 %v2207, %v371
        %v2212 = vadd.f32 %v2208, %v371
        %v2213 = vmax.f32 %v2209, 0.0
        %v2214 = vmax.f32 %v2210, 0.0
        %v2215 = vmax.f32 %v2211, 0.0
        %v2216 = vmax.f32 %v2212, 0.0
        %v2217 = vpack.c.bf16 %v2215, %v2213
        %v2218 = vpack.c.bf16 %v2216, %v2214
        %2219 = vmatprep.subr.bf16.mxu0 %v2218
        %2220 = vmatpush1.bf16.msra.mxu0 %v2217
        %2221 = vmatprep.subr.bf16.mxu0 0
        %2222 = vmatpush1.bf16.msra.mxu0 0
        %2223 = vmatprep.subr.bf16.mxu0 0
        %2224 = vmatpush1.bf16.msra.mxu0 0
        %2225 = vmatprep.subr.bf16.mxu0 0
        %2226 = vmatpush1.bf16.msra.mxu0 0
        %2227 = vmatprep.subr.bf16.mxu0 0
        %2228 = vmatpush1.bf16.msra.mxu0 0
        %2229 = vmatprep.subr.bf16.mxu0 0
        %2230 = vmatpush1.bf16.msra.mxu0 0
        %2231 = vmatprep.subr.bf16.mxu0 0
        %2232 = vmatpush1.bf16.msra.mxu0 0
        %2233 = vmatprep.subr.bf16.mxu0 0
        %2234 = vmatpush1.bf16.msra.mxu0 0
        %2235 = vmatprep.subr.bf16.mxu0 0
        %2236 = vmatpush1.bf16.msra.mxu0 0
        %2237 = vmatprep.subr.bf16.mxu0 0
        %2238 = vmatpush1.bf16.msra.mxu0 0
        %2239 = vmatprep.subr.bf16.mxu0 0
        %2240 = vmatpush1.bf16.msra.mxu0 0
        %2241 = vmatprep.subr.bf16.mxu0 0
        %2242 = vmatpush1.bf16.msra.mxu0 0
        %2243 = vmatprep.subr.bf16.mxu0 0
        %2244 = vmatpush1.bf16.msra.mxu0 0
        %2245 = vmatprep.subr.bf16.mxu0 0
        %2246 = vmatpush1.bf16.msra.mxu0 0
        %2247 = vmatprep.subr.bf16.mxu0 0
        %2248 = vmatpush1.bf16.msra.mxu0 0
        %2249 = vmatprep.subr.bf16.mxu0 0
        %2250 = vmatpush1.bf16.msra.mxu0 0
        %2251 = vmatprep.mubr.bf16.mxu0 0
        %2252 = vmatmul.mubr.bf16.gmra.mrb[0].mxu0 %v395
        %v2253 = vpop.f32.mrb[0].mxu0
        %v2254 = vadd.f32 0.0, %v2253
        %v2255 = vpop.f32.mrb[0].mxu0
        %v2256 = vadd.f32 0.0, %v2255
        %v2257 = vpop.f32.mrb[0].mxu0
        %v2258 = vadd.f32 0.0, %v2257
        %v2259 = vpop.f32.mrb[0].mxu0
        %v2260 = vadd.f32 0.0, %v2259
        %2261 = vmatprep.mubr.bf16.mxu0 0
        %2262 = vmatmul.mubr.bf16.gmra.mrb[0].mxu0 %v398
        %v2263 = vpop.f32.mrb[0].mxu0
        %v2264 = vadd.f32 0.0, %v2263
        %v2265 = vpop.f32.mrb[0].mxu0
        %v2266 = vadd.f32 0.0, %v2265
        %v2267 = vpop.f32.mrb[0].mxu0
        %v2268 = vadd.f32 0.0, %v2267
        %v2269 = vpop.f32.mrb[0].mxu0
        %v2270 = vadd.f32 0.0, %v2269
        %2271 = vdwg.mxu0
        %v2272 = vmul.f32 %v2254, %v456
        %v2273 = vmul.f32 %v2256, %v456
        %v2274 = vmul.f32 %v2258, %v461
        %v2275 = vmul.f32 %v2260, %v461
        %v2276 = vmul.f32 %v2264, %v466
        %v2277 = vmul.f32 %v2266, %v466
        %v2278 = vmul.f32 %v2268, %v471
        %v2279 = vmul.f32 %v2270, %v471
        %v2280 = vadd.f32 %v2272, %v484
        %v2281 = vadd.f32 %v2273, %v484
        %v2282 = vadd.f32 %v2274, %v489
        %v2283 = vadd.f32 %v2275, %v489
        %v2284 = vadd.f32 %v2276, %v494
        %v2285 = vadd.f32 %v2277, %v494
        %v2286 = vadd.f32 %v2278, %v499
        %v2287 = vadd.f32 %v2279, %v499
        %v2288 = vmax.f32 %v2280, 0.0
        %v2289 = vmax.f32 %v2281, 0.0
        %v2290 = vmax.f32 %v2282, 0.0
        %v2291 = vmax.f32 %v2283, 0.0
        %v2292 = vmax.f32 %v2284, 0.0
        %v2293 = vmax.f32 %v2285, 0.0
        %v2294 = vmax.f32 %v2286, 0.0
        %v2295 = vmax.f32 %v2287, 0.0
        %v2296 = vpack.c.bf16 %v2290, %v2288
        %v2297 = vpack.c.bf16 %v2291, %v2289
        %v2298 = vpack.c.bf16 %v2294, %v2292
        %v2299 = vpack.c.bf16 %v2295, %v2293
        %v2300 = vmul.f32 %v2288, %v525
        %v2301 = vmul.f32 %v2289, %v529
        %v2302 = vmul.f32 %v2290, %v525
        %v2303 = vmul.f32 %v2291, %v529
        %v2304 = vmul.f32 %v2292, %v525
        %v2305 = vmul.f32 %v2293, %v529
        %v2306 = vmul.f32 %v2294, %v525
        %v2307 = vmul.f32 %v2295, %v529
        %v2308 = vpack.c.bf16 %v2302, %v2300
        %v2309 = vpack.c.bf16 %v2303, %v2301
        %v2310 = vpack.c.bf16 %v2306, %v2304
        %v2311 = vpack.c.bf16 %v2307, %v2305
        %v2312 = vmul.f32 %v2288, %v548
        %v2313 = vmul.f32 %v2289, %v552
        %v2314 = vmul.f32 %v2290, %v548
        %v2315 = vmul.f32 %v2291, %v552
        %v2316 = vmul.f32 %v2292, %v548
        %v2317 = vmul.f32 %v2293, %v552
        %v2318 = vmul.f32 %v2294, %v548
        %v2319 = vmul.f32 %v2295, %v552
        %v2320 = vpack.c.bf16 %v2314, %v2312
        %v2321 = vpack.c.bf16 %v2315, %v2313
        %v2322 = vpack.c.bf16 %v2318, %v2316
        %v2323 = vpack.c.bf16 %v2319, %v2317
        %2324 = vmatprep.subr.bf16.mxu0 %v2309
        %2325 = vmatpush1.bf16.msra.mxu0 %v2308
        %2326 = vmatprep.subr.bf16.mxu0 %v2311
        %2327 = vmatpush1.bf16.msra.mxu0 %v2310
        %2328 = vmatprep.subr.bf16.mxu0 0
        %2329 = vmatpush1.bf16.msra.mxu0 0
        %2330 = vmatprep.subr.bf16.mxu0 0
        %2331 = vmatpush1.bf16.msra.mxu0 0
        %2332 = vmatprep.subr.bf16.mxu0 0
        %2333 = vmatpush1.bf16.msra.mxu0 0
        %2334 = vmatprep.subr.bf16.mxu0 0
        %2335 = vmatpush1.bf16.msra.mxu0 0
        %2336 = vmatprep.subr.bf16.mxu0 0
        %2337 = vmatpush1.bf16.msra.mxu0 0
        %2338 = vmatprep.subr.bf16.mxu0 0
        %2339 = vmatpush1.bf16.msra.mxu0 0
        %2340 = vmatprep.subr.bf16.mxu0 0
        %2341 = vmatpush1.bf16.msra.mxu0 0
        %2342 = vmatprep.subr.bf16.mxu0 0
        %2343 = vmatpush1.bf16.msra.mxu0 0
        %2344 = vmatprep.subr.bf16.mxu0 0
        %2345 = vmatpush1.bf16.msra.mxu0 0
        %2346 = vmatprep.subr.bf16.mxu0 0
        %2347 = vmatpush1.bf16.msra.mxu0 0
        %2348 = vmatprep.subr.bf16.mxu0 0
        %2349 = vmatpush1.bf16.msra.mxu0 0
        %2350 = vmatprep.subr.bf16.mxu0 0
        %2351 = vmatpush1.bf16.msra.mxu0 0
        %2352 = vmatprep.subr.bf16.mxu0 0
        %2353 = vmatpush1.bf16.msra.mxu0 0
        %2354 = vmatprep.subr.bf16.mxu0 0
        %2355 = vmatpush1.bf16.msra.mxu0 0
        %2356 = vmatprep.mubr.bf16.mxu0 0
        %2357 = vmatmul.mubr.bf16.gmra.mrb[0].mxu0 %v569
        %v2358 = vpop.f32.mrb[0].mxu0
        %v2359 = vadd.f32 0.0, %v2358
        %v2360 = vpop.f32.mrb[0].mxu0
        %v2361 = vadd.f32 0.0, %v2360
        %v2362 = vpop.f32.mrb[0].mxu0
        %v2363 = vpop.f32.mrb[0].mxu0
        %2364 = vdwg.mxu0
        %2365 = vrot.lane.b32.xlu0 %v2359, 17
        %v2366 = vpop.permute.xlu0 %2365
        %2367 = vrot.lane.b32.xlu0 %v2361, 17
        %v2368 = vpop.permute.xlu0 %2367
        %v2369 = vsel %vm618, %v2366, %v2368
        %v2370 = vsel %vm618, %v2368, %v2366
        %2371 = vmatprep.subr.bf16.mxu0 %v2297
        %2372 = vmatpush1.bf16.msra.mxu0 %v2296
        %2373 = vmatprep.subr.bf16.mxu0 %v2299
        %2374 = vmatpush1.bf16.msra.mxu0 %v2298
        %2375 = vmatprep.subr.bf16.mxu0 0
        %2376 = vmatpush1.bf16.msra.mxu0 0
        %2377 = vmatprep.subr.bf16.mxu0 0
        %2378 = vmatpush1.bf16.msra.mxu0 0
        %2379 = vmatprep.subr.bf16.mxu0 0
        %2380 = vmatpush1.bf16.msra.mxu0 0
        %2381 = vmatprep.subr.bf16.mxu0 0
        %2382 = vmatpush1.bf16.msra.mxu0 0
        %2383 = vmatprep.subr.bf16.mxu0 0
        %2384 = vmatpush1.bf16.msra.mxu0 0
        %2385 = vmatprep.subr.bf16.mxu0 0
        %2386 = vmatpush1.bf16.msra.mxu0 0
        %2387 = vmatprep.subr.bf16.mxu0 0
        %2388 = vmatpush1.bf16.msra.mxu0 0
        %2389 = vmatprep.subr.bf16.mxu0 0
        %2390 = vmatpush1.bf16.msra.mxu0 0
        %2391 = vmatprep.subr.bf16.mxu0 0
        %2392 = vmatpush1.bf16.msra.mxu0 0
        %2393 = vmatprep.subr.bf16.mxu0 0
        %2394 = vmatpush1.bf16.msra.mxu0 0
        %2395 = vmatprep.subr.bf16.mxu0 0
        %2396 = vmatpush1.bf16.msra.mxu0 0
        %2397 = vmatprep.subr.bf16.mxu0 0
        %2398 = vmatpush1.bf16.msra.mxu0 0
        %2399 = vmatprep.subr.bf16.mxu0 0
        %2400 = vmatpush1.bf16.msra.mxu0 0
        %2401 = vmatprep.subr.bf16.mxu0 0
        %2402 = vmatpush1.bf16.msra.mxu0 0
        %2403 = vmatprep.mubr.bf16.mxu0 0
        %2404 = vmatmul.mubr.bf16.gmra.mrb[0].mxu0 %v622
        %v2405 = vpop.f32.mrb[0].mxu0
        %v2406 = vadd.f32 0.0, %v2405
        %v2407 = vpop.f32.mrb[0].mxu0
        %v2408 = vadd.f32 0.0, %v2407
        %v2409 = vpop.f32.mrb[0].mxu0
        %v2410 = vpop.f32.mrb[0].mxu0
        %2411 = vdwg.mxu0
        %2412 = vrot.lane.b32.xlu0 %v2406, 16
        %v2413 = vpop.permute.xlu0 %2412
        %2414 = vrot.lane.b32.xlu0 %v2408, 16
        %v2415 = vpop.permute.xlu0 %2414
        %v2416 = vsel %vm669, %v2413, %v2415
        %v2417 = vsel %vm669, %v2415, %v2413
        %v2418 = vadd.f32 %v2370, %v2417
        %v2419 = vadd.f32 %v2369, %v2416
        %2420 = vmatprep.subr.bf16.mxu0 %v2321
        %2421 = vmatpush1.bf16.msra.mxu0 %v2320
        %2422 = vmatprep.subr.bf16.mxu0 %v2323
        %2423 = vmatpush1.bf16.msra.mxu0 %v2322
        %2424 = vmatprep.subr.bf16.mxu0 0
        %2425 = vmatpush1.bf16.msra.mxu0 0
        %2426 = vmatprep.subr.bf16.mxu0 0
        %2427 = vmatpush1.bf16.msra.mxu0 0
        %2428 = vmatprep.subr.bf16.mxu0 0
        %2429 = vmatpush1.bf16.msra.mxu0 0
        %2430 = vmatprep.subr.bf16.mxu0 0
        %2431 = vmatpush1.bf16.msra.mxu0 0
        %2432 = vmatprep.subr.bf16.mxu0 0
        %2433 = vmatpush1.bf16.msra.mxu0 0
        %2434 = vmatprep.subr.bf16.mxu0 0
        %2435 = vmatpush1.bf16.msra.mxu0 0
        %2436 = vmatprep.subr.bf16.mxu0 0
        %2437 = vmatpush1.bf16.msra.mxu0 0
        %2438 = vmatprep.subr.bf16.mxu0 0
        %2439 = vmatpush1.bf16.msra.mxu0 0
        %2440 = vmatprep.subr.bf16.mxu0 0
        %2441 = vmatpush1.bf16.msra.mxu0 0
        %2442 = vmatprep.subr.bf16.mxu0 0
        %2443 = vmatpush1.bf16.msra.mxu0 0
        %2444 = vmatprep.subr.bf16.mxu0 0
        %2445 = vmatpush1.bf16.msra.mxu0 0
        %2446 = vmatprep.subr.bf16.mxu0 0
        %2447 = vmatpush1.bf16.msra.mxu0 0
        %2448 = vmatprep.subr.bf16.mxu0 0
        %2449 = vmatpush1.bf16.msra.mxu0 0
        %2450 = vmatprep.subr.bf16.mxu0 0
        %2451 = vmatpush1.bf16.msra.mxu0 0
        %2452 = vmatprep.mubr.bf16.mxu0 0
        %2453 = vmatmul.mubr.bf16.gmra.mrb[0].mxu0 %v675
        %v2454 = vpop.f32.mrb[0].mxu0
        %v2455 = vadd.f32 0.0, %v2454
        %v2456 = vpop.f32.mrb[0].mxu0
        %v2457 = vadd.f32 0.0, %v2456
        %v2458 = vpop.f32.mrb[0].mxu0
        %v2459 = vpop.f32.mrb[0].mxu0
        %2460 = vdwg.mxu0
        %2461 = vrot.lane.b32.xlu0 %v2455, 15
        %v2462 = vpop.permute.xlu0 %2461
        %2463 = vrot.lane.b32.xlu0 %v2457, 15
        %v2464 = vpop.permute.xlu0 %2463
        %v2465 = vsel %vm722, %v2462, %v2464
        %v2466 = vsel %vm722, %v2464, %v2462
        %v2467 = vadd.f32 %v2418, %v2466
        %v2468 = vadd.f32 %v2419, %v2465
        %v2469 = vmul.f32 %v2467, %v731
        %v2470 = vmul.f32 %v2468, %v735
        %2471 = vmatprep.subr.bf16.mxu0 %v2309
        %2472 = vmatpush1.bf16.msra.mxu0 %v2308
        %2473 = vmatprep.subr.bf16.mxu0 %v2311
        %2474 = vmatpush1.bf16.msra.mxu0 %v2310
        %2475 = vmatprep.subr.bf16.mxu0 0
        %2476 = vmatpush1.bf16.msra.mxu0 0
        %2477 = vmatprep.subr.bf16.mxu0 0
        %2478 = vmatpush1.bf16.msra.mxu0 0
        %2479 = vmatprep.subr.bf16.mxu0 0
        %2480 = vmatpush1.bf16.msra.mxu0 0
        %2481 = vmatprep.subr.bf16.mxu0 0
        %2482 = vmatpush1.bf16.msra.mxu0 0
        %2483 = vmatprep.subr.bf16.mxu0 0
        %2484 = vmatpush1.bf16.msra.mxu0 0
        %2485 = vmatprep.subr.bf16.mxu0 0
        %2486 = vmatpush1.bf16.msra.mxu0 0
        %2487 = vmatprep.subr.bf16.mxu0 0
        %2488 = vmatpush1.bf16.msra.mxu0 0
        %2489 = vmatprep.subr.bf16.mxu0 0
        %2490 = vmatpush1.bf16.msra.mxu0 0
        %2491 = vmatprep.subr.bf16.mxu0 0
        %2492 = vmatpush1.bf16.msra.mxu0 0
        %2493 = vmatprep.subr.bf16.mxu0 0
        %2494 = vmatpush1.bf16.msra.mxu0 0
        %2495 = vmatprep.subr.bf16.mxu0 0
        %2496 = vmatpush1.bf16.msra.mxu0 0
        %2497 = vmatprep.subr.bf16.mxu0 0
        %2498 = vmatpush1.bf16.msra.mxu0 0
        %2499 = vmatprep.subr.bf16.mxu0 0
        %2500 = vmatpush1.bf16.msra.mxu0 0
        %2501 = vmatprep.subr.bf16.mxu0 0
        %2502 = vmatpush1.bf16.msra.mxu0 0
        %2503 = vmatprep.mubr.bf16.mxu0 0
        %2504 = vmatmul.mubr.bf16.gmra.mrb[0].mxu0 %v741
        %v2505 = vpop.f32.mrb[0].mxu0
        %v2506 = vadd.f32 0.0, %v2505
        %v2507 = vpop.f32.mrb[0].mxu0
        %v2508 = vadd.f32 0.0, %v2507
        %v2509 = vpop.f32.mrb[0].mxu0
        %v2510 = vpop.f32.mrb[0].mxu0
        %2511 = vdwg.mxu0
        %2512 = vrot.lane.b32.xlu0 %v2506, 1
        %v2513 = vpop.permute.xlu0 %2512
        %2514 = vrot.lane.b32.xlu0 %v2508, 1
        %v2515 = vpop.permute.xlu0 %2514
        %v2516 = vsel %vm788, %v2513, %v2515
        %v2517 = vsel %vm788, %v2515, %v2513
        %2518 = vmatprep.subr.bf16.mxu0 %v2297
        %2519 = vmatpush1.bf16.msra.mxu0 %v2296
        %2520 = vmatprep.subr.bf16.mxu0 %v2299
        %2521 = vmatpush1.bf16.msra.mxu0 %v2298
        %2522 = vmatprep.subr.bf16.mxu0 0
        %2523 = vmatpush1.bf16.msra.mxu0 0
        %2524 = vmatprep.subr.bf16.mxu0 0
        %2525 = vmatpush1.bf16.msra.mxu0 0
        %2526 = vmatprep.subr.bf16.mxu0 0
        %2527 = vmatpush1.bf16.msra.mxu0 0
        %2528 = vmatprep.subr.bf16.mxu0 0
        %2529 = vmatpush1.bf16.msra.mxu0 0
        %2530 = vmatprep.subr.bf16.mxu0 0
        %2531 = vmatpush1.bf16.msra.mxu0 0
        %2532 = vmatprep.subr.bf16.mxu0 0
        %2533 = vmatpush1.bf16.msra.mxu0 0
        %2534 = vmatprep.subr.bf16.mxu0 0
        %2535 = vmatpush1.bf16.msra.mxu0 0
        %2536 = vmatprep.subr.bf16.mxu0 0
        %2537 = vmatpush1.bf16.msra.mxu0 0
        %2538 = vmatprep.subr.bf16.mxu0 0
        %2539 = vmatpush1.bf16.msra.mxu0 0
        %2540 = vmatprep.subr.bf16.mxu0 0
        %2541 = vmatpush1.bf16.msra.mxu0 0
        %2542 = vmatprep.subr.bf16.mxu0 0
        %2543 = vmatpush1.bf16.msra.mxu0 0
        %2544 = vmatprep.subr.bf16.mxu0 0
        %2545 = vmatpush1.bf16.msra.mxu0 0
        %2546 = vmatprep.subr.bf16.mxu0 0
        %2547 = vmatpush1.bf16.msra.mxu0 0
        %2548 = vmatprep.subr.bf16.mxu0 0
        %2549 = vmatpush1.bf16.msra.mxu0 0
        %2550 = vmatprep.mubr.bf16.mxu0 0
        %2551 = vmatmul.mubr.bf16.gmra.mrb[0].mxu0 %v792
        %v2552 = vpop.f32.mrb[0].mxu0
        %v2553 = vadd.f32 0.0, %v2552
        %v2554 = vpop.f32.mrb[0].mxu0
        %v2555 = vadd.f32 0.0, %v2554
        %v2556 = vpop.f32.mrb[0].mxu0
        %v2557 = vpop.f32.mrb[0].mxu0
        %2558 = vdwg.mxu0
        %v2559 = vadd.f32 %v2517, %v2553
        %v2560 = vadd.f32 %v2516, %v2555
        %2561 = vmatprep.subr.bf16.mxu0 %v2321
        %2562 = vmatpush1.bf16.msra.mxu0 %v2320
        %2563 = vmatprep.subr.bf16.mxu0 %v2323
        %2564 = vmatpush1.bf16.msra.mxu0 %v2322
        %2565 = vmatprep.subr.bf16.mxu0 0
        %2566 = vmatpush1.bf16.msra.mxu0 0
        %2567 = vmatprep.subr.bf16.mxu0 0
        %2568 = vmatpush1.bf16.msra.mxu0 0
        %2569 = vmatprep.subr.bf16.mxu0 0
        %2570 = vmatpush1.bf16.msra.mxu0 0
        %2571 = vmatprep.subr.bf16.mxu0 0
        %2572 = vmatpush1.bf16.msra.mxu0 0
        %2573 = vmatprep.subr.bf16.mxu0 0
        %2574 = vmatpush1.bf16.msra.mxu0 0
        %2575 = vmatprep.subr.bf16.mxu0 0
        %2576 = vmatpush1.bf16.msra.mxu0 0
        %2577 = vmatprep.subr.bf16.mxu0 0
        %2578 = vmatpush1.bf16.msra.mxu0 0
        %2579 = vmatprep.subr.bf16.mxu0 0
        %2580 = vmatpush1.bf16.msra.mxu0 0
        %2581 = vmatprep.subr.bf16.mxu0 0
        %2582 = vmatpush1.bf16.msra.mxu0 0
        %2583 = vmatprep.subr.bf16.mxu0 0
        %2584 = vmatpush1.bf16.msra.mxu0 0
        %2585 = vmatprep.subr.bf16.mxu0 0
        %2586 = vmatpush1.bf16.msra.mxu0 0
        %2587 = vmatprep.subr.bf16.mxu0 0
        %2588 = vmatpush1.bf16.msra.mxu0 0
        %2589 = vmatprep.subr.bf16.mxu0 0
        %2590 = vmatpush1.bf16.msra.mxu0 0
        %2591 = vmatprep.subr.bf16.mxu0 0
        %2592 = vmatpush1.bf16.msra.mxu0 0
        %2593 = vmatprep.mubr.bf16.mxu0 0
        %2594 = vmatmul.mubr.bf16.gmra.mrb[0].mxu0 %v838
        %v2595 = vpop.f32.mrb[0].mxu0
        %v2596 = vadd.f32 0.0, %v2595
        %v2597 = vpop.f32.mrb[0].mxu0
        %v2598 = vadd.f32 0.0, %v2597
        %v2599 = vpop.f32.mrb[0].mxu0
        %v2600 = vpop.f32.mrb[0].mxu0
        %2601 = vdwg.mxu0
        %2602 = vrot.lane.b32.xlu0 %v2596, 127
        %v2603 = vpop.permute.xlu0 %2602
        %2604 = vrot.lane.b32.xlu0 %v2598, 127
        %v2605 = vpop.permute.xlu0 %2604
        %v2606 = vsel %vm885, %v2603, %v2605
        %v2607 = vsel %vm885, %v2605, %v2603
        %v2608 = vadd.f32 %v2559, %v2606
        %v2609 = vadd.f32 %v2560, %v2607
        %v2610 = vadd.f32 %v2469, %v2608
        %v2611 = vadd.f32 %v2470, %v2609
        %2612 = vmatprep.subr.bf16.mxu0 %v2309
        %2613 = vmatpush1.bf16.msra.mxu0 %v2308
        %2614 = vmatprep.subr.bf16.mxu0 %v2311
        %2615 = vmatpush1.bf16.msra.mxu0 %v2310
        %2616 = vmatprep.subr.bf16.mxu0 0
        %2617 = vmatpush1.bf16.msra.mxu0 0
        %2618 = vmatprep.subr.bf16.mxu0 0
        %2619 = vmatpush1.bf16.msra.mxu0 0
        %2620 = vmatprep.subr.bf16.mxu0 0
        %2621 = vmatpush1.bf16.msra.mxu0 0
        %2622 = vmatprep.subr.bf16.mxu0 0
        %2623 = vmatpush1.bf16.msra.mxu0 0
        %2624 = vmatprep.subr.bf16.mxu0 0
        %2625 = vmatpush1.bf16.msra.mxu0 0
        %2626 = vmatprep.subr.bf16.mxu0 0
        %2627 = vmatpush1.bf16.msra.mxu0 0
        %2628 = vmatprep.subr.bf16.mxu0 0
        %2629 = vmatpush1.bf16.msra.mxu0 0
        %2630 = vmatprep.subr.bf16.mxu0 0
        %2631 = vmatpush1.bf16.msra.mxu0 0
        %2632 = vmatprep.subr.bf16.mxu0 0
        %2633 = vmatpush1.bf16.msra.mxu0 0
        %2634 = vmatprep.subr.bf16.mxu0 0
        %2635 = vmatpush1.bf16.msra.mxu0 0
        %2636 = vmatprep.subr.bf16.mxu0 0
        %2637 = vmatpush1.bf16.msra.mxu0 0
        %2638 = vmatprep.subr.bf16.mxu0 0
        %2639 = vmatpush1.bf16.msra.mxu0 0
        %2640 = vmatprep.subr.bf16.mxu0 0
        %2641 = vmatpush1.bf16.msra.mxu0 0
        %2642 = vmatprep.subr.bf16.mxu0 0
        %2643 = vmatpush1.bf16.msra.mxu0 0
        %2644 = vmatprep.mubr.bf16.mxu0 0
        %2645 = vmatmul.mubr.bf16.gmra.mrb[0].mxu0 %v893
        %v2646 = vpop.f32.mrb[0].mxu0
        %v2647 = vadd.f32 0.0, %v2646
        %v2648 = vpop.f32.mrb[0].mxu0
        %v2649 = vadd.f32 0.0, %v2648
        %v2650 = vpop.f32.mrb[0].mxu0
        %v2651 = vpop.f32.mrb[0].mxu0
        %2652 = vdwg.mxu0
        %2653 = vrot.lane.b32.xlu0 %v2647, 113
        %v2654 = vpop.permute.xlu0 %2653
        %2655 = vrot.lane.b32.xlu0 %v2649, 113
        %v2656 = vpop.permute.xlu0 %2655
        %v2657 = vsel %vm940, %v2654, %v2656
        %v2658 = vsel %vm940, %v2656, %v2654
        %2659 = vmatprep.subr.bf16.mxu0 %v2297
        %2660 = vmatpush1.bf16.msra.mxu0 %v2296
        %2661 = vmatprep.subr.bf16.mxu0 %v2299
        %2662 = vmatpush1.bf16.msra.mxu0 %v2298
        %2663 = vmatprep.subr.bf16.mxu0 0
        %2664 = vmatpush1.bf16.msra.mxu0 0
        %2665 = vmatprep.subr.bf16.mxu0 0
        %2666 = vmatpush1.bf16.msra.mxu0 0
        %2667 = vmatprep.subr.bf16.mxu0 0
        %2668 = vmatpush1.bf16.msra.mxu0 0
        %2669 = vmatprep.subr.bf16.mxu0 0
        %2670 = vmatpush1.bf16.msra.mxu0 0
        %2671 = vmatprep.subr.bf16.mxu0 0
        %2672 = vmatpush1.bf16.msra.mxu0 0
        %2673 = vmatprep.subr.bf16.mxu0 0
        %2674 = vmatpush1.bf16.msra.mxu0 0
        %2675 = vmatprep.subr.bf16.mxu0 0
        %2676 = vmatpush1.bf16.msra.mxu0 0
        %2677 = vmatprep.subr.bf16.mxu0 0
        %2678 = vmatpush1.bf16.msra.mxu0 0
        %2679 = vmatprep.subr.bf16.mxu0 0
        %2680 = vmatpush1.bf16.msra.mxu0 0
        %2681 = vmatprep.subr.bf16.mxu0 0
        %2682 = vmatpush1.bf16.msra.mxu0 0
        %2683 = vmatprep.subr.bf16.mxu0 0
        %2684 = vmatpush1.bf16.msra.mxu0 0
        %2685 = vmatprep.subr.bf16.mxu0 0
        %2686 = vmatpush1.bf16.msra.mxu0 0
        %2687 = vmatprep.subr.bf16.mxu0 0
        %2688 = vmatpush1.bf16.msra.mxu0 0
        %2689 = vmatprep.subr.bf16.mxu0 0
        %2690 = vmatpush1.bf16.msra.mxu0 0
        %2691 = vmatprep.mubr.bf16.mxu0 0
        %2692 = vmatmul.mubr.bf16.gmra.mrb[0].mxu0 %v944
        %v2693 = vpop.f32.mrb[0].mxu0
        %v2694 = vadd.f32 0.0, %v2693
        %v2695 = vpop.f32.mrb[0].mxu0
        %v2696 = vadd.f32 0.0, %v2695
        %v2697 = vpop.f32.mrb[0].mxu0
        %v2698 = vpop.f32.mrb[0].mxu0
        %2699 = vdwg.mxu0
        %2700 = vrot.lane.b32.xlu0 %v2694, 112
        %v2701 = vpop.permute.xlu0 %2700
        %2702 = vrot.lane.b32.xlu0 %v2696, 112
        %v2703 = vpop.permute.xlu0 %2702
        %v2704 = vsel %vm991, %v2701, %v2703
        %v2705 = vsel %vm991, %v2703, %v2701
        %v2706 = vadd.f32 %v2657, %v2704
        %v2707 = vadd.f32 %v2658, %v2705
        %2708 = vmatprep.subr.bf16.mxu0 %v2321
        %2709 = vmatpush1.bf16.msra.mxu0 %v2320
        %2710 = vmatprep.subr.bf16.mxu0 %v2323
        %2711 = vmatpush1.bf16.msra.mxu0 %v2322
        %2712 = vmatprep.subr.bf16.mxu0 0
        %2713 = vmatpush1.bf16.msra.mxu0 0
        %2714 = vmatprep.subr.bf16.mxu0 0
        %2715 = vmatpush1.bf16.msra.mxu0 0
        %2716 = vmatprep.subr.bf16.mxu0 0
        %2717 = vmatpush1.bf16.msra.mxu0 0
        %2718 = vmatprep.subr.bf16.mxu0 0
        %2719 = vmatpush1.bf16.msra.mxu0 0
        %2720 = vmatprep.subr.bf16.mxu0 0
        %2721 = vmatpush1.bf16.msra.mxu0 0
        %2722 = vmatprep.subr.bf16.mxu0 0
        %2723 = vmatpush1.bf16.msra.mxu0 0
        %2724 = vmatprep.subr.bf16.mxu0 0
        %2725 = vmatpush1.bf16.msra.mxu0 0
        %2726 = vmatprep.subr.bf16.mxu0 0
        %2727 = vmatpush1.bf16.msra.mxu0 0
        %2728 = vmatprep.subr.bf16.mxu0 0
        %2729 = vmatpush1.bf16.msra.mxu0 0
        %2730 = vmatprep.subr.bf16.mxu0 0
        %2731 = vmatpush1.bf16.msra.mxu0 0
        %2732 = vmatprep.subr.bf16.mxu0 0
        %2733 = vmatpush1.bf16.msra.mxu0 0
        %2734 = vmatprep.subr.bf16.mxu0 0
        %2735 = vmatpush1.bf16.msra.mxu0 0
        %2736 = vmatprep.subr.bf16.mxu0 0
        %2737 = vmatpush1.bf16.msra.mxu0 0
        %2738 = vmatprep.subr.bf16.mxu0 0
        %2739 = vmatpush1.bf16.msra.mxu0 0
        %2740 = vmatprep.mubr.bf16.mxu0 0
        %2741 = vmatmul.mubr.bf16.gmra.mrb[0].mxu0 %v997
        %v2742 = vpop.f32.mrb[0].mxu0
        %v2743 = vadd.f32 0.0, %v2742
        %v2744 = vpop.f32.mrb[0].mxu0
        %v2745 = vadd.f32 0.0, %v2744
        %v2746 = vpop.f32.mrb[0].mxu0
        %v2747 = vpop.f32.mrb[0].mxu0
        %2748 = vdwg.mxu0
        %2749 = vrot.lane.b32.xlu0 %v2743, 111
        %v2750 = vpop.permute.xlu0 %2749
        %2751 = vrot.lane.b32.xlu0 %v2745, 111
        %v2752 = vpop.permute.xlu0 %2751
        %v2753 = vsel %vm1044, %v2750, %v2752
        %v2754 = vsel %vm1044, %v2752, %v2750
        %v2755 = vadd.f32 %v2706, %v2753
        %v2756 = vadd.f32 %v2707, %v2754
        %v2757 = vmul.f32 %v2755, %v1053
        %v2758 = vmul.f32 %v2756, %v1057
        %v2759 = vadd.f32 %v2610, %v2757
        %v2760 = vadd.f32 %v2611, %v2758
        %s2761 = scalar_lea.vmem %s301, 48 [#allocation2]
        %2762 = vst [vmem:[%s2761] sm:$0xff] %v2759
        %2763 = vst [vmem:[%s2761 + $0x8] sm:$0xff] %v2760
        %s2764 = sand.u32 %s203, 1
        %s2765 = scalar_lea.sflag [#allocation3], %s2764
        %s2766 = sand.u32 %s203, 1
        %s2767 = smul.addr %s2766, 64
        %s2768 = scalar_lea.vmem [#allocation2], %s2767
        // Predicated region
        $region53: #{tpu_custom_call.1} parent=51 // pred_check
          %p2769 = pneg %p213
        $region54: #{tpu_custom_call.1} parent=51 // pred_check_branch
          %2771 = sbr.rel (%p2769) target = $region56
        $region55: #{tpu_custom_call.1} parent=51 // pred_region
          %s2772 = smul.u32 4, %s22
          %s2774 = ssub.s32 1024, 1024
          %2775 = vsyncadd %s2765, %s2774
          %s2776 = smul.addr %s2772, 2
          %s2777 = smul.addr %s2776, 128
          %s2778 = scalar_lea.hbm %s8, %s2777
          %s2779 = sshll.u32 %s2768, 4
          %s2780 = int_to_ptr.vmem [resolvable:$true] %s2779
          %2785 = dma.vmem_to_hbm [thread:$0]  %s2780, 1024, %s2778, %s2765, 256, 256, 16
        $region56: #{tpu_custom_call.1} parent=51 // pred_fallthru
          _
      $region52: #{tpu_custom_call.1} parent=5 // pred_fallthru
        _
      %p2786 = scmp.le.s32.totalorder 2, %s17
      // Predicated region
      $region57: #{tpu_custom_call.1} parent=5 // pred_check
        %p2787 = pneg %p2786
      $region58: #{tpu_custom_call.1} parent=5 // pred_check_branch
        %2789 = sbr.rel (%p2787) target = $region60
      $region59: #{tpu_custom_call.1} parent=5 // pred_region
        %s2790 = ssub.s32 %s17, 2
        // Predicated region
        $region61: #{tpu_custom_call.1} parent=59 // pred_check
          %p2791 = pneg %p219
        $region62: #{tpu_custom_call.1} parent=59 // pred_check_branch
          %2793 = sbr.rel (%p2791) target = $region64
        $region63: #{tpu_custom_call.1} parent=59 // pred_region
          %s2794 = sand.u32 %s204, 1
          %s2795 = scalar_lea.sflag [#allocation3], %s2794
          %s2796 = sand.u32 %s204, 1
          %s2797 = smul.addr %s2796, 64
          %s2798 = scalar_lea.vmem [#allocation2], %s2797
          %2799 = dma.done %s2795, 1024
        $region64: #{tpu_custom_call.1} parent=59 // pred_fallthru
          _
      $region60: #{tpu_custom_call.1} parent=5 // pred_fallthru
        _
    $region6: #{tpu_custom_call.1} parent=1 // loop_footer
      %s21 = sadd.s32 1, %s17
    $region7: #{tpu_custom_call.1} parent=1 // loop_footer_branch
      %16 = sbr.rel target = $region3
    $region8: #{tpu_custom_call.1} parent=1 // loop_exit
      _
    %2800 = vsyncpa [#allocation3], 1
    %s2801 = scalar_lea.sflag [#allocation3], 1
    %2802 = vsyncpa %s2801, 1

</llo_original>
